<compile_context>
chip_gen: v7x
topology: tpu7x:2x2x1
jax: 0.10.0
libtpu: 0.0.40
codegen_flags: <defaults>
</compile_context>

<pallas_src>
import functools

import jax
import jax.numpy as jnp
from jax import lax
from jax.experimental import pallas as pl
from jax.experimental.pallas import tpu as pltpu


# ----------------------------------------------------------------------------
# Pallas kernel
# ----------------------------------------------------------------------------
def _gru_head_kernel(
    x_ref,        # (Bt, Tc, H)   current batch block / time chunk (mxu dtype)
    wih_f_ref,    # fused: (H, 3H)  |  per-gate: (3, H, H)     forward W_ih^T
    whh_f_ref,    # fused: (H, 3H)  |  per-gate: (3, H, H)     forward W_hh^T
    wih_b_ref,    # same layout (reverse W_ih^T); reverse W_hh never needed
    vec_ref,      # (12, H) f32 packed biases / LayerNorm params (see wrapper)
    lw_f_ref,     # (H, Opad)  linear weight, forward half (transposed, padded)
    lw_b_ref,     # (H, Opad)  linear weight, backward half
    lb_ref,       # (1, Opad)  linear bias (padded)
    out_ref,      # (Bt, Opad)
    h_ref,        # VMEM scratch (Bt, H) f32: hidden state carried across T chunks
    *, fuse_gates: bool,
):
    Bt, Tc, H = x_ref.shape
    f32 = jnp.float32
    j = pl.program_id(1)
    nt = pl.num_programs(1)

    def row(k):                         # (1, H) f32 row of the packed vector
        return vec_ref[k:k + 1, :]

    def sigmoid(v):                     # one EUP op (tanh) instead of exp + recip
        return 0.5 * jnp.tanh(0.5 * v) + 0.5

    def gate_proj(x2d, w_ref):          # (N, H) -> three (N, H) gate pre-activations
        if fuse_gates:                  # H % 128 == 0: tile-aligned lane slices
            g = jnp.dot(x2d, w_ref[...], preferred_element_type=f32)
            return g[:, :H], g[:, H:2 * H], g[:, 2 * H:]
        return (jnp.dot(x2d, w_ref[0], preferred_element_type=f32),
                jnp.dot(x2d, w_ref[1], preferred_element_type=f32),
                jnp.dot(x2d, w_ref[2], preferred_element_type=f32))

    # ---- hidden-state carry: zero at the first time chunk of each batch block.
    @pl.when(j == 0)
    def _():
        h_ref[...] = jnp.zeros_like(h_ref)

    # ---- hoisted input projection over the whole chunk (one matmul per chunk).
    x2d = x_ref[...].reshape(Bt * Tc, H)
    mxu_dt = x2d.dtype
    gr, gz, gn = gate_proj(x2d, wih_f_ref)
    gx_r = (gr + row(0)).reshape(Bt, Tc, H)     # bih_r + bhh_r folded
    gx_z = (gz + row(1)).reshape(Bt, Tc, H)     # bih_z + bhh_z folded
    gx_n = (gn + row(2)).reshape(Bt, Tc, H)     # bih_n only (bhh_n stays in tanh)
    bhh_n = row(3)

    # ---- serial recurrence over the chunk (Tc is small -> static unroll).
    # h == 0 at t == 0 makes the general update exactly the "from zero" step.
    h = h_ref[...]
    for t in range(Tc):
        hc = h.astype(mxu_dt)
        hr, hz, hn = gate_proj(hc, whh_f_ref)
        r = sigmoid(gx_r[:, t, :] + hr)
        z = sigmoid(gx_z[:, t, :] + hz)
        n = jnp.tanh(gx_n[:, t, :] + r * (hn + bhh_n))
        h = n + z * (h - n)             # == (1 - z) * n + z * h
    h_ref[...] = h

    # ---- last chunk: backward direction (one step from zero on x[:, -1, :]),
    # concat-free LayerNorm, split linear head, lane-dense store.
    @pl.when(j == nt - 1)
    def _():
        h_fwd = h

        x_last = x_ref[:, Tc - 1, :]                  # == x[:, T-1, :]
        br, bz, bn = gate_proj(x_last, wih_b_ref)
        rb = sigmoid(br + row(4))
        zb = sigmoid(bz + row(5))
        nb = jnp.tanh(bn + row(6) + rb * row(7))
        h_bwd = nb - zb * nb                          # (1 - z) * n   (h0 == 0)

        inv_2h = 1.0 / (2.0 * H)
        mean = (jnp.sum(h_fwd, axis=-1, keepdims=True)
                + jnp.sum(h_bwd, axis=-1, keepdims=True)) * inv_2h
        df = h_fwd - mean
        db = h_bwd - mean
        var = (jnp.sum(df * df, axis=-1, keepdims=True)
               + jnp.sum(db * db, axis=-1, keepdims=True)) * inv_2h
        inv_std = lax.rsqrt(var + 1e-5)               # torch LayerNorm eps
        nf = df * inv_std * row(8) + row(10)
        nbv = db * inv_std * row(9) + row(11)

        lw_dt = lw_f_ref.dtype
        out = (jnp.dot(nf.astype(lw_dt), lw_f_ref[...], preferred_element_type=f32)
               + jnp.dot(nbv.astype(lw_dt), lw_b_ref[...], preferred_element_type=f32)
               + lb_ref[...])
        out_ref[...] = out.astype(out_ref.dtype)


# ----------------------------------------------------------------------------
# Wrapper: repack PyTorch-shaped params and call the kernel
# ----------------------------------------------------------------------------
def gru_head_forward(x, params, out_features, *, block_b=128, max_t_chunk=32,
                     use_bf16_matmul=False):
    """x: (B, T, H) batch_first. params: PyTorch-shaped GRUHead parameter dict."""
    B, T, H = x.shape
    O = out_features
    fuse_gates = (H % 128 == 0)
    mxu_dtype = jnp.bfloat16 if use_bf16_matmul else jnp.float32

    # ---- batch tile (multiple of 8, no bigger than the padded batch)
    block_b = max(8, (int(block_b) // 8) * 8)
    block_b = min(block_b, pl.cdiv(B, 8) * 8)
    Bp = pl.cdiv(B, block_b) * block_b
    nb = Bp // block_b

    # ---- time chunk: largest multiple-of-8 divisor of T that is <= max_t_chunk
    # (falls back to the whole T if none exists).
    if T <= max_t_chunk:
        t_chunk = T
    else:
        t_chunk = T
        for c in range(8, max_t_chunk + 1, 8):
            if T % c == 0:
                t_chunk = c
    nt = T // t_chunk

    O_pad = pl.cdiv(O, 128) * 128            # lane-dense output

    x_p = x.astype(mxu_dtype)
    if Bp != B:
        x_p = jnp.pad(x_p, ((0, Bp - B), (0, 0), (0, 0)))

    def pack_w(w):     # torch (3H, H) rows [r; z; n] -> transposed gate layout
        parts = [w[0:H].T, w[H:2 * H].T, w[2 * H:3 * H].T]
        if fuse_gates:
            return jnp.concatenate(parts, axis=1).astype(mxu_dtype)   # (H, 3H)
        return jnp.stack(parts).astype(mxu_dtype)                     # (3, H, H)

    bih_f, bhh_f = params["bias_ih_l0"], params["bias_hh_l0"]
    bih_b, bhh_b = params["bias_ih_l0_reverse"], params["bias_hh_l0_reverse"]
    vec = jnp.stack([
        bih_f[0:H] + bhh_f[0:H], bih_f[H:2 * H] + bhh_f[H:2 * H],
        bih_f[2 * H:], bhh_f[2 * H:],
        bih_b[0:H] + bhh_b[0:H], bih_b[H:2 * H] + bhh_b[H:2 * H],
        bih_b[2 * H:], bhh_b[2 * H:],
        params["ln_weight"][:H], params["ln_weight"][H:],
        params["ln_bias"][:H], params["ln_bias"][H:],
    ]).astype(jnp.float32)                                            # (12, H)

    lw = params["lin_weight"]                                         # (O, 2H)
    lw_f = jnp.zeros((H, O_pad), mxu_dtype).at[:, :O].set(lw[:, :H].T.astype(mxu_dtype))
    lw_b = jnp.zeros((H, O_pad), mxu_dtype).at[:, :O].set(lw[:, H:].T.astype(mxu_dtype))
    lb = jnp.zeros((1, O_pad), jnp.float32).at[0, :O].set(params["lin_bias"])

    args = (x_p, pack_w(params["weight_ih_l0"]), pack_w(params["weight_hh_l0"]),
            pack_w(params["weight_ih_l0_reverse"]), vec, lw_f, lw_b, lb)

    def const_spec(shape):
        # Grid-invariant operand: a single VMEM buffer suffices (never re-fetched).
        nd = len(shape)
        idx = lambda i, j, _nd=nd: (0,) * _nd
        try:
            return pl.BlockSpec(shape, idx, pipeline_mode=pl.Buffered(1))
        except (TypeError, AttributeError):
            return pl.BlockSpec(shape, idx)

    in_specs = [pl.BlockSpec((block_b, t_chunk, H), lambda i, j: (i, j, 0))]
    in_specs += [const_spec(a.shape) for a in args[1:]]
    out_spec = pl.BlockSpec((block_b, O_pad), lambda i, j: (i, 0))

    # ---- explicit scoped-VMEM budget (defaults 16/32 MiB are too low for large
    # tiles).  NOTE: v7x physical VMEM is 64 MiB -- size block_b / max_t_chunk
    # so that this estimate stays comfortably below it there.
    msize = jnp.dtype(mxu_dtype).itemsize
    est = (2 * block_b * t_chunk * H * msize            # x block, double-buffered
           + 3 * block_b * t_chunk * H * 4              # hoisted gate pre-activations
           + 2 * (9 * H * H + 2 * H * O_pad) * msize    # weights (conservative 2x)
           + 2 * block_b * O_pad * 4 + block_b * H * 4  # out block + h carry
           + (4 << 20))                                 # headroom
    vmem_limit = int(min(max(est, 32 << 20), 100 << 20))

    out = pl.pallas_call(
        functools.partial(_gru_head_kernel, fuse_gates=fuse_gates),
        out_shape=jax.ShapeDtypeStruct((Bp, O_pad), jnp.float32),
        grid=(nb, nt),
        in_specs=in_specs,
        out_specs=out_spec,
        scratch_shapes=[pltpu.VMEM((block_b, H), jnp.float32)],
        compiler_params=pltpu.CompilerParams(
            dimension_semantics=("parallel", "arbitrary"),
            vmem_limit_bytes=vmem_limit),
    )(*args)

    out = out[:B, :O]
    return jnp.squeeze(out, axis=-1) if O == 1 else out


# ----------------------------------------------------------------------------
# Pure-JAX reference: FULL bidirectional GRU (both directions scanned over all T),
# then output[:, -1, :] -> LayerNorm -> Linear, matching the PyTorch module.
# ----------------------------------------------------------------------------
def gru_head_reference(x, params, out_features):
    B, T, H = x.shape

    def cell(x_t, h, wih, whh, bih, bhh):
        gx = x_t @ wih.T + bih
        gh = h @ whh.T + bhh
        r = jax.nn.sigmoid(gx[:, :H] + gh[:, :H])
        z = jax.nn.sigmoid(gx[:, H:2 * H] + gh[:, H:2 * H])
        n = jnp.tanh(gx[:, 2 * H:] + r * gh[:, 2 * H:])
        return (1.0 - z) * n + z * h

    def run_dir(xs, sfx=""):
        h = jnp.zeros((B, H), jnp.float32)
        outs = []
        for t in range(T):
            h = cell(xs[:, t, :], h,
                     params["weight_ih_l0" + sfx], params["weight_hh_l0" + sfx],
                     params["bias_ih_l0" + sfx], params["bias_hh_l0" + sfx])
            outs.append(h)
        return jnp.stack(outs, axis=1)                      # (B, T, H)

    out_f = run_dir(x)
    out_b = run_dir(x[:, ::-1, :], "_reverse")[:, ::-1, :]  # back to original time order
    feat = jnp.concatenate([out_f[:, -1, :], out_b[:, -1, :]], axis=-1)
    mean = feat.mean(-1, keepdims=True)
    var = ((feat - mean) ** 2).mean(-1, keepdims=True)
    normed = (feat - mean) / jnp.sqrt(var + 1e-5)
    normed = normed * params["ln_weight"] + params["ln_bias"]
    out = normed @ params["lin_weight"].T + params["lin_bias"]
    return jnp.squeeze(out, axis=-1) if out_features == 1 else out


# ----------------------------------------------------------------------------
# Deterministic parameter init (PyTorch shapes) + driver
# ----------------------------------------------------------------------------
def init_params(key, in_features, out_features):
    H, O = in_features, out_features
    k = jax.random.split(key, 10)
    s_gru = 1.0 / float(jnp.sqrt(jnp.float32(H)))
    s_lin = 1.0 / float(jnp.sqrt(jnp.float32(2 * H)))
    u = lambda kk, shape, s: jax.random.uniform(kk, shape, jnp.float32, -s, s)
    return {
        "weight_ih_l0": u(k[0], (3 * H, H), s_gru),
        "weight_hh_l0": u(k[1], (3 * H, H), s_gru),
        "bias_ih_l0": u(k[2], (3 * H,), s_gru),
        "bias_hh_l0": u(k[3], (3 * H,), s_gru),
        "weight_ih_l0_reverse": u(k[4], (3 * H, H), s_gru),
        "weight_hh_l0_reverse": u(k[5], (3 * H, H), s_gru),
        "bias_ih_l0_reverse": u(k[6], (3 * H,), s_gru),
        "bias_hh_l0_reverse": u(k[7], (3 * H,), s_gru),
        "ln_weight": jnp.ones((2 * H,), jnp.float32),
        "ln_bias": jnp.zeros((2 * H,), jnp.float32),
        "lin_weight": u(k[8], (O, 2 * H), s_lin),
        "lin_bias": u(k[9], (O,), s_lin),
    }


if __name__ == "__main__":
    key = jax.random.PRNGKey(0)
    k1, k2, k3, k4 = jax.random.split(key, 4)

    # ---- Test 1: module-sized small shapes (per-gate path, one T chunk, f32)
    B, T, H, O = 2, 8, 32, 1
    x = jax.random.normal(k1, (B, T, H), dtype=jnp.float32)
    params = init_params(k2, H, O)
    run = jax.jit(functools.partial(gru_head_forward, out_features=O))
    out = jax.block_until_ready(run(x, params))
    ref = gru_head_reference(x, params, O)
    assert out.shape == ref.shape == (B,), (out.shape, ref.shape)
    assert jnp.allclose(out, ref, atol=1e-4, rtol=1e-4), (out, ref)

    # ---- Test 2: fused gates (H % 128 == 0), multi-chunk hidden-state carry, f32
    B2, T2, H2, O2 = 4, 24, 128, 1
    x2 = jax.random.normal(k3, (B2, T2, H2), dtype=jnp.float32)
    params2 = init_params(k4, H2, O2)
    run2 = jax.jit(functools.partial(gru_head_forward, out_features=O2, max_t_chunk=8))
    out2 = jax.block_until_ready(run2(x2, params2))
    ref2 = gru_head_reference(x2, params2, O2)
    assert out2.shape == ref2.shape == (B2,), (out2.shape, ref2.shape)
    assert jnp.allclose(out2, ref2, atol=1e-3, rtol=1e-3), (out2, ref2)

    # ---- Test 3: same shapes with bf16 MXU operands (v6e/v7x production setting),
    # validated against the f32 reference with an appropriately looser tolerance.
    run3 = jax.jit(functools.partial(gru_head_forward, out_features=O2, max_t_chunk=8,
                                     use_bf16_matmul=True))
    out3 = jax.block_until_ready(run3(x2, params2))
    assert jnp.allclose(out3, ref2, atol=0.15, rtol=0.1), (out3, ref2)

    print("KERNEL_OK")
</pallas_src>

<mosaic_0001>
module attributes {stable_mosaic.version = 11 : i64} {
  func.func @_gru_head_kernel(%arg0: i32, %arg1: i32, %arg2: memref<8x8x32xf32, #tpu.memory_space<vmem>>, %arg3: memref<3x32x32xf32, #tpu.memory_space<vmem>>, %arg4: memref<3x32x32xf32, #tpu.memory_space<vmem>>, %arg5: memref<3x32x32xf32, #tpu.memory_space<vmem>>, %arg6: memref<12x32xf32, #tpu.memory_space<vmem>>, %arg7: memref<32x128xf32, #tpu.memory_space<vmem>>, %arg8: memref<32x128xf32, #tpu.memory_space<vmem>>, %arg9: memref<1x128xf32, #tpu.memory_space<vmem>>, %arg10: memref<8x128xf32, #tpu.memory_space<vmem>>, %arg11: memref<8x32xf32, #tpu.memory_space<vmem>>) attributes {dimension_semantics = [#tpu.dimension_semantics<parallel>, #tpu.dimension_semantics<arbitrary>], iteration_bounds = array<i64: 1, 1>, scalar_prefetch = 0 : i64, scratch_operands = 1 : i64, tpu.core_type = #tpu.core_type<tc>, window_params = [{transform_indices = @transform_0, window_bounds = array<i64: 8, 8, 32>}, {pipeline_mode = #tpu.pipeline_mode<synchronous>, transform_indices = @transform_1, window_bounds = array<i64: 3, 32, 32>}, {pipeline_mode = #tpu.pipeline_mode<synchronous>, transform_indices = @transform_2, window_bounds = array<i64: 3, 32, 32>}, {pipeline_mode = #tpu.pipeline_mode<synchronous>, transform_indices = @transform_3, window_bounds = array<i64: 3, 32, 32>}, {pipeline_mode = #tpu.pipeline_mode<synchronous>, transform_indices = @transform_4, window_bounds = array<i64: 12, 32>}, {pipeline_mode = #tpu.pipeline_mode<synchronous>, transform_indices = @transform_5, window_bounds = array<i64: 32, 128>}, {pipeline_mode = #tpu.pipeline_mode<synchronous>, transform_indices = @transform_6, window_bounds = array<i64: 32, 128>}, {pipeline_mode = #tpu.pipeline_mode<synchronous>, transform_indices = @transform_7, window_bounds = array<i64: 1, 128>}, {transform_indices = @transform_8, window_bounds = array<i64: 8, 128>}]} {
    %c0_i32 = arith.constant 0 : i32
    %0 = arith.cmpi eq, %arg1, %c0_i32 : i32
    %1 = arith.extui %0 : i1 to i32
    %c0_i32_0 = arith.constant 0 : i32
    %2 = arith.cmpi ne, %1, %c0_i32_0 : i32
    scf.if %2 {
      %cst_169 = arith.constant 0.000000e+00 : f32
      %344 = vector.broadcast %cst_169 : f32 to vector<8x32xf32>
      %c0_170 = arith.constant 0 : index
      %c0_171 = arith.constant 0 : index
      %345 = vector.load %arg11[%c0_170, %c0_171] : memref<8x32xf32, #tpu.memory_space<vmem>>, vector<8x32xf32>
      tpu.vector_store %arg11[%c0_170, %c0_171], %344 {strides = array<i32>} : memref<8x32xf32, #tpu.memory_space<vmem>>, vector<8x32xf32>,
    } else {
    }
    %c0 = arith.constant 0 : index
    %c0_1 = arith.constant 0 : index
    %c0_2 = arith.constant 0 : index
    %3 = vector.load %arg2[%c0, %c0_1, %c0_2] : memref<8x8x32xf32, #tpu.memory_space<vmem>>, vector<8x8x32xf32>
    %4 = vector.shape_cast %3 : vector<8x8x32xf32> to vector<64x32xf32>
    %c0_3 = arith.constant 0 : index
    %c0_4 = arith.constant 0 : index
    %c0_5 = arith.constant 0 : index
    %5 = vector.load %arg3[%c0_3, %c0_4, %c0_5] : memref<3x32x32xf32, #tpu.memory_space<vmem>>, vector<1x32x32xf32>
    %6 = vector.shape_cast %5 : vector<1x32x32xf32> to vector<32x32xf32>
    %cst = arith.constant dense<0.000000e+00> : vector<64x32xf32>
    %7 = tpu.matmul %4, %6, %cst {dimension_numbers = #tpu.dot_dimension_numbers<[1], [0], [0], [1], [0, 0, 1, 1], [], []>} : vector<64x32xf32>, vector<32x32xf32>, vector<64x32xf32> -> vector<64x32xf32>
    %c1 = arith.constant 1 : index
    %c0_6 = arith.constant 0 : index
    %c0_7 = arith.constant 0 : index
    %8 = vector.load %arg3[%c1, %c0_6, %c0_7] : memref<3x32x32xf32, #tpu.memory_space<vmem>>, vector<1x32x32xf32>
    %9 = vector.shape_cast %8 : vector<1x32x32xf32> to vector<32x32xf32>
    %cst_8 = arith.constant dense<0.000000e+00> : vector<64x32xf32>
    %10 = tpu.matmul %4, %9, %cst_8 {dimension_numbers = #tpu.dot_dimension_numbers<[1], [0], [0], [1], [0, 0, 1, 1], [], []>} : vector<64x32xf32>, vector<32x32xf32>, vector<64x32xf32> -> vector<64x32xf32>
    %c2 = arith.constant 2 : index
    %c0_9 = arith.constant 0 : index
    %c0_10 = arith.constant 0 : index
    %11 = vector.load %arg3[%c2, %c0_9, %c0_10] : memref<3x32x32xf32, #tpu.memory_space<vmem>>, vector<1x32x32xf32>
    %12 = vector.shape_cast %11 : vector<1x32x32xf32> to vector<32x32xf32>
    %cst_11 = arith.constant dense<0.000000e+00> : vector<64x32xf32>
    %13 = tpu.matmul %4, %12, %cst_11 {dimension_numbers = #tpu.dot_dimension_numbers<[1], [0], [0], [1], [0, 0, 1, 1], [], []>} : vector<64x32xf32>, vector<32x32xf32>, vector<64x32xf32> -> vector<64x32xf32>
    %c0_12 = arith.constant 0 : index
    %c0_13 = arith.constant 0 : index
    %14 = vector.load %arg6[%c0_12, %c0_13] : memref<12x32xf32, #tpu.memory_space<vmem>>, vector<1x32xf32>
    %15 = vector.broadcast %14 : vector<1x32xf32> to vector<64x32xf32>
    %16 = arith.addf %7, %15 : vector<64x32xf32>
    %17 = vector.shape_cast %16 : vector<64x32xf32> to vector<8x8x32xf32>
    %c1_14 = arith.constant 1 : index
    %c0_15 = arith.constant 0 : index
    %18 = vector.load %arg6[%c1_14, %c0_15] : memref<12x32xf32, #tpu.memory_space<vmem>>, vector<1x32xf32>
    %19 = vector.broadcast %18 : vector<1x32xf32> to vector<64x32xf32>
    %20 = arith.addf %10, %19 : vector<64x32xf32>
    %21 = vector.shape_cast %20 : vector<64x32xf32> to vector<8x8x32xf32>
    %c2_16 = arith.constant 2 : index
    %c0_17 = arith.constant 0 : index
    %22 = vector.load %arg6[%c2_16, %c0_17] : memref<12x32xf32, #tpu.memory_space<vmem>>, vector<1x32xf32>
    %23 = vector.broadcast %22 : vector<1x32xf32> to vector<64x32xf32>
    %24 = arith.addf %13, %23 : vector<64x32xf32>
    %25 = vector.shape_cast %24 : vector<64x32xf32> to vector<8x8x32xf32>
    %c3 = arith.constant 3 : index
    %c0_18 = arith.constant 0 : index
    %26 = vector.load %arg6[%c3, %c0_18] : memref<12x32xf32, #tpu.memory_space<vmem>>, vector<1x32xf32>
    %c0_19 = arith.constant 0 : index
    %c0_20 = arith.constant 0 : index
    %27 = vector.load %arg11[%c0_19, %c0_20] : memref<8x32xf32, #tpu.memory_space<vmem>>, vector<8x32xf32>
    %c0_21 = arith.constant 0 : index
    %c0_22 = arith.constant 0 : index
    %c0_23 = arith.constant 0 : index
    %28 = vector.load %arg4[%c0_21, %c0_22, %c0_23] : memref<3x32x32xf32, #tpu.memory_space<vmem>>, vector<1x32x32xf32>
    %29 = vector.shape_cast %28 : vector<1x32x32xf32> to vector<32x32xf32>
    %cst_24 = arith.constant dense<0.000000e+00> : vector<8x32xf32>
    %30 = tpu.matmul %27, %29, %cst_24 {dimension_numbers = #tpu.dot_dimension_numbers<[1], [0], [0], [1], [0, 0, 1, 1], [], []>} : vector<8x32xf32>, vector<32x32xf32>, vector<8x32xf32> -> vector<8x32xf32>
    %c1_25 = arith.constant 1 : index
    %c0_26 = arith.constant 0 : index
    %c0_27 = arith.constant 0 : index
    %31 = vector.load %arg4[%c1_25, %c0_26, %c0_27] : memref<3x32x32xf32, #tpu.memory_space<vmem>>, vector<1x32x32xf32>
    %32 = vector.shape_cast %31 : vector<1x32x32xf32> to vector<32x32xf32>
    %cst_28 = arith.constant dense<0.000000e+00> : vector<8x32xf32>
    %33 = tpu.matmul %27, %32, %cst_28 {dimension_numbers = #tpu.dot_dimension_numbers<[1], [0], [0], [1], [0, 0, 1, 1], [], []>} : vector<8x32xf32>, vector<32x32xf32>, vector<8x32xf32> -> vector<8x32xf32>
    %c2_29 = arith.constant 2 : index
    %c0_30 = arith.constant 0 : index
    %c0_31 = arith.constant 0 : index
    %34 = vector.load %arg4[%c2_29, %c0_30, %c0_31] : memref<3x32x32xf32, #tpu.memory_space<vmem>>, vector<1x32x32xf32>
    %35 = vector.shape_cast %34 : vector<1x32x32xf32> to vector<32x32xf32>
    %cst_32 = arith.constant dense<0.000000e+00> : vector<8x32xf32>
    %36 = tpu.matmul %27, %35, %cst_32 {dimension_numbers = #tpu.dot_dimension_numbers<[1], [0], [0], [1], [0, 0, 1, 1], [], []>} : vector<8x32xf32>, vector<32x32xf32>, vector<8x32xf32> -> vector<8x32xf32>
    %37 = vector.extract_strided_slice %17 {offsets = [0, 0, 0], sizes = [8, 1, 32], strides = [1, 1, 1]} : vector<8x8x32xf32> to vector<8x1x32xf32>
    %38 = vector.shape_cast %37 : vector<8x1x32xf32> to vector<8x32xf32>
    %39 = arith.addf %38, %30 : vector<8x32xf32>
    %cst_33 = arith.constant 5.000000e-01 : f32
    %40 = vector.broadcast %cst_33 : f32 to vector<8x32xf32>
    %41 = arith.mulf %40, %39 : vector<8x32xf32>
    %42 = math.tanh %41 : vector<8x32xf32>
    %cst_34 = arith.constant 5.000000e-01 : f32
    %43 = vector.broadcast %cst_34 : f32 to vector<8x32xf32>
    %44 = arith.mulf %43, %42 : vector<8x32xf32>
    %cst_35 = arith.constant 5.000000e-01 : f32
    %45 = vector.broadcast %cst_35 : f32 to vector<8x32xf32>
    %46 = arith.addf %44, %45 : vector<8x32xf32>
    %47 = vector.extract_strided_slice %21 {offsets = [0, 0, 0], sizes = [8, 1, 32], strides = [1, 1, 1]} : vector<8x8x32xf32> to vector<8x1x32xf32>
    %48 = vector.shape_cast %47 : vector<8x1x32xf32> to vector<8x32xf32>
    %49 = arith.addf %48, %33 : vector<8x32xf32>
    %cst_36 = arith.constant 5.000000e-01 : f32
    %50 = vector.broadcast %cst_36 : f32 to vector<8x32xf32>
    %51 = arith.mulf %50, %49 : vector<8x32xf32>
    %52 = math.tanh %51 : vector<8x32xf32>
    %cst_37 = arith.constant 5.000000e-01 : f32
    %53 = vector.broadcast %cst_37 : f32 to vector<8x32xf32>
    %54 = arith.mulf %53, %52 : vector<8x32xf32>
    %cst_38 = arith.constant 5.000000e-01 : f32
    %55 = vector.broadcast %cst_38 : f32 to vector<8x32xf32>
    %56 = arith.addf %54, %55 : vector<8x32xf32>
    %57 = vector.extract_strided_slice %25 {offsets = [0, 0, 0], sizes = [8, 1, 32], strides = [1, 1, 1]} : vector<8x8x32xf32> to vector<8x1x32xf32>
    %58 = vector.shape_cast %57 : vector<8x1x32xf32> to vector<8x32xf32>
    %59 = vector.broadcast %26 : vector<1x32xf32> to vector<8x32xf32>
    %60 = arith.addf %36, %59 : vector<8x32xf32>
    %61 = arith.mulf %46, %60 : vector<8x32xf32>
    %62 = arith.addf %58, %61 : vector<8x32xf32>
    %63 = math.tanh %62 : vector<8x32xf32>
    %64 = arith.subf %27, %63 : vector<8x32xf32>
    %65 = arith.mulf %56, %64 : vector<8x32xf32>
    %66 = arith.addf %63, %65 : vector<8x32xf32>
    %c0_39 = arith.constant 0 : index
    %c0_40 = arith.constant 0 : index
    %c0_41 = arith.constant 0 : index
    %67 = vector.load %arg4[%c0_39, %c0_40, %c0_41] : memref<3x32x32xf32, #tpu.memory_space<vmem>>, vector<1x32x32xf32>
    %68 = vector.shape_cast %67 : vector<1x32x32xf32> to vector<32x32xf32>
    %cst_42 = arith.constant dense<0.000000e+00> : vector<8x32xf32>
    %69 = tpu.matmul %66, %68, %cst_42 {dimension_numbers = #tpu.dot_dimension_numbers<[1], [0], [0], [1], [0, 0, 1, 1], [], []>} : vector<8x32xf32>, vector<32x32xf32>, vector<8x32xf32> -> vector<8x32xf32>
    %c1_43 = arith.constant 1 : index
    %c0_44 = arith.constant 0 : index
    %c0_45 = arith.constant 0 : index
    %70 = vector.load %arg4[%c1_43, %c0_44, %c0_45] : memref<3x32x32xf32, #tpu.memory_space<vmem>>, vector<1x32x32xf32>
    %71 = vector.shape_cast %70 : vector<1x32x32xf32> to vector<32x32xf32>
    %cst_46 = arith.constant dense<0.000000e+00> : vector<8x32xf32>
    %72 = tpu.matmul %66, %71, %cst_46 {dimension_numbers = #tpu.dot_dimension_numbers<[1], [0], [0], [1], [0, 0, 1, 1], [], []>} : vector<8x32xf32>, vector<32x32xf32>, vector<8x32xf32> -> vector<8x32xf32>
    %c2_47 = arith.constant 2 : index
    %c0_48 = arith.constant 0 : index
    %c0_49 = arith.constant 0 : index
    %73 = vector.load %arg4[%c2_47, %c0_48, %c0_49] : memref<3x32x32xf32, #tpu.memory_space<vmem>>, vector<1x32x32xf32>
    %74 = vector.shape_cast %73 : vector<1x32x32xf32> to vector<32x32xf32>
    %cst_50 = arith.constant dense<0.000000e+00> : vector<8x32xf32>
    %75 = tpu.matmul %66, %74, %cst_50 {dimension_numbers = #tpu.dot_dimension_numbers<[1], [0], [0], [1], [0, 0, 1, 1], [], []>} : vector<8x32xf32>, vector<32x32xf32>, vector<8x32xf32> -> vector<8x32xf32>
    %76 = vector.extract_strided_slice %17 {offsets = [0, 1, 0], sizes = [8, 1, 32], strides = [1, 1, 1]} : vector<8x8x32xf32> to vector<8x1x32xf32>
    %77 = vector.shape_cast %76 : vector<8x1x32xf32> to vector<8x32xf32>
    %78 = arith.addf %77, %69 : vector<8x32xf32>
    %cst_51 = arith.constant 5.000000e-01 : f32
    %79 = vector.broadcast %cst_51 : f32 to vector<8x32xf32>
    %80 = arith.mulf %79, %78 : vector<8x32xf32>
    %81 = math.tanh %80 : vector<8x32xf32>
    %cst_52 = arith.constant 5.000000e-01 : f32
    %82 = vector.broadcast %cst_52 : f32 to vector<8x32xf32>
    %83 = arith.mulf %82, %81 : vector<8x32xf32>
    %cst_53 = arith.constant 5.000000e-01 : f32
    %84 = vector.broadcast %cst_53 : f32 to vector<8x32xf32>
    %85 = arith.addf %83, %84 : vector<8x32xf32>
    %86 = vector.extract_strided_slice %21 {offsets = [0, 1, 0], sizes = [8, 1, 32], strides = [1, 1, 1]} : vector<8x8x32xf32> to vector<8x1x32xf32>
    %87 = vector.shape_cast %86 : vector<8x1x32xf32> to vector<8x32xf32>
    %88 = arith.addf %87, %72 : vector<8x32xf32>
    %cst_54 = arith.constant 5.000000e-01 : f32
    %89 = vector.broadcast %cst_54 : f32 to vector<8x32xf32>
    %90 = arith.mulf %89, %88 : vector<8x32xf32>
    %91 = math.tanh %90 : vector<8x32xf32>
    %cst_55 = arith.constant 5.000000e-01 : f32
    %92 = vector.broadcast %cst_55 : f32 to vector<8x32xf32>
    %93 = arith.mulf %92, %91 : vector<8x32xf32>
    %cst_56 = arith.constant 5.000000e-01 : f32
    %94 = vector.broadcast %cst_56 : f32 to vector<8x32xf32>
    %95 = arith.addf %93, %94 : vector<8x32xf32>
    %96 = vector.extract_strided_slice %25 {offsets = [0, 1, 0], sizes = [8, 1, 32], strides = [1, 1, 1]} : vector<8x8x32xf32> to vector<8x1x32xf32>
    %97 = vector.shape_cast %96 : vector<8x1x32xf32> to vector<8x32xf32>
    %98 = vector.broadcast %26 : vector<1x32xf32> to vector<8x32xf32>
    %99 = arith.addf %75, %98 : vector<8x32xf32>
    %100 = arith.mulf %85, %99 : vector<8x32xf32>
    %101 = arith.addf %97, %100 : vector<8x32xf32>
    %102 = math.tanh %101 : vector<8x32xf32>
    %103 = arith.subf %66, %102 : vector<8x32xf32>
    %104 = arith.mulf %95, %103 : vector<8x32xf32>
    %105 = arith.addf %102, %104 : vector<8x32xf32>
    %c0_57 = arith.constant 0 : index
    %c0_58 = arith.constant 0 : index
    %c0_59 = arith.constant 0 : index
    %106 = vector.load %arg4[%c0_57, %c0_58, %c0_59] : memref<3x32x32xf32, #tpu.memory_space<vmem>>, vector<1x32x32xf32>
    %107 = vector.shape_cast %106 : vector<1x32x32xf32> to vector<32x32xf32>
    %cst_60 = arith.constant dense<0.000000e+00> : vector<8x32xf32>
    %108 = tpu.matmul %105, %107, %cst_60 {dimension_numbers = #tpu.dot_dimension_numbers<[1], [0], [0], [1], [0, 0, 1, 1], [], []>} : vector<8x32xf32>, vector<32x32xf32>, vector<8x32xf32> -> vector<8x32xf32>
    %c1_61 = arith.constant 1 : index
    %c0_62 = arith.constant 0 : index
    %c0_63 = arith.constant 0 : index
    %109 = vector.load %arg4[%c1_61, %c0_62, %c0_63] : memref<3x32x32xf32, #tpu.memory_space<vmem>>, vector<1x32x32xf32>
    %110 = vector.shape_cast %109 : vector<1x32x32xf32> to vector<32x32xf32>
    %cst_64 = arith.constant dense<0.000000e+00> : vector<8x32xf32>
    %111 = tpu.matmul %105, %110, %cst_64 {dimension_numbers = #tpu.dot_dimension_numbers<[1], [0], [0], [1], [0, 0, 1, 1], [], []>} : vector<8x32xf32>, vector<32x32xf32>, vector<8x32xf32> -> vector<8x32xf32>
    %c2_65 = arith.constant 2 : index
    %c0_66 = arith.constant 0 : index
    %c0_67 = arith.constant 0 : index
    %112 = vector.load %arg4[%c2_65, %c0_66, %c0_67] : memref<3x32x32xf32, #tpu.memory_space<vmem>>, vector<1x32x32xf32>
    %113 = vector.shape_cast %112 : vector<1x32x32xf32> to vector<32x32xf32>
    %cst_68 = arith.constant dense<0.000000e+00> : vector<8x32xf32>
    %114 = tpu.matmul %105, %113, %cst_68 {dimension_numbers = #tpu.dot_dimension_numbers<[1], [0], [0], [1], [0, 0, 1, 1], [], []>} : vector<8x32xf32>, vector<32x32xf32>, vector<8x32xf32> -> vector<8x32xf32>
    %115 = vector.extract_strided_slice %17 {offsets = [0, 2, 0], sizes = [8, 1, 32], strides = [1, 1, 1]} : vector<8x8x32xf32> to vector<8x1x32xf32>
    %116 = vector.shape_cast %115 : vector<8x1x32xf32> to vector<8x32xf32>
    %117 = arith.addf %116, %108 : vector<8x32xf32>
    %cst_69 = arith.constant 5.000000e-01 : f32
    %118 = vector.broadcast %cst_69 : f32 to vector<8x32xf32>
    %119 = arith.mulf %118, %117 : vector<8x32xf32>
    %120 = math.tanh %119 : vector<8x32xf32>
    %cst_70 = arith.constant 5.000000e-01 : f32
    %121 = vector.broadcast %cst_70 : f32 to vector<8x32xf32>
    %122 = arith.mulf %121, %120 : vector<8x32xf32>
    %cst_71 = arith.constant 5.000000e-01 : f32
    %123 = vector.broadcast %cst_71 : f32 to vector<8x32xf32>
    %124 = arith.addf %122, %123 : vector<8x32xf32>
    %125 = vector.extract_strided_slice %21 {offsets = [0, 2, 0], sizes = [8, 1, 32], strides = [1, 1, 1]} : vector<8x8x32xf32> to vector<8x1x32xf32>
    %126 = vector.shape_cast %125 : vector<8x1x32xf32> to vector<8x32xf32>
    %127 = arith.addf %126, %111 : vector<8x32xf32>
    %cst_72 = arith.constant 5.000000e-01 : f32
    %128 = vector.broadcast %cst_72 : f32 to vector<8x32xf32>
    %129 = arith.mulf %128, %127 : vector<8x32xf32>
    %130 = math.tanh %129 : vector<8x32xf32>
    %cst_73 = arith.constant 5.000000e-01 : f32
    %131 = vector.broadcast %cst_73 : f32 to vector<8x32xf32>
    %132 = arith.mulf %131, %130 : vector<8x32xf32>
    %cst_74 = arith.constant 5.000000e-01 : f32
    %133 = vector.broadcast %cst_74 : f32 to vector<8x32xf32>
    %134 = arith.addf %132, %133 : vector<8x32xf32>
    %135 = vector.extract_strided_slice %25 {offsets = [0, 2, 0], sizes = [8, 1, 32], strides = [1, 1, 1]} : vector<8x8x32xf32> to vector<8x1x32xf32>
    %136 = vector.shape_cast %135 : vector<8x1x32xf32> to vector<8x32xf32>
    %137 = vector.broadcast %26 : vector<1x32xf32> to vector<8x32xf32>
    %138 = arith.addf %114, %137 : vector<8x32xf32>
    %139 = arith.mulf %124, %138 : vector<8x32xf32>
    %140 = arith.addf %136, %139 : vector<8x32xf32>
    %141 = math.tanh %140 : vector<8x32xf32>
    %142 = arith.subf %105, %141 : vector<8x32xf32>
    %143 = arith.mulf %134, %142 : vector<8x32xf32>
    %144 = arith.addf %141, %143 : vector<8x32xf32>
    %c0_75 = arith.constant 0 : index
    %c0_76 = arith.constant 0 : index
    %c0_77 = arith.constant 0 : index
    %145 = vector.load %arg4[%c0_75, %c0_76, %c0_77] : memref<3x32x32xf32, #tpu.memory_space<vmem>>, vector<1x32x32xf32>
    %146 = vector.shape_cast %145 : vector<1x32x32xf32> to vector<32x32xf32>
    %cst_78 = arith.constant dense<0.000000e+00> : vector<8x32xf32>
    %147 = tpu.matmul %144, %146, %cst_78 {dimension_numbers = #tpu.dot_dimension_numbers<[1], [0], [0], [1], [0, 0, 1, 1], [], []>} : vector<8x32xf32>, vector<32x32xf32>, vector<8x32xf32> -> vector<8x32xf32>
    %c1_79 = arith.constant 1 : index
    %c0_80 = arith.constant 0 : index
    %c0_81 = arith.constant 0 : index
    %148 = vector.load %arg4[%c1_79, %c0_80, %c0_81] : memref<3x32x32xf32, #tpu.memory_space<vmem>>, vector<1x32x32xf32>
    %149 = vector.shape_cast %148 : vector<1x32x32xf32> to vector<32x32xf32>
    %cst_82 = arith.constant dense<0.000000e+00> : vector<8x32xf32>
    %150 = tpu.matmul %144, %149, %cst_82 {dimension_numbers = #tpu.dot_dimension_numbers<[1], [0], [0], [1], [0, 0, 1, 1], [], []>} : vector<8x32xf32>, vector<32x32xf32>, vector<8x32xf32> -> vector<8x32xf32>
    %c2_83 = arith.constant 2 : index
    %c0_84 = arith.constant 0 : index
    %c0_85 = arith.constant 0 : index
    %151 = vector.load %arg4[%c2_83, %c0_84, %c0_85] : memref<3x32x32xf32, #tpu.memory_space<vmem>>, vector<1x32x32xf32>
    %152 = vector.shape_cast %151 : vector<1x32x32xf32> to vector<32x32xf32>
    %cst_86 = arith.constant dense<0.000000e+00> : vector<8x32xf32>
    %153 = tpu.matmul %144, %152, %cst_86 {dimension_numbers = #tpu.dot_dimension_numbers<[1], [0], [0], [1], [0, 0, 1, 1], [], []>} : vector<8x32xf32>, vector<32x32xf32>, vector<8x32xf32> -> vector<8x32xf32>
    %154 = vector.extract_strided_slice %17 {offsets = [0, 3, 0], sizes = [8, 1, 32], strides = [1, 1, 1]} : vector<8x8x32xf32> to vector<8x1x32xf32>
    %155 = vector.shape_cast %154 : vector<8x1x32xf32> to vector<8x32xf32>
    %156 = arith.addf %155, %147 : vector<8x32xf32>
    %cst_87 = arith.constant 5.000000e-01 : f32
    %157 = vector.broadcast %cst_87 : f32 to vector<8x32xf32>
    %158 = arith.mulf %157, %156 : vector<8x32xf32>
    %159 = math.tanh %158 : vector<8x32xf32>
    %cst_88 = arith.constant 5.000000e-01 : f32
    %160 = vector.broadcast %cst_88 : f32 to vector<8x32xf32>
    %161 = arith.mulf %160, %159 : vector<8x32xf32>
    %cst_89 = arith.constant 5.000000e-01 : f32
    %162 = vector.broadcast %cst_89 : f32 to vector<8x32xf32>
    %163 = arith.addf %161, %162 : vector<8x32xf32>
    %164 = vector.extract_strided_slice %21 {offsets = [0, 3, 0], sizes = [8, 1, 32], strides = [1, 1, 1]} : vector<8x8x32xf32> to vector<8x1x32xf32>
    %165 = vector.shape_cast %164 : vector<8x1x32xf32> to vector<8x32xf32>
    %166 = arith.addf %165, %150 : vector<8x32xf32>
    %cst_90 = arith.constant 5.000000e-01 : f32
    %167 = vector.broadcast %cst_90 : f32 to vector<8x32xf32>
    %168 = arith.mulf %167, %166 : vector<8x32xf32>
    %169 = math.tanh %168 : vector<8x32xf32>
    %cst_91 = arith.constant 5.000000e-01 : f32
    %170 = vector.broadcast %cst_91 : f32 to vector<8x32xf32>
    %171 = arith.mulf %170, %169 : vector<8x32xf32>
    %cst_92 = arith.constant 5.000000e-01 : f32
    %172 = vector.broadcast %cst_92 : f32 to vector<8x32xf32>
    %173 = arith.addf %171, %172 : vector<8x32xf32>
    %174 = vector.extract_strided_slice %25 {offsets = [0, 3, 0], sizes = [8, 1, 32], strides = [1, 1, 1]} : vector<8x8x32xf32> to vector<8x1x32xf32>
    %175 = vector.shape_cast %174 : vector<8x1x32xf32> to vector<8x32xf32>
    %176 = vector.broadcast %26 : vector<1x32xf32> to vector<8x32xf32>
    %177 = arith.addf %153, %176 : vector<8x32xf32>
    %178 = arith.mulf %163, %177 : vector<8x32xf32>
    %179 = arith.addf %175, %178 : vector<8x32xf32>
    %180 = math.tanh %179 : vector<8x32xf32>
    %181 = arith.subf %144, %180 : vector<8x32xf32>
    %182 = arith.mulf %173, %181 : vector<8x32xf32>
    %183 = arith.addf %180, %182 : vector<8x32xf32>
    %c0_93 = arith.constant 0 : index
    %c0_94 = arith.constant 0 : index
    %c0_95 = arith.constant 0 : index
    %184 = vector.load %arg4[%c0_93, %c0_94, %c0_95] : memref<3x32x32xf32, #tpu.memory_space<vmem>>, vector<1x32x32xf32>
    %185 = vector.shape_cast %184 : vector<1x32x32xf32> to vector<32x32xf32>
    %cst_96 = arith.constant dense<0.000000e+00> : vector<8x32xf32>
    %186 = tpu.matmul %183, %185, %cst_96 {dimension_numbers = #tpu.dot_dimension_numbers<[1], [0], [0], [1], [0, 0, 1, 1], [], []>} : vector<8x32xf32>, vector<32x32xf32>, vector<8x32xf32> -> vector<8x32xf32>
    %c1_97 = arith.constant 1 : index
    %c0_98 = arith.constant 0 : index
    %c0_99 = arith.constant 0 : index
    %187 = vector.load %arg4[%c1_97, %c0_98, %c0_99] : memref<3x32x32xf32, #tpu.memory_space<vmem>>, vector<1x32x32xf32>
    %188 = vector.shape_cast %187 : vector<1x32x32xf32> to vector<32x32xf32>
    %cst_100 = arith.constant dense<0.000000e+00> : vector<8x32xf32>
    %189 = tpu.matmul %183, %188, %cst_100 {dimension_numbers = #tpu.dot_dimension_numbers<[1], [0], [0], [1], [0, 0, 1, 1], [], []>} : vector<8x32xf32>, vector<32x32xf32>, vector<8x32xf32> -> vector<8x32xf32>
    %c2_101 = arith.constant 2 : index
    %c0_102 = arith.constant 0 : index
    %c0_103 = arith.constant 0 : index
    %190 = vector.load %arg4[%c2_101, %c0_102, %c0_103] : memref<3x32x32xf32, #tpu.memory_space<vmem>>, vector<1x32x32xf32>
    %191 = vector.shape_cast %190 : vector<1x32x32xf32> to vector<32x32xf32>
    %cst_104 = arith.constant dense<0.000000e+00> : vector<8x32xf32>
    %192 = tpu.matmul %183, %191, %cst_104 {dimension_numbers = #tpu.dot_dimension_numbers<[1], [0], [0], [1], [0, 0, 1, 1], [], []>} : vector<8x32xf32>, vector<32x32xf32>, vector<8x32xf32> -> vector<8x32xf32>
    %193 = vector.extract_strided_slice %17 {offsets = [0, 4, 0], sizes = [8, 1, 32], strides = [1, 1, 1]} : vector<8x8x32xf32> to vector<8x1x32xf32>
    %194 = vector.shape_cast %193 : vector<8x1x32xf32> to vector<8x32xf32>
    %195 = arith.addf %194, %186 : vector<8x32xf32>
    %cst_105 = arith.constant 5.000000e-01 : f32
    %196 = vector.broadcast %cst_105 : f32 to vector<8x32xf32>
    %197 = arith.mulf %196, %195 : vector<8x32xf32>
    %198 = math.tanh %197 : vector<8x32xf32>
    %cst_106 = arith.constant 5.000000e-01 : f32
    %199 = vector.broadcast %cst_106 : f32 to vector<8x32xf32>
    %200 = arith.mulf %199, %198 : vector<8x32xf32>
    %cst_107 = arith.constant 5.000000e-01 : f32
    %201 = vector.broadcast %cst_107 : f32 to vector<8x32xf32>
    %202 = arith.addf %200, %201 : vector<8x32xf32>
    %203 = vector.extract_strided_slice %21 {offsets = [0, 4, 0], sizes = [8, 1, 32], strides = [1, 1, 1]} : vector<8x8x32xf32> to vector<8x1x32xf32>
    %204 = vector.shape_cast %203 : vector<8x1x32xf32> to vector<8x32xf32>
    %205 = arith.addf %204, %189 : vector<8x32xf32>
    %cst_108 = arith.constant 5.000000e-01 : f32
    %206 = vector.broadcast %cst_108 : f32 to vector<8x32xf32>
    %207 = arith.mulf %206, %205 : vector<8x32xf32>
    %208 = math.tanh %207 : vector<8x32xf32>
    %cst_109 = arith.constant 5.000000e-01 : f32
    %209 = vector.broadcast %cst_109 : f32 to vector<8x32xf32>
    %210 = arith.mulf %209, %208 : vector<8x32xf32>
    %cst_110 = arith.constant 5.000000e-01 : f32
    %211 = vector.broadcast %cst_110 : f32 to vector<8x32xf32>
    %212 = arith.addf %210, %211 : vector<8x32xf32>
    %213 = vector.extract_strided_slice %25 {offsets = [0, 4, 0], sizes = [8, 1, 32], strides = [1, 1, 1]} : vector<8x8x32xf32> to vector<8x1x32xf32>
    %214 = vector.shape_cast %213 : vector<8x1x32xf32> to vector<8x32xf32>
    %215 = vector.broadcast %26 : vector<1x32xf32> to vector<8x32xf32>
    %216 = arith.addf %192, %215 : vector<8x32xf32>
    %217 = arith.mulf %202, %216 : vector<8x32xf32>
    %218 = arith.addf %214, %217 : vector<8x32xf32>
    %219 = math.tanh %218 : vector<8x32xf32>
    %220 = arith.subf %183, %219 : vector<8x32xf32>
    %221 = arith.mulf %212, %220 : vector<8x32xf32>
    %222 = arith.addf %219, %221 : vector<8x32xf32>
    %c0_111 = arith.constant 0 : index
    %c0_112 = arith.constant 0 : index
    %c0_113 = arith.constant 0 : index
    %223 = vector.load %arg4[%c0_111, %c0_112, %c0_113] : memref<3x32x32xf32, #tpu.memory_space<vmem>>, vector<1x32x32xf32>
    %224 = vector.shape_cast %223 : vector<1x32x32xf32> to vector<32x32xf32>
    %cst_114 = arith.constant dense<0.000000e+00> : vector<8x32xf32>
    %225 = tpu.matmul %222, %224, %cst_114 {dimension_numbers = #tpu.dot_dimension_numbers<[1], [0], [0], [1], [0, 0, 1, 1], [], []>} : vector<8x32xf32>, vector<32x32xf32>, vector<8x32xf32> -> vector<8x32xf32>
    %c1_115 = arith.constant 1 : index
    %c0_116 = arith.constant 0 : index
    %c0_117 = arith.constant 0 : index
    %226 = vector.load %arg4[%c1_115, %c0_116, %c0_117] : memref<3x32x32xf32, #tpu.memory_space<vmem>>, vector<1x32x32xf32>
    %227 = vector.shape_cast %226 : vector<1x32x32xf32> to vector<32x32xf32>
    %cst_118 = arith.constant dense<0.000000e+00> : vector<8x32xf32>
    %228 = tpu.matmul %222, %227, %cst_118 {dimension_numbers = #tpu.dot_dimension_numbers<[1], [0], [0], [1], [0, 0, 1, 1], [], []>} : vector<8x32xf32>, vector<32x32xf32>, vector<8x32xf32> -> vector<8x32xf32>
    %c2_119 = arith.constant 2 : index
    %c0_120 = arith.constant 0 : index
    %c0_121 = arith.constant 0 : index
    %229 = vector.load %arg4[%c2_119, %c0_120, %c0_121] : memref<3x32x32xf32, #tpu.memory_space<vmem>>, vector<1x32x32xf32>
    %230 = vector.shape_cast %229 : vector<1x32x32xf32> to vector<32x32xf32>
    %cst_122 = arith.constant dense<0.000000e+00> : vector<8x32xf32>
    %231 = tpu.matmul %222, %230, %cst_122 {dimension_numbers = #tpu.dot_dimension_numbers<[1], [0], [0], [1], [0, 0, 1, 1], [], []>} : vector<8x32xf32>, vector<32x32xf32>, vector<8x32xf32> -> vector<8x32xf32>
    %232 = vector.extract_strided_slice %17 {offsets = [0, 5, 0], sizes = [8, 1, 32], strides = [1, 1, 1]} : vector<8x8x32xf32> to vector<8x1x32xf32>
    %233 = vector.shape_cast %232 : vector<8x1x32xf32> to vector<8x32xf32>
    %234 = arith.addf %233, %225 : vector<8x32xf32>
    %cst_123 = arith.constant 5.000000e-01 : f32
    %235 = vector.broadcast %cst_123 : f32 to vector<8x32xf32>
    %236 = arith.mulf %235, %234 : vector<8x32xf32>
    %237 = math.tanh %236 : vector<8x32xf32>
    %cst_124 = arith.constant 5.000000e-01 : f32
    %238 = vector.broadcast %cst_124 : f32 to vector<8x32xf32>
    %239 = arith.mulf %238, %237 : vector<8x32xf32>
    %cst_125 = arith.constant 5.000000e-01 : f32
    %240 = vector.broadcast %cst_125 : f32 to vector<8x32xf32>
    %241 = arith.addf %239, %240 : vector<8x32xf32>
    %242 = vector.extract_strided_slice %21 {offsets = [0, 5, 0], sizes = [8, 1, 32], strides = [1, 1, 1]} : vector<8x8x32xf32> to vector<8x1x32xf32>
    %243 = vector.shape_cast %242 : vector<8x1x32xf32> to vector<8x32xf32>
    %244 = arith.addf %243, %228 : vector<8x32xf32>
    %cst_126 = arith.constant 5.000000e-01 : f32
    %245 = vector.broadcast %cst_126 : f32 to vector<8x32xf32>
    %246 = arith.mulf %245, %244 : vector<8x32xf32>
    %247 = math.tanh %246 : vector<8x32xf32>
    %cst_127 = arith.constant 5.000000e-01 : f32
    %248 = vector.broadcast %cst_127 : f32 to vector<8x32xf32>
    %249 = arith.mulf %248, %247 : vector<8x32xf32>
    %cst_128 = arith.constant 5.000000e-01 : f32
    %250 = vector.broadcast %cst_128 : f32 to vector<8x32xf32>
    %251 = arith.addf %249, %250 : vector<8x32xf32>
    %252 = vector.extract_strided_slice %25 {offsets = [0, 5, 0], sizes = [8, 1, 32], strides = [1, 1, 1]} : vector<8x8x32xf32> to vector<8x1x32xf32>
    %253 = vector.shape_cast %252 : vector<8x1x32xf32> to vector<8x32xf32>
    %254 = vector.broadcast %26 : vector<1x32xf32> to vector<8x32xf32>
    %255 = arith.addf %231, %254 : vector<8x32xf32>
    %256 = arith.mulf %241, %255 : vector<8x32xf32>
    %257 = arith.addf %253, %256 : vector<8x32xf32>
    %258 = math.tanh %257 : vector<8x32xf32>
    %259 = arith.subf %222, %258 : vector<8x32xf32>
    %260 = arith.mulf %251, %259 : vector<8x32xf32>
    %261 = arith.addf %258, %260 : vector<8x32xf32>
    %c0_129 = arith.constant 0 : index
    %c0_130 = arith.constant 0 : index
    %c0_131 = arith.constant 0 : index
    %262 = vector.load %arg4[%c0_129, %c0_130, %c0_131] : memref<3x32x32xf32, #tpu.memory_space<vmem>>, vector<1x32x32xf32>
    %263 = vector.shape_cast %262 : vector<1x32x32xf32> to vector<32x32xf32>
    %cst_132 = arith.constant dense<0.000000e+00> : vector<8x32xf32>
    %264 = tpu.matmul %261, %263, %cst_132 {dimension_numbers = #tpu.dot_dimension_numbers<[1], [0], [0], [1], [0, 0, 1, 1], [], []>} : vector<8x32xf32>, vector<32x32xf32>, vector<8x32xf32> -> vector<8x32xf32>
    %c1_133 = arith.constant 1 : index
    %c0_134 = arith.constant 0 : index
    %c0_135 = arith.constant 0 : index
    %265 = vector.load %arg4[%c1_133, %c0_134, %c0_135] : memref<3x32x32xf32, #tpu.memory_space<vmem>>, vector<1x32x32xf32>
    %266 = vector.shape_cast %265 : vector<1x32x32xf32> to vector<32x32xf32>
    %cst_136 = arith.constant dense<0.000000e+00> : vector<8x32xf32>
    %267 = tpu.matmul %261, %266, %cst_136 {dimension_numbers = #tpu.dot_dimension_numbers<[1], [0], [0], [1], [0, 0, 1, 1], [], []>} : vector<8x32xf32>, vector<32x32xf32>, vector<8x32xf32> -> vector<8x32xf32>
    %c2_137 = arith.constant 2 : index
    %c0_138 = arith.constant 0 : index
    %c0_139 = arith.constant 0 : index
    %268 = vector.load %arg4[%c2_137, %c0_138, %c0_139] : memref<3x32x32xf32, #tpu.memory_space<vmem>>, vector<1x32x32xf32>
    %269 = vector.shape_cast %268 : vector<1x32x32xf32> to vector<32x32xf32>
    %cst_140 = arith.constant dense<0.000000e+00> : vector<8x32xf32>
    %270 = tpu.matmul %261, %269, %cst_140 {dimension_numbers = #tpu.dot_dimension_numbers<[1], [0], [0], [1], [0, 0, 1, 1], [], []>} : vector<8x32xf32>, vector<32x32xf32>, vector<8x32xf32> -> vector<8x32xf32>
    %271 = vector.extract_strided_slice %17 {offsets = [0, 6, 0], sizes = [8, 1, 32], strides = [1, 1, 1]} : vector<8x8x32xf32> to vector<8x1x32xf32>
    %272 = vector.shape_cast %271 : vector<8x1x32xf32> to vector<8x32xf32>
    %273 = arith.addf %272, %264 : vector<8x32xf32>
    %cst_141 = arith.constant 5.000000e-01 : f32
    %274 = vector.broadcast %cst_141 : f32 to vector<8x32xf32>
    %275 = arith.mulf %274, %273 : vector<8x32xf32>
    %276 = math.tanh %275 : vector<8x32xf32>
    %cst_142 = arith.constant 5.000000e-01 : f32
    %277 = vector.broadcast %cst_142 : f32 to vector<8x32xf32>
    %278 = arith.mulf %277, %276 : vector<8x32xf32>
    %cst_143 = arith.constant 5.000000e-01 : f32
    %279 = vector.broadcast %cst_143 : f32 to vector<8x32xf32>
    %280 = arith.addf %278, %279 : vector<8x32xf32>
    %281 = vector.extract_strided_slice %21 {offsets = [0, 6, 0], sizes = [8, 1, 32], strides = [1, 1, 1]} : vector<8x8x32xf32> to vector<8x1x32xf32>
    %282 = vector.shape_cast %281 : vector<8x1x32xf32> to vector<8x32xf32>
    %283 = arith.addf %282, %267 : vector<8x32xf32>
    %cst_144 = arith.constant 5.000000e-01 : f32
    %284 = vector.broadcast %cst_144 : f32 to vector<8x32xf32>
    %285 = arith.mulf %284, %283 : vector<8x32xf32>
    %286 = math.tanh %285 : vector<8x32xf32>
    %cst_145 = arith.constant 5.000000e-01 : f32
    %287 = vector.broadcast %cst_145 : f32 to vector<8x32xf32>
    %288 = arith.mulf %287, %286 : vector<8x32xf32>
    %cst_146 = arith.constant 5.000000e-01 : f32
    %289 = vector.broadcast %cst_146 : f32 to vector<8x32xf32>
    %290 = arith.addf %288, %289 : vector<8x32xf32>
    %291 = vector.extract_strided_slice %25 {offsets = [0, 6, 0], sizes = [8, 1, 32], strides = [1, 1, 1]} : vector<8x8x32xf32> to vector<8x1x32xf32>
    %292 = vector.shape_cast %291 : vector<8x1x32xf32> to vector<8x32xf32>
    %293 = vector.broadcast %26 : vector<1x32xf32> to vector<8x32xf32>
    %294 = arith.addf %270, %293 : vector<8x32xf32>
    %295 = arith.mulf %280, %294 : vector<8x32xf32>
    %296 = arith.addf %292, %295 : vector<8x32xf32>
    %297 = math.tanh %296 : vector<8x32xf32>
    %298 = arith.subf %261, %297 : vector<8x32xf32>
    %299 = arith.mulf %290, %298 : vector<8x32xf32>
    %300 = arith.addf %297, %299 : vector<8x32xf32>
    %c0_147 = arith.constant 0 : index
    %c0_148 = arith.constant 0 : index
    %c0_149 = arith.constant 0 : index
    %301 = vector.load %arg4[%c0_147, %c0_148, %c0_149] : memref<3x32x32xf32, #tpu.memory_space<vmem>>, vector<1x32x32xf32>
    %302 = vector.shape_cast %301 : vector<1x32x32xf32> to vector<32x32xf32>
    %cst_150 = arith.constant dense<0.000000e+00> : vector<8x32xf32>
    %303 = tpu.matmul %300, %302, %cst_150 {dimension_numbers = #tpu.dot_dimension_numbers<[1], [0], [0], [1], [0, 0, 1, 1], [], []>} : vector<8x32xf32>, vector<32x32xf32>, vector<8x32xf32> -> vector<8x32xf32>
    %c1_151 = arith.constant 1 : index
    %c0_152 = arith.constant 0 : index
    %c0_153 = arith.constant 0 : index
    %304 = vector.load %arg4[%c1_151, %c0_152, %c0_153] : memref<3x32x32xf32, #tpu.memory_space<vmem>>, vector<1x32x32xf32>
    %305 = vector.shape_cast %304 : vector<1x32x32xf32> to vector<32x32xf32>
    %cst_154 = arith.constant dense<0.000000e+00> : vector<8x32xf32>
    %306 = tpu.matmul %300, %305, %cst_154 {dimension_numbers = #tpu.dot_dimension_numbers<[1], [0], [0], [1], [0, 0, 1, 1], [], []>} : vector<8x32xf32>, vector<32x32xf32>, vector<8x32xf32> -> vector<8x32xf32>
    %c2_155 = arith.constant 2 : index
    %c0_156 = arith.constant 0 : index
    %c0_157 = arith.constant 0 : index
    %307 = vector.load %arg4[%c2_155, %c0_156, %c0_157] : memref<3x32x32xf32, #tpu.memory_space<vmem>>, vector<1x32x32xf32>
    %308 = vector.shape_cast %307 : vector<1x32x32xf32> to vector<32x32xf32>
    %cst_158 = arith.constant dense<0.000000e+00> : vector<8x32xf32>
    %309 = tpu.matmul %300, %308, %cst_158 {dimension_numbers = #tpu.dot_dimension_numbers<[1], [0], [0], [1], [0, 0, 1, 1], [], []>} : vector<8x32xf32>, vector<32x32xf32>, vector<8x32xf32> -> vector<8x32xf32>
    %310 = vector.extract_strided_slice %17 {offsets = [0, 7, 0], sizes = [8, 1, 32], strides = [1, 1, 1]} : vector<8x8x32xf32> to vector<8x1x32xf32>
    %311 = vector.shape_cast %310 : vector<8x1x32xf32> to vector<8x32xf32>
    %312 = arith.addf %311, %303 : vector<8x32xf32>
    %cst_159 = arith.constant 5.000000e-01 : f32
    %313 = vector.broadcast %cst_159 : f32 to vector<8x32xf32>
    %314 = arith.mulf %313, %312 : vector<8x32xf32>
    %315 = math.tanh %314 : vector<8x32xf32>
    %cst_160 = arith.constant 5.000000e-01 : f32
    %316 = vector.broadcast %cst_160 : f32 to vector<8x32xf32>
    %317 = arith.mulf %316, %315 : vector<8x32xf32>
    %cst_161 = arith.constant 5.000000e-01 : f32
    %318 = vector.broadcast %cst_161 : f32 to vector<8x32xf32>
    %319 = arith.addf %317, %318 : vector<8x32xf32>
    %320 = vector.extract_strided_slice %21 {offsets = [0, 7, 0], sizes = [8, 1, 32], strides = [1, 1, 1]} : vector<8x8x32xf32> to vector<8x1x32xf32>
    %321 = vector.shape_cast %320 : vector<8x1x32xf32> to vector<8x32xf32>
    %322 = arith.addf %321, %306 : vector<8x32xf32>
    %cst_162 = arith.constant 5.000000e-01 : f32
    %323 = vector.broadcast %cst_162 : f32 to vector<8x32xf32>
    %324 = arith.mulf %323, %322 : vector<8x32xf32>
    %325 = math.tanh %324 : vector<8x32xf32>
    %cst_163 = arith.constant 5.000000e-01 : f32
    %326 = vector.broadcast %cst_163 : f32 to vector<8x32xf32>
    %327 = arith.mulf %326, %325 : vector<8x32xf32>
    %cst_164 = arith.constant 5.000000e-01 : f32
    %328 = vector.broadcast %cst_164 : f32 to vector<8x32xf32>
    %329 = arith.addf %327, %328 : vector<8x32xf32>
    %330 = vector.extract_strided_slice %25 {offsets = [0, 7, 0], sizes = [8, 1, 32], strides = [1, 1, 1]} : vector<8x8x32xf32> to vector<8x1x32xf32>
    %331 = vector.shape_cast %330 : vector<8x1x32xf32> to vector<8x32xf32>
    %332 = vector.broadcast %26 : vector<1x32xf32> to vector<8x32xf32>
    %333 = arith.addf %309, %332 : vector<8x32xf32>
    %334 = arith.mulf %319, %333 : vector<8x32xf32>
    %335 = arith.addf %331, %334 : vector<8x32xf32>
    %336 = math.tanh %335 : vector<8x32xf32>
    %337 = arith.subf %300, %336 : vector<8x32xf32>
    %338 = arith.mulf %329, %337 : vector<8x32xf32>
    %339 = arith.addf %336, %338 : vector<8x32xf32>
    %c0_165 = arith.constant 0 : index
    %c0_166 = arith.constant 0 : index
    %340 = vector.load %arg11[%c0_165, %c0_166] : memref<8x32xf32, #tpu.memory_space<vmem>>, vector<8x32xf32>
    tpu.vector_store %arg11[%c0_165, %c0_166], %339 {strides = array<i32>} : memref<8x32xf32, #tpu.memory_space<vmem>>, vector<8x32xf32>,
    %c0_i32_167 = arith.constant 0 : i32
    %341 = arith.cmpi eq, %arg1, %c0_i32_167 : i32
    %342 = arith.extui %341 : i1 to i32
    %c0_i32_168 = arith.constant 0 : i32
    %343 = arith.cmpi ne, %342, %c0_i32_168 : i32
    scf.if %343 {
      %c0_169 = arith.constant 0 : index
      %c7 = arith.constant 7 : index
      %c0_170 = arith.constant 0 : index
      %344 = vector.load %arg2[%c0_169, %c7, %c0_170] : memref<8x8x32xf32, #tpu.memory_space<vmem>>, vector<8x1x32xf32>
      %345 = vector.shape_cast %344 : vector<8x1x32xf32> to vector<8x32xf32>
      %c0_171 = arith.constant 0 : index
      %c0_172 = arith.constant 0 : index
      %c0_173 = arith.constant 0 : index
      %346 = vector.load %arg5[%c0_171, %c0_172, %c0_173] : memref<3x32x32xf32, #tpu.memory_space<vmem>>, vector<1x32x32xf32>
      %347 = vector.shape_cast %346 : vector<1x32x32xf32> to vector<32x32xf32>
      %cst_174 = arith.constant dense<0.000000e+00> : vector<8x32xf32>
      %348 = tpu.matmul %345, %347, %cst_174 {dimension_numbers = #tpu.dot_dimension_numbers<[1], [0], [0], [1], [0, 0, 1, 1], [], []>} : vector<8x32xf32>, vector<32x32xf32>, vector<8x32xf32> -> vector<8x32xf32>
      %c1_175 = arith.constant 1 : index
      %c0_176 = arith.constant 0 : index
      %c0_177 = arith.constant 0 : index
      %349 = vector.load %arg5[%c1_175, %c0_176, %c0_177] : memref<3x32x32xf32, #tpu.memory_space<vmem>>, vector<1x32x32xf32>
      %350 = vector.shape_cast %349 : vector<1x32x32xf32> to vector<32x32xf32>
      %cst_178 = arith.constant dense<0.000000e+00> : vector<8x32xf32>
      %351 = tpu.matmul %345, %350, %cst_178 {dimension_numbers = #tpu.dot_dimension_numbers<[1], [0], [0], [1], [0, 0, 1, 1], [], []>} : vector<8x32xf32>, vector<32x32xf32>, vector<8x32xf32> -> vector<8x32xf32>
      %c2_179 = arith.constant 2 : index
      %c0_180 = arith.constant 0 : index
      %c0_181 = arith.constant 0 : index
      %352 = vector.load %arg5[%c2_179, %c0_180, %c0_181] : memref<3x32x32xf32, #tpu.memory_space<vmem>>, vector<1x32x32xf32>
      %353 = vector.shape_cast %352 : vector<1x32x32xf32> to vector<32x32xf32>
      %cst_182 = arith.constant dense<0.000000e+00> : vector<8x32xf32>
      %354 = tpu.matmul %345, %353, %cst_182 {dimension_numbers = #tpu.dot_dimension_numbers<[1], [0], [0], [1], [0, 0, 1, 1], [], []>} : vector<8x32xf32>, vector<32x32xf32>, vector<8x32xf32> -> vector<8x32xf32>
      %c4 = arith.constant 4 : index
      %c0_183 = arith.constant 0 : index
      %355 = vector.load %arg6[%c4, %c0_183] : memref<12x32xf32, #tpu.memory_space<vmem>>, vector<1x32xf32>
      %356 = vector.broadcast %355 : vector<1x32xf32> to vector<8x32xf32>
      %357 = arith.addf %348, %356 : vector<8x32xf32>
      %cst_184 = arith.constant 5.000000e-01 : f32
      %358 = vector.broadcast %cst_184 : f32 to vector<8x32xf32>
      %359 = arith.mulf %358, %357 : vector<8x32xf32>
      %360 = math.tanh %359 : vector<8x32xf32>
      %cst_185 = arith.constant 5.000000e-01 : f32
      %361 = vector.broadcast %cst_185 : f32 to vector<8x32xf32>
      %362 = arith.mulf %361, %360 : vector<8x32xf32>
      %cst_186 = arith.constant 5.000000e-01 : f32
      %363 = vector.broadcast %cst_186 : f32 to vector<8x32xf32>
      %364 = arith.addf %362, %363 : vector<8x32xf32>
      %c5 = arith.constant 5 : index
      %c0_187 = arith.constant 0 : index
      %365 = vector.load %arg6[%c5, %c0_187] : memref<12x32xf32, #tpu.memory_space<vmem>>, vector<1x32xf32>
      %366 = vector.broadcast %365 : vector<1x32xf32> to vector<8x32xf32>
      %367 = arith.addf %351, %366 : vector<8x32xf32>
      %cst_188 = arith.constant 5.000000e-01 : f32
      %368 = vector.broadcast %cst_188 : f32 to vector<8x32xf32>
      %369 = arith.mulf %368, %367 : vector<8x32xf32>
      %370 = math.tanh %369 : vector<8x32xf32>
      %cst_189 = arith.constant 5.000000e-01 : f32
      %371 = vector.broadcast %cst_189 : f32 to vector<8x32xf32>
      %372 = arith.mulf %371, %370 : vector<8x32xf32>
      %cst_190 = arith.constant 5.000000e-01 : f32
      %373 = vector.broadcast %cst_190 : f32 to vector<8x32xf32>
      %374 = arith.addf %372, %373 : vector<8x32xf32>
      %c6 = arith.constant 6 : index
      %c0_191 = arith.constant 0 : index
      %375 = vector.load %arg6[%c6, %c0_191] : memref<12x32xf32, #tpu.memory_space<vmem>>, vector<1x32xf32>
      %376 = vector.broadcast %375 : vector<1x32xf32> to vector<8x32xf32>
      %377 = arith.addf %354, %376 : vector<8x32xf32>
      %c7_192 = arith.constant 7 : index
      %c0_193 = arith.constant 0 : index
      %378 = vector.load %arg6[%c7_192, %c0_193] : memref<12x32xf32, #tpu.memory_space<vmem>>, vector<1x32xf32>
      %379 = vector.broadcast %378 : vector<1x32xf32> to vector<8x32xf32>
      %380 = arith.mulf %364, %379 : vector<8x32xf32>
      %381 = arith.addf %377, %380 : vector<8x32xf32>
      %382 = math.tanh %381 : vector<8x32xf32>
      %383 = arith.mulf %374, %382 : vector<8x32xf32>
      %384 = arith.subf %382, %383 : vector<8x32xf32>
      %cst_194 = arith.constant dense<0.000000e+00> : vector<8xf32>
      %385 = vector.multi_reduction <add>, %339, %cst_194 [1] : vector<8x32xf32> to vector<8xf32>
      %386 = vector.shape_cast %385 : vector<8xf32> to vector<8x1xf32>
      %cst_195 = arith.constant dense<0.000000e+00> : vector<8xf32>
      %387 = vector.multi_reduction <add>, %384, %cst_195 [1] : vector<8x32xf32> to vector<8xf32>
      %388 = vector.shape_cast %387 : vector<8xf32> to vector<8x1xf32>
      %389 = arith.addf %386, %388 : vector<8x1xf32>
      %cst_196 = arith.constant 1.562500e-02 : f32
      %390 = vector.broadcast %cst_196 : f32 to vector<8x1xf32>
      %391 = arith.mulf %389, %390 : vector<8x1xf32>
      %392 = vector.broadcast %391 : vector<8x1xf32> to vector<8x32xf32>
      %393 = arith.subf %339, %392 : vector<8x32xf32>
      %394 = vector.broadcast %391 : vector<8x1xf32> to vector<8x32xf32>
      %395 = arith.subf %384, %394 : vector<8x32xf32>
      %396 = arith.mulf %393, %393 : vector<8x32xf32>
      %cst_197 = arith.constant dense<0.000000e+00> : vector<8xf32>
      %397 = vector.multi_reduction <add>, %396, %cst_197 [1] : vector<8x32xf32> to vector<8xf32>
      %398 = vector.shape_cast %397 : vector<8xf32> to vector<8x1xf32>
      %399 = arith.mulf %395, %395 : vector<8x32xf32>
      %cst_198 = arith.constant dense<0.000000e+00> : vector<8xf32>
      %400 = vector.multi_reduction <add>, %399, %cst_198 [1] : vector<8x32xf32> to vector<8xf32>
      %401 = vector.shape_cast %400 : vector<8xf32> to vector<8x1xf32>
      %402 = arith.addf %398, %401 : vector<8x1xf32>
      %cst_199 = arith.constant 1.562500e-02 : f32
      %403 = vector.broadcast %cst_199 : f32 to vector<8x1xf32>
      %404 = arith.mulf %402, %403 : vector<8x1xf32>
      %cst_200 = arith.constant 9.99999974E-6 : f32
      %405 = vector.broadcast %cst_200 : f32 to vector<8x1xf32>
      %406 = arith.addf %404, %405 : vector<8x1xf32>
      %407 = math.rsqrt %406 : vector<8x1xf32>
      %408 = vector.broadcast %407 : vector<8x1xf32> to vector<8x32xf32>
      %409 = arith.mulf %393, %408 : vector<8x32xf32>
      %c8 = arith.constant 8 : index
      %c0_201 = arith.constant 0 : index
      %410 = vector.load %arg6[%c8, %c0_201] : memref<12x32xf32, #tpu.memory_space<vmem>>, vector<1x32xf32>
      %411 = vector.broadcast %410 : vector<1x32xf32> to vector<8x32xf32>
      %412 = arith.mulf %409, %411 : vector<8x32xf32>
      %c10 = arith.constant 10 : index
      %c0_202 = arith.constant 0 : index
      %413 = vector.load %arg6[%c10, %c0_202] : memref<12x32xf32, #tpu.memory_space<vmem>>, vector<1x32xf32>
      %414 = vector.broadcast %413 : vector<1x32xf32> to vector<8x32xf32>
      %415 = arith.addf %412, %414 : vector<8x32xf32>
      %416 = vector.broadcast %407 : vector<8x1xf32> to vector<8x32xf32>
      %417 = arith.mulf %395, %416 : vector<8x32xf32>
      %c9 = arith.constant 9 : index
      %c0_203 = arith.constant 0 : index
      %418 = vector.load %arg6[%c9, %c0_203] : memref<12x32xf32, #tpu.memory_space<vmem>>, vector<1x32xf32>
      %419 = vector.broadcast %418 : vector<1x32xf32> to vector<8x32xf32>
      %420 = arith.mulf %417, %419 : vector<8x32xf32>
      %c11 = arith.constant 11 : index
      %c0_204 = arith.constant 0 : index
      %421 = vector.load %arg6[%c11, %c0_204] : memref<12x32xf32, #tpu.memory_space<vmem>>, vector<1x32xf32>
      %422 = vector.broadcast %421 : vector<1x32xf32> to vector<8x32xf32>
      %423 = arith.addf %420, %422 : vector<8x32xf32>
      %c0_205 = arith.constant 0 : index
      %c0_206 = arith.constant 0 : index
      %424 = vector.load %arg7[%c0_205, %c0_206] : memref<32x128xf32, #tpu.memory_space<vmem>>, vector<32x128xf32>
      %cst_207 = arith.constant dense<0.000000e+00> : vector<8x128xf32>
      %425 = tpu.matmul %415, %424, %cst_207 {dimension_numbers = #tpu.dot_dimension_numbers<[1], [0], [0], [1], [0, 0, 1, 1], [], []>} : vector<8x32xf32>, vector<32x128xf32>, vector<8x128xf32> -> vector<8x128xf32>
      %c0_208 = arith.constant 0 : index
      %c0_209 = arith.constant 0 : index
      %426 = vector.load %arg8[%c0_208, %c0_209] : memref<32x128xf32, #tpu.memory_space<vmem>>, vector<32x128xf32>
      %cst_210 = arith.constant dense<0.000000e+00> : vector<8x128xf32>
      %427 = tpu.matmul %423, %426, %cst_210 {dimension_numbers = #tpu.dot_dimension_numbers<[1], [0], [0], [1], [0, 0, 1, 1], [], []>} : vector<8x32xf32>, vector<32x128xf32>, vector<8x128xf32> -> vector<8x128xf32>
      %428 = arith.addf %425, %427 : vector<8x128xf32>
      %c0_211 = arith.constant 0 : index
      %c0_212 = arith.constant 0 : index
      %429 = vector.load %arg9[%c0_211, %c0_212] : memref<1x128xf32, #tpu.memory_space<vmem>>, vector<1x128xf32>
      %430 = vector.broadcast %429 : vector<1x128xf32> to vector<8x128xf32>
      %431 = arith.addf %428, %430 : vector<8x128xf32>
      %c0_213 = arith.constant 0 : index
      %c0_214 = arith.constant 0 : index
      %432 = vector.load %arg10[%c0_213, %c0_214] : memref<8x128xf32, #tpu.memory_space<vmem>>, vector<8x128xf32>
      tpu.vector_store %arg10[%c0_213, %c0_214], %431 {strides = array<i32>} : memref<8x128xf32, #tpu.memory_space<vmem>>, vector<8x128xf32>,
    } else {
    }
    return
  }
  func.func @transform_0(%arg0: i32, %arg1: i32) -> (i32, i32, i32) {
    %c0_i32 = arith.constant 0 : i32
    %c0_i32_0 = arith.constant 0 : i32
    return %arg0, %arg1, %c0_i32 : i32, i32, i32
  }
  func.func @transform_1(%arg0: i32, %arg1: i32) -> (i32, i32, i32) {
    %c0_i32 = arith.constant 0 : i32
    %c0_i32_0 = arith.constant 0 : i32
    %c0_i32_1 = arith.constant 0 : i32
    %c0_i32_2 = arith.constant 0 : i32
    return %c0_i32, %c0_i32_0, %c0_i32_1 : i32, i32, i32
  }
  func.func @transform_2(%arg0: i32, %arg1: i32) -> (i32, i32, i32) {
    %c0_i32 = arith.constant 0 : i32
    %c0_i32_0 = arith.constant 0 : i32
    %c0_i32_1 = arith.constant 0 : i32
    %c0_i32_2 = arith.constant 0 : i32
    return %c0_i32, %c0_i32_0, %c0_i32_1 : i32, i32, i32
  }
  func.func @transform_3(%arg0: i32, %arg1: i32) -> (i32, i32, i32) {
    %c0_i32 = arith.constant 0 : i32
    %c0_i32_0 = arith.constant 0 : i32
    %c0_i32_1 = arith.constant 0 : i32
    %c0_i32_2 = arith.constant 0 : i32
    return %c0_i32, %c0_i32_0, %c0_i32_1 : i32, i32, i32
  }
  func.func @transform_4(%arg0: i32, %arg1: i32) -> (i32, i32) {
    %c0_i32 = arith.constant 0 : i32
    %c0_i32_0 = arith.constant 0 : i32
    %c0_i32_1 = arith.constant 0 : i32
    return %c0_i32, %c0_i32_0 : i32, i32
  }
  func.func @transform_5(%arg0: i32, %arg1: i32) -> (i32, i32) {
    %c0_i32 = arith.constant 0 : i32
    %c0_i32_0 = arith.constant 0 : i32
    %c0_i32_1 = arith.constant 0 : i32
    return %c0_i32, %c0_i32_0 : i32, i32
  }
  func.func @transform_6(%arg0: i32, %arg1: i32) -> (i32, i32) {
    %c0_i32 = arith.constant 0 : i32
    %c0_i32_0 = arith.constant 0 : i32
    %c0_i32_1 = arith.constant 0 : i32
    return %c0_i32, %c0_i32_0 : i32, i32
  }
  func.func @transform_7(%arg0: i32, %arg1: i32) -> (i32, i32) {
    %c0_i32 = arith.constant 0 : i32
    %c0_i32_0 = arith.constant 0 : i32
    %c0_i32_1 = arith.constant 0 : i32
    return %c0_i32, %c0_i32_0 : i32, i32
  }
  func.func @transform_8(%arg0: i32, %arg1: i32) -> (i32, i32) {
    %c0_i32 = arith.constant 0 : i32
    %c0_i32_0 = arith.constant 0 : i32
    return %arg0, %c0_i32 : i32, i32
  }
}

</mosaic_0001>

<llo_original>
// kernel: gru_head_forward.1
$region0: #{gru_head_forward.1}
  #allocation0 [shape = 'u32[]', space=smem, size = 0x4, offset = 0x4, fixed_abs, tag = 'smem constant byte address 0x4 - core index']
  #allocation1 [shape = 'u32[144,128]{1,0:T(1,128)}', space=vmem, size = 0x12000, scoped, tag = 'internal scratch']
  #allocation2 [shape = 'f32[8,32]{1,0:T(8,128)}', space=vmem, size = 0x1000, scoped, tag = 'scratch operand']
  %s0 = inlined_call_operand.vmem [shape: f32[8,8,32], index: 0, kind: input, shape index: {}]
  %s1 = inlined_call_operand.vmem [shape: f32[3,32,32], index: 1, kind: input, shape index: {}]
  %s2 = inlined_call_operand.vmem [shape: f32[3,32,32], index: 2, kind: input, shape index: {}]
  %s3 = inlined_call_operand.vmem [shape: f32[3,32,32], index: 3, kind: input, shape index: {}]
  %s4 = inlined_call_operand.vmem [shape: f32[12,32], index: 4, kind: input, shape index: {}]
  %s5 = inlined_call_operand.vmem [shape: f32[32,128], index: 5, kind: input, shape index: {}]
  %s6 = inlined_call_operand.vmem [shape: f32[32,128], index: 6, kind: input, shape index: {}]
  %s7 = inlined_call_operand.vmem [shape: f32[1,128], index: 7, kind: input, shape index: {}]
  %s8 = inlined_call_operand.vmem [shape: f32[8,128], index: 8, kind: output, shape index: {}]
  %s9 = sld [smem:[#allocation0]]
  $region50: #{gru_head_forward.1} parent=0
    _
  %s11 = ssub.s32 1, %s9
  %s12 = scalar_select 0, %s11, %s9
  // Predicated region
  $region2: #{gru_head_forward.1} parent=0 // pred_check
    _
  $region3: #{gru_head_forward.1} parent=0 // pred_check_branch
    %14 = sbr.rel (0) target = $region5
  $region4: #{gru_head_forward.1} parent=0 // pred_region
    _
  $region5: #{gru_head_forward.1} parent=0 // pred_fallthru
    _
  // Predicated region
  $region6: #{gru_head_forward.1} parent=0 // pred_check
    _
  $region7: #{gru_head_forward.1} parent=0 // pred_check_branch
    %16 = sbr.rel (0) target = $region9
  $region8: #{gru_head_forward.1} parent=0 // pred_region
    _
  $region9: #{gru_head_forward.1} parent=0 // pred_fallthru
    _
  // Predicated region
  $region10: #{gru_head_forward.1} parent=0 // pred_check
    _
  $region11: #{gru_head_forward.1} parent=0 // pred_check_branch
    %18 = sbr.rel (0) target = $region13
  $region12: #{gru_head_forward.1} parent=0 // pred_region
    _
  $region13: #{gru_head_forward.1} parent=0 // pred_fallthru
    _
  // Predicated region
  $region14: #{gru_head_forward.1} parent=0 // pred_check
    _
  $region15: #{gru_head_forward.1} parent=0 // pred_check_branch
    %20 = sbr.rel (0) target = $region17
  $region16: #{gru_head_forward.1} parent=0 // pred_region
    _
  $region17: #{gru_head_forward.1} parent=0 // pred_fallthru
    _
  // Predicated region
  $region18: #{gru_head_forward.1} parent=0 // pred_check
    _
  $region19: #{gru_head_forward.1} parent=0 // pred_check_branch
    %22 = sbr.rel (0) target = $region21
  $region20: #{gru_head_forward.1} parent=0 // pred_region
    _
  $region21: #{gru_head_forward.1} parent=0 // pred_fallthru
    _
  // Predicated region
  $region22: #{gru_head_forward.1} parent=0 // pred_check
    _
  $region23: #{gru_head_forward.1} parent=0 // pred_check_branch
    %24 = sbr.rel (0) target = $region25
  $region24: #{gru_head_forward.1} parent=0 // pred_region
    _
  $region25: #{gru_head_forward.1} parent=0 // pred_fallthru
    _
  // Predicated region
  $region26: #{gru_head_forward.1} parent=0 // pred_check
    _
  $region27: #{gru_head_forward.1} parent=0 // pred_check_branch
    %26 = sbr.rel (0) target = $region29
  $region28: #{gru_head_forward.1} parent=0 // pred_region
    _
  $region29: #{gru_head_forward.1} parent=0 // pred_fallthru
    _
  // Predicated region
  $region30: #{gru_head_forward.1} parent=0 // pred_check
    _
  $region31: #{gru_head_forward.1} parent=0 // pred_check_branch
    %28 = sbr.rel (0) target = $region33
  $region32: #{gru_head_forward.1} parent=0 // pred_region
    _
  $region33: #{gru_head_forward.1} parent=0 // pred_fallthru
    _
  %p29 = scmp.eq.s32.totalorder 0, 0
  // Predicated region
  $region34: #{gru_head_forward.1} parent=0 // pred_check
    %p30 = pneg %p29
  $region35: #{gru_head_forward.1} parent=0 // pred_check_branch
    %32 = sbr.rel (%p30) target = $region37
  $region36: #{gru_head_forward.1} parent=0 // pred_region
    %vm33 = vcmask 261120
    %34 = vst.msk [vmem:[#allocation2] sm:$0xff] %vm33, 0.0
  $region37: #{gru_head_forward.1} parent=0 // pred_fallthru
    _
  %v35 = vld [vmem:[%s0] sm:$0xff]
  %v36 = vld [vmem:[%s0 + $0x8] sm:$0xff]
  %v37 = vld [vmem:[%s0 + $0x10] sm:$0xff]
  %v38 = vld [vmem:[%s0 + $0x18] sm:$0xff]
  %v39 = vld [vmem:[%s0 + $0x20] sm:$0xff]
  %v40 = vld [vmem:[%s0 + $0x28] sm:$0xff]
  %v41 = vld [vmem:[%s0 + $0x30] sm:$0xff]
  %v42 = vld [vmem:[%s0 + $0x38] sm:$0xff]
  %v43 = vld [vmem:[%s1] sm:$0xff]
  %v44 = vld [vmem:[%s1 + $0x8] sm:$0xff]
  %v45 = vld [vmem:[%s1 + $0x10] sm:$0xff]
  %v46 = vld [vmem:[%s1 + $0x18] sm:$0xff]
  %s47 = scalar_lea.vmem %s1, 32
  %v48 = vld [vmem:[%s47] sm:$0xff]
  %v49 = vld [vmem:[%s47 + $0x8] sm:$0xff]
  %v50 = vld [vmem:[%s47 + $0x10] sm:$0xff]
  %v51 = vld [vmem:[%s47 + $0x18] sm:$0xff]
  %s52 = scalar_lea.vmem %s1, 64
  %v53 = vld [vmem:[%s52] sm:$0xff]
  %v54 = vld [vmem:[%s52 + $0x8] sm:$0xff]
  %v55 = vld [vmem:[%s52 + $0x10] sm:$0xff]
  %v56 = vld [vmem:[%s52 + $0x18] sm:$0xff]
  %v57 = vld [vmem:[%s4] sm:$0x1]
  %v58 = vlaneseq
  %v59 = vshrl.u32 %v58, 7
  %v60 = vsub.s32 0, %v59
  %v61 = vrot.slane %v57, %v60
  %vm62 = vcmask 261120
  %v64 = vsel %vm62, %v35, 0
  %v67 = vsel %vm62, %v36, 0
  %v70 = vsel %vm62, %v37, 0
  %v73 = vsel %vm62, %v38, 0
  %v76 = vsel %vm62, %v39, 0
  %v79 = vsel %vm62, %v40, 0
  %v82 = vsel %vm62, %v41, 0
  %v85 = vsel %vm62, %v42, 0
  %87 = vmatprep.subr.mxu0 0.0
  %88 = vmatpush1.msra.mxu0 %v43
  %89 = vmatprep.subr.mxu0 0.0
  %90 = vmatpush1.msra.mxu0 %v44
  %91 = vmatprep.subr.mxu0 0.0
  %92 = vmatpush1.msra.mxu0 %v45
  %93 = vmatprep.subr.mxu0 0.0
  %94 = vmatpush1.msra.mxu0 %v46
  %95 = vmatprep.subr.mxu0 0.0
  %96 = vmatpush1.msra.mxu0 0.0
  %97 = vmatprep.subr.mxu0 0.0
  %98 = vmatpush1.msra.mxu0 0.0
  %99 = vmatprep.subr.mxu0 0.0
  %100 = vmatpush1.msra.mxu0 0.0
  %101 = vmatprep.subr.mxu0 0.0
  %102 = vmatpush1.msra.mxu0 0.0
  %103 = vmatprep.subr.mxu0 0.0
  %104 = vmatpush1.msra.mxu0 0.0
  %105 = vmatprep.subr.mxu0 0.0
  %106 = vmatpush1.msra.mxu0 0.0
  %107 = vmatprep.subr.mxu0 0.0
  %108 = vmatpush1.msra.mxu0 0.0
  %109 = vmatprep.subr.mxu0 0.0
  %110 = vmatpush1.msra.mxu0 0.0
  %111 = vmatprep.subr.mxu0 0.0
  %112 = vmatpush1.msra.mxu0 0.0
  %113 = vmatprep.subr.mxu0 0.0
  %114 = vmatpush1.msra.mxu0 0.0
  %115 = vmatprep.subr.mxu0 0.0
  %116 = vmatpush1.msra.mxu0 0.0
  %117 = vmatprep.subr.mxu0 0.0
  %118 = vmatpush1.msra.mxu0 0.0
  %119 = vmatprep.subr.mxu0 0.0
  %120 = vmatpush1.msra.mxu0 0.0
  %121 = vmatprep.subr.mxu0 0.0
  %122 = vmatpush1.msra.mxu0 0.0
  %123 = vmatprep.subr.mxu0 0.0
  %124 = vmatpush1.msra.mxu0 0.0
  %125 = vmatprep.subr.mxu0 0.0
  %126 = vmatpush1.msra.mxu0 0.0
  %127 = vmatprep.subr.mxu0 0.0
  %128 = vmatpush1.msra.mxu0 0.0
  %129 = vmatprep.subr.mxu0 0.0
  %130 = vmatpush1.msra.mxu0 0.0
  %131 = vmatprep.subr.mxu0 0.0
  %132 = vmatpush1.msra.mxu0 0.0
  %133 = vmatprep.subr.mxu0 0.0
  %134 = vmatpush1.msra.mxu0 0.0
  %135 = vmatprep.subr.mxu0 0.0
  %136 = vmatpush1.msra.mxu0 0.0
  %137 = vmatprep.subr.mxu0 0.0
  %138 = vmatpush1.msra.mxu0 0.0
  %139 = vmatprep.subr.mxu0 0.0
  %140 = vmatpush1.msra.mxu0 0.0
  %141 = vmatprep.subr.mxu0 0.0
  %142 = vmatpush1.msra.mxu0 0.0
  %143 = vmatprep.subr.mxu0 0.0
  %144 = vmatpush1.msra.mxu0 0.0
  %145 = vmatprep.subr.mxu0 0.0
  %146 = vmatpush1.msra.mxu0 0.0
  %147 = vmatprep.subr.mxu0 0.0
  %148 = vmatpush1.msra.mxu0 0.0
  %149 = vmatprep.subr.mxu0 0.0
  %150 = vmatpush1.msra.mxu0 0.0
  %151 = vmatprep.mubr.f32.mxu0 0.0
  %152 = vmatmul.mubr.f32.gmra.mrb[0].mxu0 %v64
  %v153 = vpop.f32.mrb[0].mxu0
  %v154 = vadd.f32 %v61, %v153
  %v155 = vpop.f32.mrb[0].mxu0
  %156 = vmatprep.mubr.f32.mxu0 0.0
  %157 = vmatmul.mubr.f32.gmra.mrb[0].mxu0 %v67
  %v158 = vpop.f32.mrb[0].mxu0
  %v159 = vadd.f32 %v61, %v158
  %v160 = vpop.f32.mrb[0].mxu0
  %161 = vmatprep.mubr.f32.mxu0 0.0
  %162 = vmatmul.mubr.f32.gmra.mrb[0].mxu0 %v70
  %v163 = vpop.f32.mrb[0].mxu0
  %v164 = vadd.f32 %v61, %v163
  %v165 = vpop.f32.mrb[0].mxu0
  %166 = vmatprep.mubr.f32.mxu0 0.0
  %167 = vmatmul.mubr.f32.gmra.mrb[0].mxu0 %v73
  %v168 = vpop.f32.mrb[0].mxu0
  %v169 = vadd.f32 %v61, %v168
  %v170 = vpop.f32.mrb[0].mxu0
  %171 = vmatprep.mubr.f32.mxu0 0.0
  %172 = vmatmul.mubr.f32.gmra.mrb[0].mxu0 %v76
  %v173 = vpop.f32.mrb[0].mxu0
  %v174 = vadd.f32 %v61, %v173
  %v175 = vpop.f32.mrb[0].mxu0
  %176 = vmatprep.mubr.f32.mxu0 0.0
  %177 = vmatmul.mubr.f32.gmra.mrb[0].mxu0 %v79
  %v178 = vpop.f32.mrb[0].mxu0
  %v179 = vadd.f32 %v61, %v178
  %v180 = vpop.f32.mrb[0].mxu0
  %181 = vmatprep.mubr.f32.mxu0 0.0
  %182 = vmatmul.mubr.f32.gmra.mrb[0].mxu0 %v82
  %v183 = vpop.f32.mrb[0].mxu0
  %v184 = vadd.f32 %v61, %v183
  %v185 = vpop.f32.mrb[0].mxu0
  %186 = vmatprep.mubr.f32.mxu0 0.0
  %187 = vmatmul.mubr.f32.gmra.mrb[0].mxu0 %v85
  %v188 = vpop.f32.mrb[0].mxu0
  %v189 = vadd.f32 %v61, %v188
  %v190 = vpop.f32.mrb[0].mxu0
  %191 = vdwg.mxu0
  %v192 = vld [vmem:[%s4 + $0x1] sm:$0x1]
  %v193 = vlaneseq
  %v194 = vshrl.u32 %v193, 7
  %v195 = vsub.s32 0, %v194
  %v196 = vrot.slane %v192, %v195
  %197 = vmatprep.subr.mxu0 0.0
  %198 = vmatpush1.msra.mxu0 %v48
  %199 = vmatprep.subr.mxu0 0.0
  %200 = vmatpush1.msra.mxu0 %v49
  %201 = vmatprep.subr.mxu0 0.0
  %202 = vmatpush1.msra.mxu0 %v50
  %203 = vmatprep.subr.mxu0 0.0
  %204 = vmatpush1.msra.mxu0 %v51
  %205 = vmatprep.subr.mxu0 0.0
  %206 = vmatpush1.msra.mxu0 0.0
  %207 = vmatprep.subr.mxu0 0.0
  %208 = vmatpush1.msra.mxu0 0.0
  %209 = vmatprep.subr.mxu0 0.0
  %210 = vmatpush1.msra.mxu0 0.0
  %211 = vmatprep.subr.mxu0 0.0
  %212 = vmatpush1.msra.mxu0 0.0
  %213 = vmatprep.subr.mxu0 0.0
  %214 = vmatpush1.msra.mxu0 0.0
  %215 = vmatprep.subr.mxu0 0.0
  %216 = vmatpush1.msra.mxu0 0.0
  %217 = vmatprep.subr.mxu0 0.0
  %218 = vmatpush1.msra.mxu0 0.0
  %219 = vmatprep.subr.mxu0 0.0
  %220 = vmatpush1.msra.mxu0 0.0
  %221 = vmatprep.subr.mxu0 0.0
  %222 = vmatpush1.msra.mxu0 0.0
  %223 = vmatprep.subr.mxu0 0.0
  %224 = vmatpush1.msra.mxu0 0.0
  %225 = vmatprep.subr.mxu0 0.0
  %226 = vmatpush1.msra.mxu0 0.0
  %227 = vmatprep.subr.mxu0 0.0
  %228 = vmatpush1.msra.mxu0 0.0
  %229 = vmatprep.subr.mxu0 0.0
  %230 = vmatpush1.msra.mxu0 0.0
  %231 = vmatprep.subr.mxu0 0.0
  %232 = vmatpush1.msra.mxu0 0.0
  %233 = vmatprep.subr.mxu0 0.0
  %234 = vmatpush1.msra.mxu0 0.0
  %235 = vmatprep.subr.mxu0 0.0
  %236 = vmatpush1.msra.mxu0 0.0
  %237 = vmatprep.subr.mxu0 0.0
  %238 = vmatpush1.msra.mxu0 0.0
  %239 = vmatprep.subr.mxu0 0.0
  %240 = vmatpush1.msra.mxu0 0.0
  %241 = vmatprep.subr.mxu0 0.0
  %242 = vmatpush1.msra.mxu0 0.0
  %243 = vmatprep.subr.mxu0 0.0
  %244 = vmatpush1.msra.mxu0 0.0
  %245 = vmatprep.subr.mxu0 0.0
  %246 = vmatpush1.msra.mxu0 0.0
  %247 = vmatprep.subr.mxu0 0.0
  %248 = vmatpush1.msra.mxu0 0.0
  %249 = vmatprep.subr.mxu0 0.0
  %250 = vmatpush1.msra.mxu0 0.0
  %251 = vmatprep.subr.mxu0 0.0
  %252 = vmatpush1.msra.mxu0 0.0
  %253 = vmatprep.subr.mxu0 0.0
  %254 = vmatpush1.msra.mxu0 0.0
  %255 = vmatprep.subr.mxu0 0.0
  %256 = vmatpush1.msra.mxu0 0.0
  %257 = vmatprep.subr.mxu0 0.0
  %258 = vmatpush1.msra.mxu0 0.0
  %259 = vmatprep.subr.mxu0 0.0
  %260 = vmatpush1.msra.mxu0 0.0
  %261 = vmatprep.mubr.f32.mxu0 0.0
  %262 = vmatmul.mubr.f32.gmra.mrb[0].mxu0 %v64
  %v263 = vpop.f32.mrb[0].mxu0
  %v264 = vadd.f32 %v196, %v263
  %v265 = vpop.f32.mrb[0].mxu0
  %266 = vmatprep.mubr.f32.mxu0 0.0
  %267 = vmatmul.mubr.f32.gmra.mrb[0].mxu0 %v67
  %v268 = vpop.f32.mrb[0].mxu0
  %v269 = vadd.f32 %v196, %v268
  %v270 = vpop.f32.mrb[0].mxu0
  %271 = vmatprep.mubr.f32.mxu0 0.0
  %272 = vmatmul.mubr.f32.gmra.mrb[0].mxu0 %v70
  %v273 = vpop.f32.mrb[0].mxu0
  %v274 = vadd.f32 %v196, %v273
  %v275 = vpop.f32.mrb[0].mxu0
  %276 = vmatprep.mubr.f32.mxu0 0.0
  %277 = vmatmul.mubr.f32.gmra.mrb[0].mxu0 %v73
  %v278 = vpop.f32.mrb[0].mxu0
  %v279 = vadd.f32 %v196, %v278
  %v280 = vpop.f32.mrb[0].mxu0
  %281 = vmatprep.mubr.f32.mxu0 0.0
  %282 = vmatmul.mubr.f32.gmra.mrb[0].mxu0 %v76
  %v283 = vpop.f32.mrb[0].mxu0
  %v284 = vadd.f32 %v196, %v283
  %v285 = vpop.f32.mrb[0].mxu0
  %286 = vmatprep.mubr.f32.mxu0 0.0
  %287 = vmatmul.mubr.f32.gmra.mrb[0].mxu0 %v79
  %v288 = vpop.f32.mrb[0].mxu0
  %v289 = vadd.f32 %v196, %v288
  %v290 = vpop.f32.mrb[0].mxu0
  %291 = vmatprep.mubr.f32.mxu0 0.0
  %292 = vmatmul.mubr.f32.gmra.mrb[0].mxu0 %v82
  %v293 = vpop.f32.mrb[0].mxu0
  %v294 = vadd.f32 %v196, %v293
  %v295 = vpop.f32.mrb[0].mxu0
  %296 = vmatprep.mubr.f32.mxu0 0.0
  %297 = vmatmul.mubr.f32.gmra.mrb[0].mxu0 %v85
  %v298 = vpop.f32.mrb[0].mxu0
  %v299 = vadd.f32 %v196, %v298
  %v300 = vpop.f32.mrb[0].mxu0
  %301 = vdwg.mxu0
  %v302 = vld [vmem:[%s4 + $0x2] sm:$0x1]
  %v303 = vlaneseq
  %v304 = vshrl.u32 %v303, 7
  %v305 = vsub.s32 0, %v304
  %v306 = vrot.slane %v302, %v305
  %307 = vmatprep.subr.mxu0 0.0
  %308 = vmatpush1.msra.mxu0 %v53
  %309 = vmatprep.subr.mxu0 0.0
  %310 = vmatpush1.msra.mxu0 %v54
  %311 = vmatprep.subr.mxu0 0.0
  %312 = vmatpush1.msra.mxu0 %v55
  %313 = vmatprep.subr.mxu0 0.0
  %314 = vmatpush1.msra.mxu0 %v56
  %315 = vmatprep.subr.mxu0 0.0
  %316 = vmatpush1.msra.mxu0 0.0
  %317 = vmatprep.subr.mxu0 0.0
  %318 = vmatpush1.msra.mxu0 0.0
  %319 = vmatprep.subr.mxu0 0.0
  %320 = vmatpush1.msra.mxu0 0.0
  %321 = vmatprep.subr.mxu0 0.0
  %322 = vmatpush1.msra.mxu0 0.0
  %323 = vmatprep.subr.mxu0 0.0
  %324 = vmatpush1.msra.mxu0 0.0
  %325 = vmatprep.subr.mxu0 0.0
  %326 = vmatpush1.msra.mxu0 0.0
  %327 = vmatprep.subr.mxu0 0.0
  %328 = vmatpush1.msra.mxu0 0.0
  %329 = vmatprep.subr.mxu0 0.0
  %330 = vmatpush1.msra.mxu0 0.0
  %331 = vmatprep.subr.mxu0 0.0
  %332 = vmatpush1.msra.mxu0 0.0
  %333 = vmatprep.subr.mxu0 0.0
  %334 = vmatpush1.msra.mxu0 0.0
  %335 = vmatprep.subr.mxu0 0.0
  %336 = vmatpush1.msra.mxu0 0.0
  %337 = vmatprep.subr.mxu0 0.0
  %338 = vmatpush1.msra.mxu0 0.0
  %339 = vmatprep.subr.mxu0 0.0
  %340 = vmatpush1.msra.mxu0 0.0
  %341 = vmatprep.subr.mxu0 0.0
  %342 = vmatpush1.msra.mxu0 0.0
  %343 = vmatprep.subr.mxu0 0.0
  %344 = vmatpush1.msra.mxu0 0.0
  %345 = vmatprep.subr.mxu0 0.0
  %346 = vmatpush1.msra.mxu0 0.0
  %347 = vmatprep.subr.mxu0 0.0
  %348 = vmatpush1.msra.mxu0 0.0
  %349 = vmatprep.subr.mxu0 0.0
  %350 = vmatpush1.msra.mxu0 0.0
  %351 = vmatprep.subr.mxu0 0.0
  %352 = vmatpush1.msra.mxu0 0.0
  %353 = vmatprep.subr.mxu0 0.0
  %354 = vmatpush1.msra.mxu0 0.0
  %355 = vmatprep.subr.mxu0 0.0
  %356 = vmatpush1.msra.mxu0 0.0
  %357 = vmatprep.subr.mxu0 0.0
  %358 = vmatpush1.msra.mxu0 0.0
  %359 = vmatprep.subr.mxu0 0.0
  %360 = vmatpush1.msra.mxu0 0.0
  %361 = vmatprep.subr.mxu0 0.0
  %362 = vmatpush1.msra.mxu0 0.0
  %363 = vmatprep.subr.mxu0 0.0
  %364 = vmatpush1.msra.mxu0 0.0
  %365 = vmatprep.subr.mxu0 0.0
  %366 = vmatpush1.msra.mxu0 0.0
  %367 = vmatprep.subr.mxu0 0.0
  %368 = vmatpush1.msra.mxu0 0.0
  %369 = vmatprep.subr.mxu0 0.0
  %370 = vmatpush1.msra.mxu0 0.0
  %371 = vmatprep.mubr.f32.mxu0 0.0
  %372 = vmatmul.mubr.f32.gmra.mrb[0].mxu0 %v64
  %v373 = vpop.f32.mrb[0].mxu0
  %v374 = vadd.f32 %v306, %v373
  %v375 = vpop.f32.mrb[0].mxu0
  %376 = vmatprep.mubr.f32.mxu0 0.0
  %377 = vmatmul.mubr.f32.gmra.mrb[0].mxu0 %v67
  %v378 = vpop.f32.mrb[0].mxu0
  %v379 = vadd.f32 %v306, %v378
  %v380 = vpop.f32.mrb[0].mxu0
  %381 = vmatprep.mubr.f32.mxu0 0.0
  %382 = vmatmul.mubr.f32.gmra.mrb[0].mxu0 %v70
  %v383 = vpop.f32.mrb[0].mxu0
  %v384 = vadd.f32 %v306, %v383
  %v385 = vpop.f32.mrb[0].mxu0
  %386 = vmatprep.mubr.f32.mxu0 0.0
  %387 = vmatmul.mubr.f32.gmra.mrb[0].mxu0 %v73
  %v388 = vpop.f32.mrb[0].mxu0
  %v389 = vadd.f32 %v306, %v388
  %v390 = vpop.f32.mrb[0].mxu0
  %391 = vmatprep.mubr.f32.mxu0 0.0
  %392 = vmatmul.mubr.f32.gmra.mrb[0].mxu0 %v76
  %v393 = vpop.f32.mrb[0].mxu0
  %v394 = vadd.f32 %v306, %v393
  %v395 = vpop.f32.mrb[0].mxu0
  %396 = vmatprep.mubr.f32.mxu0 0.0
  %397 = vmatmul.mubr.f32.gmra.mrb[0].mxu0 %v79
  %v398 = vpop.f32.mrb[0].mxu0
  %v399 = vadd.f32 %v306, %v398
  %v400 = vpop.f32.mrb[0].mxu0
  %401 = vmatprep.mubr.f32.mxu0 0.0
  %402 = vmatmul.mubr.f32.gmra.mrb[0].mxu0 %v82
  %v403 = vpop.f32.mrb[0].mxu0
  %v404 = vadd.f32 %v306, %v403
  %v405 = vpop.f32.mrb[0].mxu0
  %406 = vmatprep.mubr.f32.mxu0 0.0
  %407 = vmatmul.mubr.f32.gmra.mrb[0].mxu0 %v85
  %v408 = vpop.f32.mrb[0].mxu0
  %v409 = vadd.f32 %v306, %v408
  %v410 = vpop.f32.mrb[0].mxu0
  %411 = vdwg.mxu0
  %v412 = vld [vmem:[%s4 + $0x3] sm:$0x1]
  %v413 = vld [vmem:[#allocation2] sm:$0xff]
  %v414 = vld [vmem:[%s2] sm:$0xff]
  %v415 = vld [vmem:[%s2 + $0x8] sm:$0xff]
  %v416 = vld [vmem:[%s2 + $0x10] sm:$0xff]
  %v417 = vld [vmem:[%s2 + $0x18] sm:$0xff]
  %v419 = vsel %vm62, %v413, 0
  %421 = vmatprep.subr.mxu0 0.0
  %422 = vmatpush1.msra.mxu0 %v414
  %423 = vmatprep.subr.mxu0 0.0
  %424 = vmatpush1.msra.mxu0 %v415
  %425 = vmatprep.subr.mxu0 0.0
  %426 = vmatpush1.msra.mxu0 %v416
  %427 = vmatprep.subr.mxu0 0.0
  %428 = vmatpush1.msra.mxu0 %v417
  %429 = vmatprep.subr.mxu0 0.0
  %430 = vmatpush1.msra.mxu0 0.0
  %431 = vmatprep.subr.mxu0 0.0
  %432 = vmatpush1.msra.mxu0 0.0
  %433 = vmatprep.subr.mxu0 0.0
  %434 = vmatpush1.msra.mxu0 0.0
  %435 = vmatprep.subr.mxu0 0.0
  %436 = vmatpush1.msra.mxu0 0.0
  %437 = vmatprep.subr.mxu0 0.0
  %438 = vmatpush1.msra.mxu0 0.0
  %439 = vmatprep.subr.mxu0 0.0
  %440 = vmatpush1.msra.mxu0 0.0
  %441 = vmatprep.subr.mxu0 0.0
  %442 = vmatpush1.msra.mxu0 0.0
  %443 = vmatprep.subr.mxu0 0.0
  %444 = vmatpush1.msra.mxu0 0.0
  %445 = vmatprep.subr.mxu0 0.0
  %446 = vmatpush1.msra.mxu0 0.0
  %447 = vmatprep.subr.mxu0 0.0
  %448 = vmatpush1.msra.mxu0 0.0
  %449 = vmatprep.subr.mxu0 0.0
  %450 = vmatpush1.msra.mxu0 0.0
  %451 = vmatprep.subr.mxu0 0.0
  %452 = vmatpush1.msra.mxu0 0.0
  %453 = vmatprep.subr.mxu0 0.0
  %454 = vmatpush1.msra.mxu0 0.0
  %455 = vmatprep.subr.mxu0 0.0
  %456 = vmatpush1.msra.mxu0 0.0
  %457 = vmatprep.subr.mxu0 0.0
  %458 = vmatpush1.msra.mxu0 0.0
  %459 = vmatprep.subr.mxu0 0.0
  %460 = vmatpush1.msra.mxu0 0.0
  %461 = vmatprep.subr.mxu0 0.0
  %462 = vmatpush1.msra.mxu0 0.0
  %463 = vmatprep.subr.mxu0 0.0
  %464 = vmatpush1.msra.mxu0 0.0
  %465 = vmatprep.subr.mxu0 0.0
  %466 = vmatpush1.msra.mxu0 0.0
  %467 = vmatprep.subr.mxu0 0.0
  %468 = vmatpush1.msra.mxu0 0.0
  %469 = vmatprep.subr.mxu0 0.0
  %470 = vmatpush1.msra.mxu0 0.0
  %471 = vmatprep.subr.mxu0 0.0
  %472 = vmatpush1.msra.mxu0 0.0
  %473 = vmatprep.subr.mxu0 0.0
  %474 = vmatpush1.msra.mxu0 0.0
  %475 = vmatprep.subr.mxu0 0.0
  %476 = vmatpush1.msra.mxu0 0.0
  %477 = vmatprep.subr.mxu0 0.0
  %478 = vmatpush1.msra.mxu0 0.0
  %479 = vmatprep.subr.mxu0 0.0
  %480 = vmatpush1.msra.mxu0 0.0
  %481 = vmatprep.subr.mxu0 0.0
  %482 = vmatpush1.msra.mxu0 0.0
  %483 = vmatprep.subr.mxu0 0.0
  %484 = vmatpush1.msra.mxu0 0.0
  %485 = vmatprep.mubr.f32.mxu0 0.0
  %486 = vmatmul.mubr.f32.gmra.mrb[0].mxu0 %v419
  %v487 = vpop.f32.mrb[0].mxu0
  %v488 = vadd.f32 0.0, %v487
  %v489 = vpop.f32.mrb[0].mxu0
  %490 = vdwg.mxu0
  %s491 = scalar_lea.vmem %s2, 32
  %v492 = vld [vmem:[%s491] sm:$0xff]
  %v493 = vld [vmem:[%s491 + $0x8] sm:$0xff]
  %v494 = vld [vmem:[%s491 + $0x10] sm:$0xff]
  %v495 = vld [vmem:[%s491 + $0x18] sm:$0xff]
  %496 = vmatprep.subr.mxu0 0.0
  %497 = vmatpush1.msra.mxu0 %v492
  %498 = vmatprep.subr.mxu0 0.0
  %499 = vmatpush1.msra.mxu0 %v493
  %500 = vmatprep.subr.mxu0 0.0
  %501 = vmatpush1.msra.mxu0 %v494
  %502 = vmatprep.subr.mxu0 0.0
  %503 = vmatpush1.msra.mxu0 %v495
  %504 = vmatprep.subr.mxu0 0.0
  %505 = vmatpush1.msra.mxu0 0.0
  %506 = vmatprep.subr.mxu0 0.0
  %507 = vmatpush1.msra.mxu0 0.0
  %508 = vmatprep.subr.mxu0 0.0
  %509 = vmatpush1.msra.mxu0 0.0
  %510 = vmatprep.subr.mxu0 0.0
  %511 = vmatpush1.msra.mxu0 0.0
  %512 = vmatprep.subr.mxu0 0.0
  %513 = vmatpush1.msra.mxu0 0.0
  %514 = vmatprep.subr.mxu0 0.0
  %515 = vmatpush1.msra.mxu0 0.0
  %516 = vmatprep.subr.mxu0 0.0
  %517 = vmatpush1.msra.mxu0 0.0
  %518 = vmatprep.subr.mxu0 0.0
  %519 = vmatpush1.msra.mxu0 0.0
  %520 = vmatprep.subr.mxu0 0.0
  %521 = vmatpush1.msra.mxu0 0.0
  %522 = vmatprep.subr.mxu0 0.0
  %523 = vmatpush1.msra.mxu0 0.0
  %524 = vmatprep.subr.mxu0 0.0
  %525 = vmatpush1.msra.mxu0 0.0
  %526 = vmatprep.subr.mxu0 0.0
  %527 = vmatpush1.msra.mxu0 0.0
  %528 = vmatprep.subr.mxu0 0.0
  %529 = vmatpush1.msra.mxu0 0.0
  %530 = vmatprep.subr.mxu0 0.0
  %531 = vmatpush1.msra.mxu0 0.0
  %532 = vmatprep.subr.mxu0 0.0
  %533 = vmatpush1.msra.mxu0 0.0
  %534 = vmatprep.subr.mxu0 0.0
  %535 = vmatpush1.msra.mxu0 0.0
  %536 = vmatprep.subr.mxu0 0.0
  %537 = vmatpush1.msra.mxu0 0.0
  %538 = vmatprep.subr.mxu0 0.0
  %539 = vmatpush1.msra.mxu0 0.0
  %540 = vmatprep.subr.mxu0 0.0
  %541 = vmatpush1.msra.mxu0 0.0
  %542 = vmatprep.subr.mxu0 0.0
  %543 = vmatpush1.msra.mxu0 0.0
  %544 = vmatprep.subr.mxu0 0.0
  %545 = vmatpush1.msra.mxu0 0.0
  %546 = vmatprep.subr.mxu0 0.0
  %547 = vmatpush1.msra.mxu0 0.0
  %548 = vmatprep.subr.mxu0 0.0
  %549 = vmatpush1.msra.mxu0 0.0
  %550 = vmatprep.subr.mxu0 0.0
  %551 = vmatpush1.msra.mxu0 0.0
  %552 = vmatprep.subr.mxu0 0.0
  %553 = vmatpush1.msra.mxu0 0.0
  %554 = vmatprep.subr.mxu0 0.0
  %555 = vmatpush1.msra.mxu0 0.0
  %556 = vmatprep.subr.mxu0 0.0
  %557 = vmatpush1.msra.mxu0 0.0
  %558 = vmatprep.subr.mxu0 0.0
  %559 = vmatpush1.msra.mxu0 0.0
  %560 = vmatprep.mubr.f32.mxu0 0.0
  %561 = vmatmul.mubr.f32.gmra.mrb[0].mxu0 %v419
  %v562 = vpop.f32.mrb[0].mxu0
  %v563 = vadd.f32 0.0, %v562
  %v564 = vpop.f32.mrb[0].mxu0
  %565 = vdwg.mxu0
  %s566 = scalar_lea.vmem %s2, 64
  %v567 = vld [vmem:[%s566] sm:$0xff]
  %v568 = vld [vmem:[%s566 + $0x8] sm:$0xff]
  %v569 = vld [vmem:[%s566 + $0x10] sm:$0xff]
  %v570 = vld [vmem:[%s566 + $0x18] sm:$0xff]
  %v572 = vrot.slane %v488, 1
  %v573 = vrot.slane %v488, 2
  %v574 = vrot.slane %v488, 3
  %v575 = vrot.slane %v488, 4
  %v576 = vrot.slane %v488, 5
  %v577 = vrot.slane %v488, 6
  %v578 = vrot.slane %v488, 7
  %v587 = vadd.f32 %v154, %v488
  %v588 = vadd.f32 %v159, %v572
  %v589 = vadd.f32 %v164, %v573
  %v590 = vadd.f32 %v169, %v574
  %v591 = vadd.f32 %v174, %v575
  %v592 = vadd.f32 %v179, %v576
  %v593 = vadd.f32 %v184, %v577
  %v594 = vadd.f32 %v189, %v578
  %v595 = vmul.f32 %v587, 0.5
  %v596 = vmul.f32 %v588, 0.5
  %v597 = vmul.f32 %v589, 0.5
  %v598 = vmul.f32 %v590, 0.5
  %v599 = vmul.f32 %v591, 0.5
  %v600 = vmul.f32 %v592, 0.5
  %v601 = vmul.f32 %v593, 0.5
  %v602 = vmul.f32 %v594, 0.5
  %v603 = vtanh.pop %v595
  %v604 = vtanh.pop %v596
  %v605 = vtanh.pop %v597
  %v606 = vtanh.pop %v598
  %v607 = vtanh.pop %v599
  %v608 = vtanh.pop %v600
  %v609 = vtanh.pop %v601
  %v610 = vtanh.pop %v602
  %v611 = vmul.f32 %v603, 0.5
  %v612 = vmul.f32 %v604, 0.5
  %v613 = vmul.f32 %v605, 0.5
  %v614 = vmul.f32 %v606, 0.5
  %v615 = vmul.f32 %v607, 0.5
  %v616 = vmul.f32 %v608, 0.5
  %v617 = vmul.f32 %v609, 0.5
  %v618 = vmul.f32 %v610, 0.5
  %v619 = vadd.f32 %v611, 0.5
  %v620 = vadd.f32 %v612, 0.5
  %v621 = vadd.f32 %v613, 0.5
  %v622 = vadd.f32 %v614, 0.5
  %v623 = vadd.f32 %v615, 0.5
  %v624 = vadd.f32 %v616, 0.5
  %v625 = vadd.f32 %v617, 0.5
  %v626 = vadd.f32 %v618, 0.5
  %v628 = vrot.slane %v563, 1
  %v629 = vrot.slane %v563, 2
  %v630 = vrot.slane %v563, 3
  %v631 = vrot.slane %v563, 4
  %v632 = vrot.slane %v563, 5
  %v633 = vrot.slane %v563, 6
  %v634 = vrot.slane %v563, 7
  %v643 = vadd.f32 %v264, %v563
  %v644 = vadd.f32 %v269, %v628
  %v645 = vadd.f32 %v274, %v629
  %v646 = vadd.f32 %v279, %v630
  %v647 = vadd.f32 %v284, %v631
  %v648 = vadd.f32 %v289, %v632
  %v649 = vadd.f32 %v294, %v633
  %v650 = vadd.f32 %v299, %v634
  %v651 = vmul.f32 %v643, 0.5
  %v652 = vmul.f32 %v644, 0.5
  %v653 = vmul.f32 %v645, 0.5
  %v654 = vmul.f32 %v646, 0.5
  %v655 = vmul.f32 %v647, 0.5
  %v656 = vmul.f32 %v648, 0.5
  %v657 = vmul.f32 %v649, 0.5
  %v658 = vmul.f32 %v650, 0.5
  %v659 = vtanh.pop %v651
  %v660 = vtanh.pop %v652
  %v661 = vtanh.pop %v653
  %v662 = vtanh.pop %v654
  %v663 = vtanh.pop %v655
  %v664 = vtanh.pop %v656
  %v665 = vtanh.pop %v657
  %v666 = vtanh.pop %v658
  %v667 = vmul.f32 %v659, 0.5
  %v668 = vmul.f32 %v660, 0.5
  %v669 = vmul.f32 %v661, 0.5
  %v670 = vmul.f32 %v662, 0.5
  %v671 = vmul.f32 %v663, 0.5
  %v672 = vmul.f32 %v664, 0.5
  %v673 = vmul.f32 %v665, 0.5
  %v674 = vmul.f32 %v666, 0.5
  %v675 = vadd.f32 %v667, 0.5
  %v676 = vadd.f32 %v668, 0.5
  %v677 = vadd.f32 %v669, 0.5
  %v678 = vadd.f32 %v670, 0.5
  %v679 = vadd.f32 %v671, 0.5
  %v680 = vadd.f32 %v672, 0.5
  %v681 = vadd.f32 %v673, 0.5
  %v682 = vadd.f32 %v674, 0.5
  %v683 = vlaneseq
  %v684 = vshrl.u32 %v683, 7
  %v685 = vsub.s32 0, %v684
  %v686 = vrot.slane %v412, %v685
  %687 = vmatprep.subr.mxu0 0.0
  %688 = vmatpush1.msra.mxu0 %v567
  %689 = vmatprep.subr.mxu0 0.0
  %690 = vmatpush1.msra.mxu0 %v568
  %691 = vmatprep.subr.mxu0 0.0
  %692 = vmatpush1.msra.mxu0 %v569
  %693 = vmatprep.subr.mxu0 0.0
  %694 = vmatpush1.msra.mxu0 %v570
  %695 = vmatprep.subr.mxu0 0.0
  %696 = vmatpush1.msra.mxu0 0.0
  %697 = vmatprep.subr.mxu0 0.0
  %698 = vmatpush1.msra.mxu0 0.0
  %699 = vmatprep.subr.mxu0 0.0
  %700 = vmatpush1.msra.mxu0 0.0
  %701 = vmatprep.subr.mxu0 0.0
  %702 = vmatpush1.msra.mxu0 0.0
  %703 = vmatprep.subr.mxu0 0.0
  %704 = vmatpush1.msra.mxu0 0.0
  %705 = vmatprep.subr.mxu0 0.0
  %706 = vmatpush1.msra.mxu0 0.0
  %707 = vmatprep.subr.mxu0 0.0
  %708 = vmatpush1.msra.mxu0 0.0
  %709 = vmatprep.subr.mxu0 0.0
  %710 = vmatpush1.msra.mxu0 0.0
  %711 = vmatprep.subr.mxu0 0.0
  %712 = vmatpush1.msra.mxu0 0.0
  %713 = vmatprep.subr.mxu0 0.0
  %714 = vmatpush1.msra.mxu0 0.0
  %715 = vmatprep.subr.mxu0 0.0
  %716 = vmatpush1.msra.mxu0 0.0
  %717 = vmatprep.subr.mxu0 0.0
  %718 = vmatpush1.msra.mxu0 0.0
  %719 = vmatprep.subr.mxu0 0.0
  %720 = vmatpush1.msra.mxu0 0.0
  %721 = vmatprep.subr.mxu0 0.0
  %722 = vmatpush1.msra.mxu0 0.0
  %723 = vmatprep.subr.mxu0 0.0
  %724 = vmatpush1.msra.mxu0 0.0
  %725 = vmatprep.subr.mxu0 0.0
  %726 = vmatpush1.msra.mxu0 0.0
  %727 = vmatprep.subr.mxu0 0.0
  %728 = vmatpush1.msra.mxu0 0.0
  %729 = vmatprep.subr.mxu0 0.0
  %730 = vmatpush1.msra.mxu0 0.0
  %731 = vmatprep.subr.mxu0 0.0
  %732 = vmatpush1.msra.mxu0 0.0
  %733 = vmatprep.subr.mxu0 0.0
  %734 = vmatpush1.msra.mxu0 0.0
  %735 = vmatprep.subr.mxu0 0.0
  %736 = vmatpush1.msra.mxu0 0.0
  %737 = vmatprep.subr.mxu0 0.0
  %738 = vmatpush1.msra.mxu0 0.0
  %739 = vmatprep.subr.mxu0 0.0
  %740 = vmatpush1.msra.mxu0 0.0
  %741 = vmatprep.subr.mxu0 0.0
  %742 = vmatpush1.msra.mxu0 0.0
  %743 = vmatprep.subr.mxu0 0.0
  %744 = vmatpush1.msra.mxu0 0.0
  %745 = vmatprep.subr.mxu0 0.0
  %746 = vmatpush1.msra.mxu0 0.0
  %747 = vmatprep.subr.mxu0 0.0
  %748 = vmatpush1.msra.mxu0 0.0
  %749 = vmatprep.subr.mxu0 0.0
  %750 = vmatpush1.msra.mxu0 0.0
  %751 = vmatprep.mubr.f32.mxu0 0.0
  %752 = vmatmul.mubr.f32.gmra.mrb[0].mxu0 %v419
  %v753 = vpop.f32.mrb[0].mxu0
  %v754 = vadd.f32 %v686, %v753
  %v755 = vpop.f32.mrb[0].mxu0
  %756 = vdwg.mxu0
  %v758 = vrot.slane %v754, 1
  %v759 = vrot.slane %v754, 2
  %v760 = vrot.slane %v754, 3
  %v761 = vrot.slane %v754, 4
  %v762 = vrot.slane %v754, 5
  %v763 = vrot.slane %v754, 6
  %v764 = vrot.slane %v754, 7
  %v773 = vmul.f32 %v619, %v754
  %v774 = vmul.f32 %v620, %v758
  %v775 = vmul.f32 %v621, %v759
  %v776 = vmul.f32 %v622, %v760
  %v777 = vmul.f32 %v623, %v761
  %v778 = vmul.f32 %v624, %v762
  %v779 = vmul.f32 %v625, %v763
  %v780 = vmul.f32 %v626, %v764
  %v781 = vadd.f32 %v374, %v773
  %v782 = vadd.f32 %v379, %v774
  %v783 = vadd.f32 %v384, %v775
  %v784 = vadd.f32 %v389, %v776
  %v785 = vadd.f32 %v394, %v777
  %v786 = vadd.f32 %v399, %v778
  %v787 = vadd.f32 %v404, %v779
  %v788 = vadd.f32 %v409, %v780
  %v789 = vtanh.pop %v781
  %v790 = vtanh.pop %v782
  %v791 = vtanh.pop %v783
  %v792 = vtanh.pop %v784
  %v793 = vtanh.pop %v785
  %v794 = vtanh.pop %v786
  %v795 = vtanh.pop %v787
  %v796 = vtanh.pop %v788
  %v805 = vrot.slane %v790, 7
  %vm806 = vcmask 1041409
  %v807 = vsel %vm806, %v805, %v789
  %v808 = vrot.slane %v791, 6
  %vm809 = vcmask 1042434
  %v810 = vsel %vm809, %v808, %v807
  %v811 = vrot.slane %v792, 5
  %vm812 = vcmask 1043459
  %v813 = vsel %vm812, %v811, %v810
  %v814 = vrot.slane %v793, 4
  %vm815 = vcmask 1044484
  %v816 = vsel %vm815, %v814, %v813
  %v817 = vrot.slane %v794, 3
  %vm818 = vcmask 1045509
  %v819 = vsel %vm818, %v817, %v816
  %v820 = vrot.slane %v795, 2
  %vm821 = vcmask 1046534
  %v822 = vsel %vm821, %v820, %v819
  %v823 = vrot.slane %v796, 1
  %vm824 = vcmask 1047559
  %v825 = vsel %vm824, %v823, %v822
  %v827 = vsub.f32 %v413, %v825
  %v829 = vrot.slane %v827, 1
  %v830 = vrot.slane %v827, 2
  %v831 = vrot.slane %v827, 3
  %v832 = vrot.slane %v827, 4
  %v833 = vrot.slane %v827, 5
  %v834 = vrot.slane %v827, 6
  %v835 = vrot.slane %v827, 7
  %v844 = vmul.f32 %v675, %v827
  %v845 = vmul.f32 %v676, %v829
  %v846 = vmul.f32 %v677, %v830
  %v847 = vmul.f32 %v678, %v831
  %v848 = vmul.f32 %v679, %v832
  %v849 = vmul.f32 %v680, %v833
  %v850 = vmul.f32 %v681, %v834
  %v851 = vmul.f32 %v682, %v835
  %v852 = vadd.f32 %v789, %v844
  %v853 = vadd.f32 %v790, %v845
  %v854 = vadd.f32 %v791, %v846
  %v855 = vadd.f32 %v792, %v847
  %v856 = vadd.f32 %v793, %v848
  %v857 = vadd.f32 %v794, %v849
  %v858 = vadd.f32 %v795, %v850
  %v859 = vadd.f32 %v796, %v851
  %v868 = vrot.slane %v853, 7
  %v869 = vsel %vm806, %v868, %v852
  %v870 = vrot.slane %v854, 6
  %v871 = vsel %vm809, %v870, %v869
  %v872 = vrot.slane %v855, 5
  %v873 = vsel %vm812, %v872, %v871
  %v874 = vrot.slane %v856, 4
  %v875 = vsel %vm815, %v874, %v873
  %v876 = vrot.slane %v857, 3
  %v877 = vsel %vm818, %v876, %v875
  %v878 = vrot.slane %v858, 2
  %v879 = vsel %vm821, %v878, %v877
  %v880 = vrot.slane %v859, 1
  %v881 = vsel %vm824, %v880, %v879
  %v882 = vsel %vm62, %v881, 0
  %884 = vmatprep.subr.mxu0 0.0
  %885 = vmatpush1.msra.mxu0 %v414
  %886 = vmatprep.subr.mxu0 0.0
  %887 = vmatpush1.msra.mxu0 %v415
  %888 = vmatprep.subr.mxu0 0.0
  %889 = vmatpush1.msra.mxu0 %v416
  %890 = vmatprep.subr.mxu0 0.0
  %891 = vmatpush1.msra.mxu0 %v417
  %892 = vmatprep.subr.mxu0 0.0
  %893 = vmatpush1.msra.mxu0 0.0
  %894 = vmatprep.subr.mxu0 0.0
  %895 = vmatpush1.msra.mxu0 0.0
  %896 = vmatprep.subr.mxu0 0.0
  %897 = vmatpush1.msra.mxu0 0.0
  %898 = vmatprep.subr.mxu0 0.0
  %899 = vmatpush1.msra.mxu0 0.0
  %900 = vmatprep.subr.mxu0 0.0
  %901 = vmatpush1.msra.mxu0 0.0
  %902 = vmatprep.subr.mxu0 0.0
  %903 = vmatpush1.msra.mxu0 0.0
  %904 = vmatprep.subr.mxu0 0.0
  %905 = vmatpush1.msra.mxu0 0.0
  %906 = vmatprep.subr.mxu0 0.0
  %907 = vmatpush1.msra.mxu0 0.0
  %908 = vmatprep.subr.mxu0 0.0
  %909 = vmatpush1.msra.mxu0 0.0
  %910 = vmatprep.subr.mxu0 0.0
  %911 = vmatpush1.msra.mxu0 0.0
  %912 = vmatprep.subr.mxu0 0.0
  %913 = vmatpush1.msra.mxu0 0.0
  %914 = vmatprep.subr.mxu0 0.0
  %915 = vmatpush1.msra.mxu0 0.0
  %916 = vmatprep.subr.mxu0 0.0
  %917 = vmatpush1.msra.mxu0 0.0
  %918 = vmatprep.subr.mxu0 0.0
  %919 = vmatpush1.msra.mxu0 0.0
  %920 = vmatprep.subr.mxu0 0.0
  %921 = vmatpush1.msra.mxu0 0.0
  %922 = vmatprep.subr.mxu0 0.0
  %923 = vmatpush1.msra.mxu0 0.0
  %924 = vmatprep.subr.mxu0 0.0
  %925 = vmatpush1.msra.mxu0 0.0
  %926 = vmatprep.subr.mxu0 0.0
  %927 = vmatpush1.msra.mxu0 0.0
  %928 = vmatprep.subr.mxu0 0.0
  %929 = vmatpush1.msra.mxu0 0.0
  %930 = vmatprep.subr.mxu0 0.0
  %931 = vmatpush1.msra.mxu0 0.0
  %932 = vmatprep.subr.mxu0 0.0
  %933 = vmatpush1.msra.mxu0 0.0
  %934 = vmatprep.subr.mxu0 0.0
  %935 = vmatpush1.msra.mxu0 0.0
  %936 = vmatprep.subr.mxu0 0.0
  %937 = vmatpush1.msra.mxu0 0.0
  %938 = vmatprep.subr.mxu0 0.0
  %939 = vmatpush1.msra.mxu0 0.0
  %940 = vmatprep.subr.mxu0 0.0
  %941 = vmatpush1.msra.mxu0 0.0
  %942 = vmatprep.subr.mxu0 0.0
  %943 = vmatpush1.msra.mxu0 0.0
  %944 = vmatprep.subr.mxu0 0.0
  %945 = vmatpush1.msra.mxu0 0.0
  %946 = vmatprep.subr.mxu0 0.0
  %947 = vmatpush1.msra.mxu0 0.0
  %948 = vmatprep.mubr.f32.mxu0 0.0
  %949 = vmatmul.mubr.f32.gmra.mrb[0].mxu0 %v882
  %v950 = vpop.f32.mrb[0].mxu0
  %v951 = vadd.f32 0.0, %v950
  %v952 = vpop.f32.mrb[0].mxu0
  %953 = vdwg.mxu0
  %954 = vmatprep.subr.mxu0 0.0
  %955 = vmatpush1.msra.mxu0 %v492
  %956 = vmatprep.subr.mxu0 0.0
  %957 = vmatpush1.msra.mxu0 %v493
  %958 = vmatprep.subr.mxu0 0.0
  %959 = vmatpush1.msra.mxu0 %v494
  %960 = vmatprep.subr.mxu0 0.0
  %961 = vmatpush1.msra.mxu0 %v495
  %962 = vmatprep.subr.mxu0 0.0
  %963 = vmatpush1.msra.mxu0 0.0
  %964 = vmatprep.subr.mxu0 0.0
  %965 = vmatpush1.msra.mxu0 0.0
  %966 = vmatprep.subr.mxu0 0.0
  %967 = vmatpush1.msra.mxu0 0.0
  %968 = vmatprep.subr.mxu0 0.0
  %969 = vmatpush1.msra.mxu0 0.0
  %970 = vmatprep.subr.mxu0 0.0
  %971 = vmatpush1.msra.mxu0 0.0
  %972 = vmatprep.subr.mxu0 0.0
  %973 = vmatpush1.msra.mxu0 0.0
  %974 = vmatprep.subr.mxu0 0.0
  %975 = vmatpush1.msra.mxu0 0.0
  %976 = vmatprep.subr.mxu0 0.0
  %977 = vmatpush1.msra.mxu0 0.0
  %978 = vmatprep.subr.mxu0 0.0
  %979 = vmatpush1.msra.mxu0 0.0
  %980 = vmatprep.subr.mxu0 0.0
  %981 = vmatpush1.msra.mxu0 0.0
  %982 = vmatprep.subr.mxu0 0.0
  %983 = vmatpush1.msra.mxu0 0.0
  %984 = vmatprep.subr.mxu0 0.0
  %985 = vmatpush1.msra.mxu0 0.0
  %986 = vmatprep.subr.mxu0 0.0
  %987 = vmatpush1.msra.mxu0 0.0
  %988 = vmatprep.subr.mxu0 0.0
  %989 = vmatpush1.msra.mxu0 0.0
  %990 = vmatprep.subr.mxu0 0.0
  %991 = vmatpush1.msra.mxu0 0.0
  %992 = vmatprep.subr.mxu0 0.0
  %993 = vmatpush1.msra.mxu0 0.0
  %994 = vmatprep.subr.mxu0 0.0
  %995 = vmatpush1.msra.mxu0 0.0
  %996 = vmatprep.subr.mxu0 0.0
  %997 = vmatpush1.msra.mxu0 0.0
  %998 = vmatprep.subr.mxu0 0.0
  %999 = vmatpush1.msra.mxu0 0.0
  %1000 = vmatprep.subr.mxu0 0.0
  %1001 = vmatpush1.msra.mxu0 0.0
  %1002 = vmatprep.subr.mxu0 0.0
  %1003 = vmatpush1.msra.mxu0 0.0
  %1004 = vmatprep.subr.mxu0 0.0
  %1005 = vmatpush1.msra.mxu0 0.0
  %1006 = vmatprep.subr.mxu0 0.0
  %1007 = vmatpush1.msra.mxu0 0.0
  %1008 = vmatprep.subr.mxu0 0.0
  %1009 = vmatpush1.msra.mxu0 0.0
  %1010 = vmatprep.subr.mxu0 0.0
  %1011 = vmatpush1.msra.mxu0 0.0
  %1012 = vmatprep.subr.mxu0 0.0
  %1013 = vmatpush1.msra.mxu0 0.0
  %1014 = vmatprep.subr.mxu0 0.0
  %1015 = vmatpush1.msra.mxu0 0.0
  %1016 = vmatprep.subr.mxu0 0.0
  %1017 = vmatpush1.msra.mxu0 0.0
  %1018 = vmatprep.mubr.f32.mxu0 0.0
  %1019 = vmatmul.mubr.f32.gmra.mrb[0].mxu0 %v882
  %v1020 = vpop.f32.mrb[0].mxu0
  %v1021 = vadd.f32 0.0, %v1020
  %v1022 = vpop.f32.mrb[0].mxu0
  %1023 = vdwg.mxu0
  %v1025 = vrot.slane %v951, 7
  %v1026 = vrot.slane %v951, 1
  %v1027 = vrot.slane %v951, 2
  %v1028 = vrot.slane %v951, 3
  %v1029 = vrot.slane %v951, 4
  %v1030 = vrot.slane %v951, 5
  %v1031 = vrot.slane %v951, 6
  %v1040 = vadd.f32 %v154, %v1025
  %v1041 = vadd.f32 %v159, %v951
  %v1042 = vadd.f32 %v164, %v1026
  %v1043 = vadd.f32 %v169, %v1027
  %v1044 = vadd.f32 %v174, %v1028
  %v1045 = vadd.f32 %v179, %v1029
  %v1046 = vadd.f32 %v184, %v1030
  %v1047 = vadd.f32 %v189, %v1031
  %v1048 = vmul.f32 %v1040, 0.5
  %v1049 = vmul.f32 %v1041, 0.5
  %v1050 = vmul.f32 %v1042, 0.5
  %v1051 = vmul.f32 %v1043, 0.5
  %v1052 = vmul.f32 %v1044, 0.5
  %v1053 = vmul.f32 %v1045, 0.5
  %v1054 = vmul.f32 %v1046, 0.5
  %v1055 = vmul.f32 %v1047, 0.5
  %v1056 = vtanh.pop %v1048
  %v1057 = vtanh.pop %v1049
  %v1058 = vtanh.pop %v1050
  %v1059 = vtanh.pop %v1051
  %v1060 = vtanh.pop %v1052
  %v1061 = vtanh.pop %v1053
  %v1062 = vtanh.pop %v1054
  %v1063 = vtanh.pop %v1055
  %v1064 = vmul.f32 %v1056, 0.5
  %v1065 = vmul.f32 %v1057, 0.5
  %v1066 = vmul.f32 %v1058, 0.5
  %v1067 = vmul.f32 %v1059, 0.5
  %v1068 = vmul.f32 %v1060, 0.5
  %v1069 = vmul.f32 %v1061, 0.5
  %v1070 = vmul.f32 %v1062, 0.5
  %v1071 = vmul.f32 %v1063, 0.5
  %v1072 = vadd.f32 %v1064, 0.5
  %v1073 = vadd.f32 %v1065, 0.5
  %v1074 = vadd.f32 %v1066, 0.5
  %v1075 = vadd.f32 %v1067, 0.5
  %v1076 = vadd.f32 %v1068, 0.5
  %v1077 = vadd.f32 %v1069, 0.5
  %v1078 = vadd.f32 %v1070, 0.5
  %v1079 = vadd.f32 %v1071, 0.5
  %v1081 = vrot.slane %v1021, 7
  %v1082 = vrot.slane %v1021, 1
  %v1083 = vrot.slane %v1021, 2
  %v1084 = vrot.slane %v1021, 3
  %v1085 = vrot.slane %v1021, 4
  %v1086 = vrot.slane %v1021, 5
  %v1087 = vrot.slane %v1021, 6
  %v1096 = vadd.f32 %v264, %v1081
  %v1097 = vadd.f32 %v269, %v1021
  %v1098 = vadd.f32 %v274, %v1082
  %v1099 = vadd.f32 %v279, %v1083
  %v1100 = vadd.f32 %v284, %v1084
  %v1101 = vadd.f32 %v289, %v1085
  %v1102 = vadd.f32 %v294, %v1086
  %v1103 = vadd.f32 %v299, %v1087
  %v1104 = vmul.f32 %v1096, 0.5
  %v1105 = vmul.f32 %v1097, 0.5
  %v1106 = vmul.f32 %v1098, 0.5
  %v1107 = vmul.f32 %v1099, 0.5
  %v1108 = vmul.f32 %v1100, 0.5
  %v1109 = vmul.f32 %v1101, 0.5
  %v1110 = vmul.f32 %v1102, 0.5
  %v1111 = vmul.f32 %v1103, 0.5
  %v1112 = vtanh.pop %v1104
  %v1113 = vtanh.pop %v1105
  %v1114 = vtanh.pop %v1106
  %v1115 = vtanh.pop %v1107
  %v1116 = vtanh.pop %v1108
  %v1117 = vtanh.pop %v1109
  %v1118 = vtanh.pop %v1110
  %v1119 = vtanh.pop %v1111
  %v1120 = vmul.f32 %v1112, 0.5
  %v1121 = vmul.f32 %v1113, 0.5
  %v1122 = vmul.f32 %v1114, 0.5
  %v1123 = vmul.f32 %v1115, 0.5
  %v1124 = vmul.f32 %v1116, 0.5
  %v1125 = vmul.f32 %v1117, 0.5
  %v1126 = vmul.f32 %v1118, 0.5
  %v1127 = vmul.f32 %v1119, 0.5
  %v1128 = vadd.f32 %v1120, 0.5
  %v1129 = vadd.f32 %v1121, 0.5
  %v1130 = vadd.f32 %v1122, 0.5
  %v1131 = vadd.f32 %v1123, 0.5
  %v1132 = vadd.f32 %v1124, 0.5
  %v1133 = vadd.f32 %v1125, 0.5
  %v1134 = vadd.f32 %v1126, 0.5
  %v1135 = vadd.f32 %v1127, 0.5
  %1136 = vmatprep.subr.mxu0 0.0
  %1137 = vmatpush1.msra.mxu0 %v567
  %1138 = vmatprep.subr.mxu0 0.0
  %1139 = vmatpush1.msra.mxu0 %v568
  %1140 = vmatprep.subr.mxu0 0.0
  %1141 = vmatpush1.msra.mxu0 %v569
  %1142 = vmatprep.subr.mxu0 0.0
  %1143 = vmatpush1.msra.mxu0 %v570
  %1144 = vmatprep.subr.mxu0 0.0
  %1145 = vmatpush1.msra.mxu0 0.0
  %1146 = vmatprep.subr.mxu0 0.0
  %1147 = vmatpush1.msra.mxu0 0.0
  %1148 = vmatprep.subr.mxu0 0.0
  %1149 = vmatpush1.msra.mxu0 0.0
  %1150 = vmatprep.subr.mxu0 0.0
  %1151 = vmatpush1.msra.mxu0 0.0
  %1152 = vmatprep.subr.mxu0 0.0
  %1153 = vmatpush1.msra.mxu0 0.0
  %1154 = vmatprep.subr.mxu0 0.0
  %1155 = vmatpush1.msra.mxu0 0.0
  %1156 = vmatprep.subr.mxu0 0.0
  %1157 = vmatpush1.msra.mxu0 0.0
  %1158 = vmatprep.subr.mxu0 0.0
  %1159 = vmatpush1.msra.mxu0 0.0
  %1160 = vmatprep.subr.mxu0 0.0
  %1161 = vmatpush1.msra.mxu0 0.0
  %1162 = vmatprep.subr.mxu0 0.0
  %1163 = vmatpush1.msra.mxu0 0.0
  %1164 = vmatprep.subr.mxu0 0.0
  %1165 = vmatpush1.msra.mxu0 0.0
  %1166 = vmatprep.subr.mxu0 0.0
  %1167 = vmatpush1.msra.mxu0 0.0
  %1168 = vmatprep.subr.mxu0 0.0
  %1169 = vmatpush1.msra.mxu0 0.0
  %1170 = vmatprep.subr.mxu0 0.0
  %1171 = vmatpush1.msra.mxu0 0.0
  %1172 = vmatprep.subr.mxu0 0.0
  %1173 = vmatpush1.msra.mxu0 0.0
  %1174 = vmatprep.subr.mxu0 0.0
  %1175 = vmatpush1.msra.mxu0 0.0
  %1176 = vmatprep.subr.mxu0 0.0
  %1177 = vmatpush1.msra.mxu0 0.0
  %1178 = vmatprep.subr.mxu0 0.0
  %1179 = vmatpush1.msra.mxu0 0.0
  %1180 = vmatprep.subr.mxu0 0.0
  %1181 = vmatpush1.msra.mxu0 0.0
  %1182 = vmatprep.subr.mxu0 0.0
  %1183 = vmatpush1.msra.mxu0 0.0
  %1184 = vmatprep.subr.mxu0 0.0
  %1185 = vmatpush1.msra.mxu0 0.0
  %1186 = vmatprep.subr.mxu0 0.0
  %1187 = vmatpush1.msra.mxu0 0.0
  %1188 = vmatprep.subr.mxu0 0.0
  %1189 = vmatpush1.msra.mxu0 0.0
  %1190 = vmatprep.subr.mxu0 0.0
  %1191 = vmatpush1.msra.mxu0 0.0
  %1192 = vmatprep.subr.mxu0 0.0
  %1193 = vmatpush1.msra.mxu0 0.0
  %1194 = vmatprep.subr.mxu0 0.0
  %1195 = vmatpush1.msra.mxu0 0.0
  %1196 = vmatprep.subr.mxu0 0.0
  %1197 = vmatpush1.msra.mxu0 0.0
  %1198 = vmatprep.subr.mxu0 0.0
  %1199 = vmatpush1.msra.mxu0 0.0
  %1200 = vmatprep.mubr.f32.mxu0 0.0
  %1201 = vmatmul.mubr.f32.gmra.mrb[0].mxu0 %v882
  %v1202 = vpop.f32.mrb[0].mxu0
  %v1203 = vadd.f32 %v686, %v1202
  %v1204 = vpop.f32.mrb[0].mxu0
  %1205 = vdwg.mxu0
  %v1207 = vrot.slane %v1203, 7
  %v1208 = vrot.slane %v1203, 1
  %v1209 = vrot.slane %v1203, 2
  %v1210 = vrot.slane %v1203, 3
  %v1211 = vrot.slane %v1203, 4
  %v1212 = vrot.slane %v1203, 5
  %v1213 = vrot.slane %v1203, 6
  %v1222 = vmul.f32 %v1072, %v1207
  %v1223 = vmul.f32 %v1073, %v1203
  %v1224 = vmul.f32 %v1074, %v1208
  %v1225 = vmul.f32 %v1075, %v1209
  %v1226 = vmul.f32 %v1076, %v1210
  %v1227 = vmul.f32 %v1077, %v1211
  %v1228 = vmul.f32 %v1078, %v1212
  %v1229 = vmul.f32 %v1079, %v1213
  %v1230 = vadd.f32 %v374, %v1222
  %v1231 = vadd.f32 %v379, %v1223
  %v1232 = vadd.f32 %v384, %v1224
  %v1233 = vadd.f32 %v389, %v1225
  %v1234 = vadd.f32 %v394, %v1226
  %v1235 = vadd.f32 %v399, %v1227
  %v1236 = vadd.f32 %v404, %v1228
  %v1237 = vadd.f32 %v409, %v1229
  %v1238 = vtanh.pop %v1230
  %v1239 = vtanh.pop %v1231
  %v1240 = vtanh.pop %v1232
  %v1241 = vtanh.pop %v1233
  %v1242 = vtanh.pop %v1234
  %v1243 = vtanh.pop %v1235
  %v1244 = vtanh.pop %v1236
  %v1245 = vtanh.pop %v1237
  %v1254 = vrot.slane %v1238, 1
  %v1255 = vrot.slane %v1239, 1
  %v1256 = vrot.slane %v1240, 1
  %v1257 = vrot.slane %v1241, 1
  %v1258 = vrot.slane %v1242, 1
  %v1259 = vrot.slane %v1243, 1
  %v1260 = vrot.slane %v1244, 1
  %v1261 = vrot.slane %v1245, 1
  %v1270 = vsub.f32 %v852, %v1254
  %v1271 = vsub.f32 %v853, %v1255
  %v1272 = vsub.f32 %v854, %v1256
  %v1273 = vsub.f32 %v855, %v1257
  %v1274 = vsub.f32 %v856, %v1258
  %v1275 = vsub.f32 %v857, %v1259
  %v1276 = vsub.f32 %v858, %v1260
  %v1277 = vsub.f32 %v859, %v1261
  %v1286 = vrot.slane %v1270, 7
  %v1287 = vrot.slane %v1271, 7
  %v1288 = vrot.slane %v1272, 7
  %v1289 = vrot.slane %v1273, 7
  %v1290 = vrot.slane %v1274, 7
  %v1291 = vrot.slane %v1275, 7
  %v1292 = vrot.slane %v1276, 7
  %v1293 = vrot.slane %v1277, 7
  %v1302 = vmul.f32 %v1128, %v1286
  %v1303 = vmul.f32 %v1129, %v1287
  %v1304 = vmul.f32 %v1130, %v1288
  %v1305 = vmul.f32 %v1131, %v1289
  %v1306 = vmul.f32 %v1132, %v1290
  %v1307 = vmul.f32 %v1133, %v1291
  %v1308 = vmul.f32 %v1134, %v1292
  %v1309 = vmul.f32 %v1135, %v1293
  %v1310 = vadd.f32 %v1238, %v1302
  %v1311 = vadd.f32 %v1239, %v1303
  %v1312 = vadd.f32 %v1240, %v1304
  %v1313 = vadd.f32 %v1241, %v1305
  %v1314 = vadd.f32 %v1242, %v1306
  %v1315 = vadd.f32 %v1243, %v1307
  %v1316 = vadd.f32 %v1244, %v1308
  %v1317 = vadd.f32 %v1245, %v1309
  %v1326 = vrot.slane %v1310, 1
  %v1327 = vsel %vm806, %v1311, %v1326
  %v1328 = vrot.slane %v1312, 7
  %v1329 = vsel %vm809, %v1328, %v1327
  %v1330 = vrot.slane %v1313, 6
  %v1331 = vsel %vm812, %v1330, %v1329
  %v1332 = vrot.slane %v1314, 5
  %v1333 = vsel %vm815, %v1332, %v1331
  %v1334 = vrot.slane %v1315, 4
  %v1335 = vsel %vm818, %v1334, %v1333
  %v1336 = vrot.slane %v1316, 3
  %v1337 = vsel %vm821, %v1336, %v1335
  %v1338 = vrot.slane %v1317, 2
  %v1339 = vsel %vm824, %v1338, %v1337
  %v1340 = vsel %vm62, %v1339, 0
  %1342 = vmatprep.subr.mxu0 0.0
  %1343 = vmatpush1.msra.mxu0 %v414
  %1344 = vmatprep.subr.mxu0 0.0
  %1345 = vmatpush1.msra.mxu0 %v415
  %1346 = vmatprep.subr.mxu0 0.0
  %1347 = vmatpush1.msra.mxu0 %v416
  %1348 = vmatprep.subr.mxu0 0.0
  %1349 = vmatpush1.msra.mxu0 %v417
  %1350 = vmatprep.subr.mxu0 0.0
  %1351 = vmatpush1.msra.mxu0 0.0
  %1352 = vmatprep.subr.mxu0 0.0
  %1353 = vmatpush1.msra.mxu0 0.0
  %1354 = vmatprep.subr.mxu0 0.0
  %1355 = vmatpush1.msra.mxu0 0.0
  %1356 = vmatprep.subr.mxu0 0.0
  %1357 = vmatpush1.msra.mxu0 0.0
  %1358 = vmatprep.subr.mxu0 0.0
  %1359 = vmatpush1.msra.mxu0 0.0
  %1360 = vmatprep.subr.mxu0 0.0
  %1361 = vmatpush1.msra.mxu0 0.0
  %1362 = vmatprep.subr.mxu0 0.0
  %1363 = vmatpush1.msra.mxu0 0.0
  %1364 = vmatprep.subr.mxu0 0.0
  %1365 = vmatpush1.msra.mxu0 0.0
  %1366 = vmatprep.subr.mxu0 0.0
  %1367 = vmatpush1.msra.mxu0 0.0
  %1368 = vmatprep.subr.mxu0 0.0
  %1369 = vmatpush1.msra.mxu0 0.0
  %1370 = vmatprep.subr.mxu0 0.0
  %1371 = vmatpush1.msra.mxu0 0.0
  %1372 = vmatprep.subr.mxu0 0.0
  %1373 = vmatpush1.msra.mxu0 0.0
  %1374 = vmatprep.subr.mxu0 0.0
  %1375 = vmatpush1.msra.mxu0 0.0
  %1376 = vmatprep.subr.mxu0 0.0
  %1377 = vmatpush1.msra.mxu0 0.0
  %1378 = vmatprep.subr.mxu0 0.0
  %1379 = vmatpush1.msra.mxu0 0.0
  %1380 = vmatprep.subr.mxu0 0.0
  %1381 = vmatpush1.msra.mxu0 0.0
  %1382 = vmatprep.subr.mxu0 0.0
  %1383 = vmatpush1.msra.mxu0 0.0
  %1384 = vmatprep.subr.mxu0 0.0
  %1385 = vmatpush1.msra.mxu0 0.0
  %1386 = vmatprep.subr.mxu0 0.0
  %1387 = vmatpush1.msra.mxu0 0.0
  %1388 = vmatprep.subr.mxu0 0.0
  %1389 = vmatpush1.msra.mxu0 0.0
  %1390 = vmatprep.subr.mxu0 0.0
  %1391 = vmatpush1.msra.mxu0 0.0
  %1392 = vmatprep.subr.mxu0 0.0
  %1393 = vmatpush1.msra.mxu0 0.0
  %1394 = vmatprep.subr.mxu0 0.0
  %1395 = vmatpush1.msra.mxu0 0.0
  %1396 = vmatprep.subr.mxu0 0.0
  %1397 = vmatpush1.msra.mxu0 0.0
  %1398 = vmatprep.subr.mxu0 0.0
  %1399 = vmatpush1.msra.mxu0 0.0
  %1400 = vmatprep.subr.mxu0 0.0
  %1401 = vmatpush1.msra.mxu0 0.0
  %1402 = vmatprep.subr.mxu0 0.0
  %1403 = vmatpush1.msra.mxu0 0.0
  %1404 = vmatprep.subr.mxu0 0.0
  %1405 = vmatpush1.msra.mxu0 0.0
  %1406 = vmatprep.mubr.f32.mxu0 0.0
  %1407 = vmatmul.mubr.f32.gmra.mrb[0].mxu0 %v1340
  %v1408 = vpop.f32.mrb[0].mxu0
  %v1409 = vadd.f32 0.0, %v1408
  %v1410 = vpop.f32.mrb[0].mxu0
  %1411 = vdwg.mxu0
  %1412 = vmatprep.subr.mxu0 0.0
  %1413 = vmatpush1.msra.mxu0 %v492
  %1414 = vmatprep.subr.mxu0 0.0
  %1415 = vmatpush1.msra.mxu0 %v493
  %1416 = vmatprep.subr.mxu0 0.0
  %1417 = vmatpush1.msra.mxu0 %v494
  %1418 = vmatprep.subr.mxu0 0.0
  %1419 = vmatpush1.msra.mxu0 %v495
  %1420 = vmatprep.subr.mxu0 0.0
  %1421 = vmatpush1.msra.mxu0 0.0
  %1422 = vmatprep.subr.mxu0 0.0
  %1423 = vmatpush1.msra.mxu0 0.0
  %1424 = vmatprep.subr.mxu0 0.0
  %1425 = vmatpush1.msra.mxu0 0.0
  %1426 = vmatprep.subr.mxu0 0.0
  %1427 = vmatpush1.msra.mxu0 0.0
  %1428 = vmatprep.subr.mxu0 0.0
  %1429 = vmatpush1.msra.mxu0 0.0
  %1430 = vmatprep.subr.mxu0 0.0
  %1431 = vmatpush1.msra.mxu0 0.0
  %1432 = vmatprep.subr.mxu0 0.0
  %1433 = vmatpush1.msra.mxu0 0.0
  %1434 = vmatprep.subr.mxu0 0.0
  %1435 = vmatpush1.msra.mxu0 0.0
  %1436 = vmatprep.subr.mxu0 0.0
  %1437 = vmatpush1.msra.mxu0 0.0
  %1438 = vmatprep.subr.mxu0 0.0
  %1439 = vmatpush1.msra.mxu0 0.0
  %1440 = vmatprep.subr.mxu0 0.0
  %1441 = vmatpush1.msra.mxu0 0.0
  %1442 = vmatprep.subr.mxu0 0.0
  %1443 = vmatpush1.msra.mxu0 0.0
  %1444 = vmatprep.subr.mxu0 0.0
  %1445 = vmatpush1.msra.mxu0 0.0
  %1446 = vmatprep.subr.mxu0 0.0
  %1447 = vmatpush1.msra.mxu0 0.0
  %1448 = vmatprep.subr.mxu0 0.0
  %1449 = vmatpush1.msra.mxu0 0.0
  %1450 = vmatprep.subr.mxu0 0.0
  %1451 = vmatpush1.msra.mxu0 0.0
  %1452 = vmatprep.subr.mxu0 0.0
  %1453 = vmatpush1.msra.mxu0 0.0
  %1454 = vmatprep.subr.mxu0 0.0
  %1455 = vmatpush1.msra.mxu0 0.0
  %1456 = vmatprep.subr.mxu0 0.0
  %1457 = vmatpush1.msra.mxu0 0.0
  %1458 = vmatprep.subr.mxu0 0.0
  %1459 = vmatpush1.msra.mxu0 0.0
  %1460 = vmatprep.subr.mxu0 0.0
  %1461 = vmatpush1.msra.mxu0 0.0
  %1462 = vmatprep.subr.mxu0 0.0
  %1463 = vmatpush1.msra.mxu0 0.0
  %1464 = vmatprep.subr.mxu0 0.0
  %1465 = vmatpush1.msra.mxu0 0.0
  %1466 = vmatprep.subr.mxu0 0.0
  %1467 = vmatpush1.msra.mxu0 0.0
  %1468 = vmatprep.subr.mxu0 0.0
  %1469 = vmatpush1.msra.mxu0 0.0
  %1470 = vmatprep.subr.mxu0 0.0
  %1471 = vmatpush1.msra.mxu0 0.0
  %1472 = vmatprep.subr.mxu0 0.0
  %1473 = vmatpush1.msra.mxu0 0.0
  %1474 = vmatprep.subr.mxu0 0.0
  %1475 = vmatpush1.msra.mxu0 0.0
  %1476 = vmatprep.mubr.f32.mxu0 0.0
  %1477 = vmatmul.mubr.f32.gmra.mrb[0].mxu0 %v1340
  %v1478 = vpop.f32.mrb[0].mxu0
  %v1479 = vadd.f32 0.0, %v1478
  %v1480 = vpop.f32.mrb[0].mxu0
  %1481 = vdwg.mxu0
  %v1483 = vrot.slane %v1409, 6
  %v1484 = vrot.slane %v1409, 7
  %v1485 = vrot.slane %v1409, 1
  %v1486 = vrot.slane %v1409, 2
  %v1487 = vrot.slane %v1409, 3
  %v1488 = vrot.slane %v1409, 4
  %v1489 = vrot.slane %v1409, 5
  %v1498 = vadd.f32 %v154, %v1483
  %v1499 = vadd.f32 %v159, %v1484
  %v1500 = vadd.f32 %v164, %v1409
  %v1501 = vadd.f32 %v169, %v1485
  %v1502 = vadd.f32 %v174, %v1486
  %v1503 = vadd.f32 %v179, %v1487
  %v1504 = vadd.f32 %v184, %v1488
  %v1505 = vadd.f32 %v189, %v1489
  %v1506 = vmul.f32 %v1498, 0.5
  %v1507 = vmul.f32 %v1499, 0.5
  %v1508 = vmul.f32 %v1500, 0.5
  %v1509 = vmul.f32 %v1501, 0.5
  %v1510 = vmul.f32 %v1502, 0.5
  %v1511 = vmul.f32 %v1503, 0.5
  %v1512 = vmul.f32 %v1504, 0.5
  %v1513 = vmul.f32 %v1505, 0.5
  %v1514 = vtanh.pop %v1506
  %v1515 = vtanh.pop %v1507
  %v1516 = vtanh.pop %v1508
  %v1517 = vtanh.pop %v1509
  %v1518 = vtanh.pop %v1510
  %v1519 = vtanh.pop %v1511
  %v1520 = vtanh.pop %v1512
  %v1521 = vtanh.pop %v1513
  %v1522 = vmul.f32 %v1514, 0.5
  %v1523 = vmul.f32 %v1515, 0.5
  %v1524 = vmul.f32 %v1516, 0.5
  %v1525 = vmul.f32 %v1517, 0.5
  %v1526 = vmul.f32 %v1518, 0.5
  %v1527 = vmul.f32 %v1519, 0.5
  %v1528 = vmul.f32 %v1520, 0.5
  %v1529 = vmul.f32 %v1521, 0.5
  %v1530 = vadd.f32 %v1522, 0.5
  %v1531 = vadd.f32 %v1523, 0.5
  %v1532 = vadd.f32 %v1524, 0.5
  %v1533 = vadd.f32 %v1525, 0.5
  %v1534 = vadd.f32 %v1526, 0.5
  %v1535 = vadd.f32 %v1527, 0.5
  %v1536 = vadd.f32 %v1528, 0.5
  %v1537 = vadd.f32 %v1529, 0.5
  %v1539 = vrot.slane %v1479, 6
  %v1540 = vrot.slane %v1479, 7
  %v1541 = vrot.slane %v1479, 1
  %v1542 = vrot.slane %v1479, 2
  %v1543 = vrot.slane %v1479, 3
  %v1544 = vrot.slane %v1479, 4
  %v1545 = vrot.slane %v1479, 5
  %v1554 = vadd.f32 %v264, %v1539
  %v1555 = vadd.f32 %v269, %v1540
  %v1556 = vadd.f32 %v274, %v1479
  %v1557 = vadd.f32 %v279, %v1541
  %v1558 = vadd.f32 %v284, %v1542
  %v1559 = vadd.f32 %v289, %v1543
  %v1560 = vadd.f32 %v294, %v1544
  %v1561 = vadd.f32 %v299, %v1545
  %v1562 = vmul.f32 %v1554, 0.5
  %v1563 = vmul.f32 %v1555, 0.5
  %v1564 = vmul.f32 %v1556, 0.5
  %v1565 = vmul.f32 %v1557, 0.5
  %v1566 = vmul.f32 %v1558, 0.5
  %v1567 = vmul.f32 %v1559, 0.5
  %v1568 = vmul.f32 %v1560, 0.5
  %v1569 = vmul.f32 %v1561, 0.5
  %v1570 = vtanh.pop %v1562
  %v1571 = vtanh.pop %v1563
  %v1572 = vtanh.pop %v1564
  %v1573 = vtanh.pop %v1565
  %v1574 = vtanh.pop %v1566
  %v1575 = vtanh.pop %v1567
  %v1576 = vtanh.pop %v1568
  %v1577 = vtanh.pop %v1569
  %v1578 = vmul.f32 %v1570, 0.5
  %v1579 = vmul.f32 %v1571, 0.5
  %v1580 = vmul.f32 %v1572, 0.5
  %v1581 = vmul.f32 %v1573, 0.5
  %v1582 = vmul.f32 %v1574, 0.5
  %v1583 = vmul.f32 %v1575, 0.5
  %v1584 = vmul.f32 %v1576, 0.5
  %v1585 = vmul.f32 %v1577, 0.5
  %v1586 = vadd.f32 %v1578, 0.5
  %v1587 = vadd.f32 %v1579, 0.5
  %v1588 = vadd.f32 %v1580, 0.5
  %v1589 = vadd.f32 %v1581, 0.5
  %v1590 = vadd.f32 %v1582, 0.5
  %v1591 = vadd.f32 %v1583, 0.5
  %v1592 = vadd.f32 %v1584, 0.5
  %v1593 = vadd.f32 %v1585, 0.5
  %1594 = vmatprep.subr.mxu0 0.0
  %1595 = vmatpush1.msra.mxu0 %v567
  %1596 = vmatprep.subr.mxu0 0.0
  %1597 = vmatpush1.msra.mxu0 %v568
  %1598 = vmatprep.subr.mxu0 0.0
  %1599 = vmatpush1.msra.mxu0 %v569
  %1600 = vmatprep.subr.mxu0 0.0
  %1601 = vmatpush1.msra.mxu0 %v570
  %1602 = vmatprep.subr.mxu0 0.0
  %1603 = vmatpush1.msra.mxu0 0.0
  %1604 = vmatprep.subr.mxu0 0.0
  %1605 = vmatpush1.msra.mxu0 0.0
  %1606 = vmatprep.subr.mxu0 0.0
  %1607 = vmatpush1.msra.mxu0 0.0
  %1608 = vmatprep.subr.mxu0 0.0
  %1609 = vmatpush1.msra.mxu0 0.0
  %1610 = vmatprep.subr.mxu0 0.0
  %1611 = vmatpush1.msra.mxu0 0.0
  %1612 = vmatprep.subr.mxu0 0.0
  %1613 = vmatpush1.msra.mxu0 0.0
  %1614 = vmatprep.subr.mxu0 0.0
  %1615 = vmatpush1.msra.mxu0 0.0
  %1616 = vmatprep.subr.mxu0 0.0
  %1617 = vmatpush1.msra.mxu0 0.0
  %1618 = vmatprep.subr.mxu0 0.0
  %1619 = vmatpush1.msra.mxu0 0.0
  %1620 = vmatprep.subr.mxu0 0.0
  %1621 = vmatpush1.msra.mxu0 0.0
  %1622 = vmatprep.subr.mxu0 0.0
  %1623 = vmatpush1.msra.mxu0 0.0
  %1624 = vmatprep.subr.mxu0 0.0
  %1625 = vmatpush1.msra.mxu0 0.0
  %1626 = vmatprep.subr.mxu0 0.0
  %1627 = vmatpush1.msra.mxu0 0.0
  %1628 = vmatprep.subr.mxu0 0.0
  %1629 = vmatpush1.msra.mxu0 0.0
  %1630 = vmatprep.subr.mxu0 0.0
  %1631 = vmatpush1.msra.mxu0 0.0
  %1632 = vmatprep.subr.mxu0 0.0
  %1633 = vmatpush1.msra.mxu0 0.0
  %1634 = vmatprep.subr.mxu0 0.0
  %1635 = vmatpush1.msra.mxu0 0.0
  %1636 = vmatprep.subr.mxu0 0.0
  %1637 = vmatpush1.msra.mxu0 0.0
  %1638 = vmatprep.subr.mxu0 0.0
  %1639 = vmatpush1.msra.mxu0 0.0
  %1640 = vmatprep.subr.mxu0 0.0
  %1641 = vmatpush1.msra.mxu0 0.0
  %1642 = vmatprep.subr.mxu0 0.0
  %1643 = vmatpush1.msra.mxu0 0.0
  %1644 = vmatprep.subr.mxu0 0.0
  %1645 = vmatpush1.msra.mxu0 0.0
  %1646 = vmatprep.subr.mxu0 0.0
  %1647 = vmatpush1.msra.mxu0 0.0
  %1648 = vmatprep.subr.mxu0 0.0
  %1649 = vmatpush1.msra.mxu0 0.0
  %1650 = vmatprep.subr.mxu0 0.0
  %1651 = vmatpush1.msra.mxu0 0.0
  %1652 = vmatprep.subr.mxu0 0.0
  %1653 = vmatpush1.msra.mxu0 0.0
  %1654 = vmatprep.subr.mxu0 0.0
  %1655 = vmatpush1.msra.mxu0 0.0
  %1656 = vmatprep.subr.mxu0 0.0
  %1657 = vmatpush1.msra.mxu0 0.0
  %1658 = vmatprep.mubr.f32.mxu0 0.0
  %1659 = vmatmul.mubr.f32.gmra.mrb[0].mxu0 %v1340
  %v1660 = vpop.f32.mrb[0].mxu0
  %v1661 = vadd.f32 %v686, %v1660
  %v1662 = vpop.f32.mrb[0].mxu0
  %1663 = vdwg.mxu0
  %v1665 = vrot.slane %v1661, 6
  %v1666 = vrot.slane %v1661, 7
  %v1667 = vrot.slane %v1661, 1
  %v1668 = vrot.slane %v1661, 2
  %v1669 = vrot.slane %v1661, 3
  %v1670 = vrot.slane %v1661, 4
  %v1671 = vrot.slane %v1661, 5
  %v1680 = vmul.f32 %v1530, %v1665
  %v1681 = vmul.f32 %v1531, %v1666
  %v1682 = vmul.f32 %v1532, %v1661
  %v1683 = vmul.f32 %v1533, %v1667
  %v1684 = vmul.f32 %v1534, %v1668
  %v1685 = vmul.f32 %v1535, %v1669
  %v1686 = vmul.f32 %v1536, %v1670
  %v1687 = vmul.f32 %v1537, %v1671
  %v1688 = vadd.f32 %v374, %v1680
  %v1689 = vadd.f32 %v379, %v1681
  %v1690 = vadd.f32 %v384, %v1682
  %v1691 = vadd.f32 %v389, %v1683
  %v1692 = vadd.f32 %v394, %v1684
  %v1693 = vadd.f32 %v399, %v1685
  %v1694 = vadd.f32 %v404, %v1686
  %v1695 = vadd.f32 %v409, %v1687
  %v1696 = vtanh.pop %v1688
  %v1697 = vtanh.pop %v1689
  %v1698 = vtanh.pop %v1690
  %v1699 = vtanh.pop %v1691
  %v1700 = vtanh.pop %v1692
  %v1701 = vtanh.pop %v1693
  %v1702 = vtanh.pop %v1694
  %v1703 = vtanh.pop %v1695
  %v1712 = vrot.slane %v1696, 1
  %v1713 = vrot.slane %v1697, 1
  %v1714 = vrot.slane %v1698, 1
  %v1715 = vrot.slane %v1699, 1
  %v1716 = vrot.slane %v1700, 1
  %v1717 = vrot.slane %v1701, 1
  %v1718 = vrot.slane %v1702, 1
  %v1719 = vrot.slane %v1703, 1
  %v1728 = vsub.f32 %v1310, %v1712
  %v1729 = vsub.f32 %v1311, %v1713
  %v1730 = vsub.f32 %v1312, %v1714
  %v1731 = vsub.f32 %v1313, %v1715
  %v1732 = vsub.f32 %v1314, %v1716
  %v1733 = vsub.f32 %v1315, %v1717
  %v1734 = vsub.f32 %v1316, %v1718
  %v1735 = vsub.f32 %v1317, %v1719
  %v1744 = vrot.slane %v1728, 7
  %v1745 = vrot.slane %v1729, 7
  %v1746 = vrot.slane %v1730, 7
  %v1747 = vrot.slane %v1731, 7
  %v1748 = vrot.slane %v1732, 7
  %v1749 = vrot.slane %v1733, 7
  %v1750 = vrot.slane %v1734, 7
  %v1751 = vrot.slane %v1735, 7
  %v1760 = vmul.f32 %v1586, %v1744
  %v1761 = vmul.f32 %v1587, %v1745
  %v1762 = vmul.f32 %v1588, %v1746
  %v1763 = vmul.f32 %v1589, %v1747
  %v1764 = vmul.f32 %v1590, %v1748
  %v1765 = vmul.f32 %v1591, %v1749
  %v1766 = vmul.f32 %v1592, %v1750
  %v1767 = vmul.f32 %v1593, %v1751
  %v1768 = vadd.f32 %v1696, %v1760
  %v1769 = vadd.f32 %v1697, %v1761
  %v1770 = vadd.f32 %v1698, %v1762
  %v1771 = vadd.f32 %v1699, %v1763
  %v1772 = vadd.f32 %v1700, %v1764
  %v1773 = vadd.f32 %v1701, %v1765
  %v1774 = vadd.f32 %v1702, %v1766
  %v1775 = vadd.f32 %v1703, %v1767
  %v1784 = vrot.slane %v1768, 2
  %v1785 = vrot.slane %v1769, 1
  %v1786 = vsel %vm806, %v1785, %v1784
  %v1787 = vsel %vm809, %v1770, %v1786
  %v1788 = vrot.slane %v1771, 7
  %v1789 = vsel %vm812, %v1788, %v1787
  %v1790 = vrot.slane %v1772, 6
  %v1791 = vsel %vm815, %v1790, %v1789
  %v1792 = vrot.slane %v1773, 5
  %v1793 = vsel %vm818, %v1792, %v1791
  %v1794 = vrot.slane %v1774, 4
  %v1795 = vsel %vm821, %v1794, %v1793
  %v1796 = vrot.slane %v1775, 3
  %v1797 = vsel %vm824, %v1796, %v1795
  %v1798 = vsel %vm62, %v1797, 0
  %1800 = vmatprep.subr.mxu0 0.0
  %1801 = vmatpush1.msra.mxu0 %v414
  %1802 = vmatprep.subr.mxu0 0.0
  %1803 = vmatpush1.msra.mxu0 %v415
  %1804 = vmatprep.subr.mxu0 0.0
  %1805 = vmatpush1.msra.mxu0 %v416
  %1806 = vmatprep.subr.mxu0 0.0
  %1807 = vmatpush1.msra.mxu0 %v417
  %1808 = vmatprep.subr.mxu0 0.0
  %1809 = vmatpush1.msra.mxu0 0.0
  %1810 = vmatprep.subr.mxu0 0.0
  %1811 = vmatpush1.msra.mxu0 0.0
  %1812 = vmatprep.subr.mxu0 0.0
  %1813 = vmatpush1.msra.mxu0 0.0
  %1814 = vmatprep.subr.mxu0 0.0
  %1815 = vmatpush1.msra.mxu0 0.0
  %1816 = vmatprep.subr.mxu0 0.0
  %1817 = vmatpush1.msra.mxu0 0.0
  %1818 = vmatprep.subr.mxu0 0.0
  %1819 = vmatpush1.msra.mxu0 0.0
  %1820 = vmatprep.subr.mxu0 0.0
  %1821 = vmatpush1.msra.mxu0 0.0
  %1822 = vmatprep.subr.mxu0 0.0
  %1823 = vmatpush1.msra.mxu0 0.0
  %1824 = vmatprep.subr.mxu0 0.0
  %1825 = vmatpush1.msra.mxu0 0.0
  %1826 = vmatprep.subr.mxu0 0.0
  %1827 = vmatpush1.msra.mxu0 0.0
  %1828 = vmatprep.subr.mxu0 0.0
  %1829 = vmatpush1.msra.mxu0 0.0
  %1830 = vmatprep.subr.mxu0 0.0
  %1831 = vmatpush1.msra.mxu0 0.0
  %1832 = vmatprep.subr.mxu0 0.0
  %1833 = vmatpush1.msra.mxu0 0.0
  %1834 = vmatprep.subr.mxu0 0.0
  %1835 = vmatpush1.msra.mxu0 0.0
  %1836 = vmatprep.subr.mxu0 0.0
  %1837 = vmatpush1.msra.mxu0 0.0
  %1838 = vmatprep.subr.mxu0 0.0
  %1839 = vmatpush1.msra.mxu0 0.0
  %1840 = vmatprep.subr.mxu0 0.0
  %1841 = vmatpush1.msra.mxu0 0.0
  %1842 = vmatprep.subr.mxu0 0.0
  %1843 = vmatpush1.msra.mxu0 0.0
  %1844 = vmatprep.subr.mxu0 0.0
  %1845 = vmatpush1.msra.mxu0 0.0
  %1846 = vmatprep.subr.mxu0 0.0
  %1847 = vmatpush1.msra.mxu0 0.0
  %1848 = vmatprep.subr.mxu0 0.0
  %1849 = vmatpush1.msra.mxu0 0.0
  %1850 = vmatprep.subr.mxu0 0.0
  %1851 = vmatpush1.msra.mxu0 0.0
  %1852 = vmatprep.subr.mxu0 0.0
  %1853 = vmatpush1.msra.mxu0 0.0
  %1854 = vmatprep.subr.mxu0 0.0
  %1855 = vmatpush1.msra.mxu0 0.0
  %1856 = vmatprep.subr.mxu0 0.0
  %1857 = vmatpush1.msra.mxu0 0.0
  %1858 = vmatprep.subr.mxu0 0.0
  %1859 = vmatpush1.msra.mxu0 0.0
  %1860 = vmatprep.subr.mxu0 0.0
  %1861 = vmatpush1.msra.mxu0 0.0
  %1862 = vmatprep.subr.mxu0 0.0
  %1863 = vmatpush1.msra.mxu0 0.0
  %1864 = vmatprep.mubr.f32.mxu0 0.0
  %1865 = vmatmul.mubr.f32.gmra.mrb[0].mxu0 %v1798
  %v1866 = vpop.f32.mrb[0].mxu0
  %v1867 = vadd.f32 0.0, %v1866
  %v1868 = vpop.f32.mrb[0].mxu0
  %1869 = vdwg.mxu0
  %1870 = vmatprep.subr.mxu0 0.0
  %1871 = vmatpush1.msra.mxu0 %v492
  %1872 = vmatprep.subr.mxu0 0.0
  %1873 = vmatpush1.msra.mxu0 %v493
  %1874 = vmatprep.subr.mxu0 0.0
  %1875 = vmatpush1.msra.mxu0 %v494
  %1876 = vmatprep.subr.mxu0 0.0
  %1877 = vmatpush1.msra.mxu0 %v495
  %1878 = vmatprep.subr.mxu0 0.0
  %1879 = vmatpush1.msra.mxu0 0.0
  %1880 = vmatprep.subr.mxu0 0.0
  %1881 = vmatpush1.msra.mxu0 0.0
  %1882 = vmatprep.subr.mxu0 0.0
  %1883 = vmatpush1.msra.mxu0 0.0
  %1884 = vmatprep.subr.mxu0 0.0
  %1885 = vmatpush1.msra.mxu0 0.0
  %1886 = vmatprep.subr.mxu0 0.0
  %1887 = vmatpush1.msra.mxu0 0.0
  %1888 = vmatprep.subr.mxu0 0.0
  %1889 = vmatpush1.msra.mxu0 0.0
  %1890 = vmatprep.subr.mxu0 0.0
  %1891 = vmatpush1.msra.mxu0 0.0
  %1892 = vmatprep.subr.mxu0 0.0
  %1893 = vmatpush1.msra.mxu0 0.0
  %1894 = vmatprep.subr.mxu0 0.0
  %1895 = vmatpush1.msra.mxu0 0.0
  %1896 = vmatprep.subr.mxu0 0.0
  %1897 = vmatpush1.msra.mxu0 0.0
  %1898 = vmatprep.subr.mxu0 0.0
  %1899 = vmatpush1.msra.mxu0 0.0
  %1900 = vmatprep.subr.mxu0 0.0
  %1901 = vmatpush1.msra.mxu0 0.0
  %1902 = vmatprep.subr.mxu0 0.0
  %1903 = vmatpush1.msra.mxu0 0.0
  %1904 = vmatprep.subr.mxu0 0.0
  %1905 = vmatpush1.msra.mxu0 0.0
  %1906 = vmatprep.subr.mxu0 0.0
  %1907 = vmatpush1.msra.mxu0 0.0
  %1908 = vmatprep.subr.mxu0 0.0
  %1909 = vmatpush1.msra.mxu0 0.0
  %1910 = vmatprep.subr.mxu0 0.0
  %1911 = vmatpush1.msra.mxu0 0.0
  %1912 = vmatprep.subr.mxu0 0.0
  %1913 = vmatpush1.msra.mxu0 0.0
  %1914 = vmatprep.subr.mxu0 0.0
  %1915 = vmatpush1.msra.mxu0 0.0
  %1916 = vmatprep.subr.mxu0 0.0
  %1917 = vmatpush1.msra.mxu0 0.0
  %1918 = vmatprep.subr.mxu0 0.0
  %1919 = vmatpush1.msra.mxu0 0.0
  %1920 = vmatprep.subr.mxu0 0.0
  %1921 = vmatpush1.msra.mxu0 0.0
  %1922 = vmatprep.subr.mxu0 0.0
  %1923 = vmatpush1.msra.mxu0 0.0
  %1924 = vmatprep.subr.mxu0 0.0
  %1925 = vmatpush1.msra.mxu0 0.0
  %1926 = vmatprep.subr.mxu0 0.0
  %1927 = vmatpush1.msra.mxu0 0.0
  %1928 = vmatprep.subr.mxu0 0.0
  %1929 = vmatpush1.msra.mxu0 0.0
  %1930 = vmatprep.subr.mxu0 0.0
  %1931 = vmatpush1.msra.mxu0 0.0
  %1932 = vmatprep.subr.mxu0 0.0
  %1933 = vmatpush1.msra.mxu0 0.0
  %1934 = vmatprep.mubr.f32.mxu0 0.0
  %1935 = vmatmul.mubr.f32.gmra.mrb[0].mxu0 %v1798
  %v1936 = vpop.f32.mrb[0].mxu0
  %v1937 = vadd.f32 0.0, %v1936
  %v1938 = vpop.f32.mrb[0].mxu0
  %1939 = vdwg.mxu0
  %v1941 = vrot.slane %v1867, 5
  %v1942 = vrot.slane %v1867, 6
  %v1943 = vrot.slane %v1867, 7
  %v1944 = vrot.slane %v1867, 1
  %v1945 = vrot.slane %v1867, 2
  %v1946 = vrot.slane %v1867, 3
  %v1947 = vrot.slane %v1867, 4
  %v1956 = vadd.f32 %v154, %v1941
  %v1957 = vadd.f32 %v159, %v1942
  %v1958 = vadd.f32 %v164, %v1943
  %v1959 = vadd.f32 %v169, %v1867
  %v1960 = vadd.f32 %v174, %v1944
  %v1961 = vadd.f32 %v179, %v1945
  %v1962 = vadd.f32 %v184, %v1946
  %v1963 = vadd.f32 %v189, %v1947
  %v1964 = vmul.f32 %v1956, 0.5
  %v1965 = vmul.f32 %v1957, 0.5
  %v1966 = vmul.f32 %v1958, 0.5
  %v1967 = vmul.f32 %v1959, 0.5
  %v1968 = vmul.f32 %v1960, 0.5
  %v1969 = vmul.f32 %v1961, 0.5
  %v1970 = vmul.f32 %v1962, 0.5
  %v1971 = vmul.f32 %v1963, 0.5
  %v1972 = vtanh.pop %v1964
  %v1973 = vtanh.pop %v1965
  %v1974 = vtanh.pop %v1966
  %v1975 = vtanh.pop %v1967
  %v1976 = vtanh.pop %v1968
  %v1977 = vtanh.pop %v1969
  %v1978 = vtanh.pop %v1970
  %v1979 = vtanh.pop %v1971
  %v1980 = vmul.f32 %v1972, 0.5
  %v1981 = vmul.f32 %v1973, 0.5
  %v1982 = vmul.f32 %v1974, 0.5
  %v1983 = vmul.f32 %v1975, 0.5
  %v1984 = vmul.f32 %v1976, 0.5
  %v1985 = vmul.f32 %v1977, 0.5
  %v1986 = vmul.f32 %v1978, 0.5
  %v1987 = vmul.f32 %v1979, 0.5
  %v1988 = vadd.f32 %v1980, 0.5
  %v1989 = vadd.f32 %v1981, 0.5
  %v1990 = vadd.f32 %v1982, 0.5
  %v1991 = vadd.f32 %v1983, 0.5
  %v1992 = vadd.f32 %v1984, 0.5
  %v1993 = vadd.f32 %v1985, 0.5
  %v1994 = vadd.f32 %v1986, 0.5
  %v1995 = vadd.f32 %v1987, 0.5
  %v1997 = vrot.slane %v1937, 5
  %v1998 = vrot.slane %v1937, 6
  %v1999 = vrot.slane %v1937, 7
  %v2000 = vrot.slane %v1937, 1
  %v2001 = vrot.slane %v1937, 2
  %v2002 = vrot.slane %v1937, 3
  %v2003 = vrot.slane %v1937, 4
  %v2012 = vadd.f32 %v264, %v1997
  %v2013 = vadd.f32 %v269, %v1998
  %v2014 = vadd.f32 %v274, %v1999
  %v2015 = vadd.f32 %v279, %v1937
  %v2016 = vadd.f32 %v284, %v2000
  %v2017 = vadd.f32 %v289, %v2001
  %v2018 = vadd.f32 %v294, %v2002
  %v2019 = vadd.f32 %v299, %v2003
  %v2020 = vmul.f32 %v2012, 0.5
  %v2021 = vmul.f32 %v2013, 0.5
  %v2022 = vmul.f32 %v2014, 0.5
  %v2023 = vmul.f32 %v2015, 0.5
  %v2024 = vmul.f32 %v2016, 0.5
  %v2025 = vmul.f32 %v2017, 0.5
  %v2026 = vmul.f32 %v2018, 0.5
  %v2027 = vmul.f32 %v2019, 0.5
  %v2028 = vtanh.pop %v2020
  %v2029 = vtanh.pop %v2021
  %v2030 = vtanh.pop %v2022
  %v2031 = vtanh.pop %v2023
  %v2032 = vtanh.pop %v2024
  %v2033 = vtanh.pop %v2025
  %v2034 = vtanh.pop %v2026
  %v2035 = vtanh.pop %v2027
  %v2036 = vmul.f32 %v2028, 0.5
  %v2037 = vmul.f32 %v2029, 0.5
  %v2038 = vmul.f32 %v2030, 0.5
  %v2039 = vmul.f32 %v2031, 0.5
  %v2040 = vmul.f32 %v2032, 0.5
  %v2041 = vmul.f32 %v2033, 0.5
  %v2042 = vmul.f32 %v2034, 0.5
  %v2043 = vmul.f32 %v2035, 0.5
  %v2044 = vadd.f32 %v2036, 0.5
  %v2045 = vadd.f32 %v2037, 0.5
  %v2046 = vadd.f32 %v2038, 0.5
  %v2047 = vadd.f32 %v2039, 0.5
  %v2048 = vadd.f32 %v2040, 0.5
  %v2049 = vadd.f32 %v2041, 0.5
  %v2050 = vadd.f32 %v2042, 0.5
  %v2051 = vadd.f32 %v2043, 0.5
  %2052 = vmatprep.subr.mxu0 0.0
  %2053 = vmatpush1.msra.mxu0 %v567
  %2054 = vmatprep.subr.mxu0 0.0
  %2055 = vmatpush1.msra.mxu0 %v568
  %2056 = vmatprep.subr.mxu0 0.0
  %2057 = vmatpush1.msra.mxu0 %v569
  %2058 = vmatprep.subr.mxu0 0.0
  %2059 = vmatpush1.msra.mxu0 %v570
  %2060 = vmatprep.subr.mxu0 0.0
  %2061 = vmatpush1.msra.mxu0 0.0
  %2062 = vmatprep.subr.mxu0 0.0
  %2063 = vmatpush1.msra.mxu0 0.0
  %2064 = vmatprep.subr.mxu0 0.0
  %2065 = vmatpush1.msra.mxu0 0.0
  %2066 = vmatprep.subr.mxu0 0.0
  %2067 = vmatpush1.msra.mxu0 0.0
  %2068 = vmatprep.subr.mxu0 0.0
  %2069 = vmatpush1.msra.mxu0 0.0
  %2070 = vmatprep.subr.mxu0 0.0
  %2071 = vmatpush1.msra.mxu0 0.0
  %2072 = vmatprep.subr.mxu0 0.0
  %2073 = vmatpush1.msra.mxu0 0.0
  %2074 = vmatprep.subr.mxu0 0.0
  %2075 = vmatpush1.msra.mxu0 0.0
  %2076 = vmatprep.subr.mxu0 0.0
  %2077 = vmatpush1.msra.mxu0 0.0
  %2078 = vmatprep.subr.mxu0 0.0
  %2079 = vmatpush1.msra.mxu0 0.0
  %2080 = vmatprep.subr.mxu0 0.0
  %2081 = vmatpush1.msra.mxu0 0.0
  %2082 = vmatprep.subr.mxu0 0.0
  %2083 = vmatpush1.msra.mxu0 0.0
  %2084 = vmatprep.subr.mxu0 0.0
  %2085 = vmatpush1.msra.mxu0 0.0
  %2086 = vmatprep.subr.mxu0 0.0
  %2087 = vmatpush1.msra.mxu0 0.0
  %2088 = vmatprep.subr.mxu0 0.0
  %2089 = vmatpush1.msra.mxu0 0.0
  %2090 = vmatprep.subr.mxu0 0.0
  %2091 = vmatpush1.msra.mxu0 0.0
  %2092 = vmatprep.subr.mxu0 0.0
  %2093 = vmatpush1.msra.mxu0 0.0
  %2094 = vmatprep.subr.mxu0 0.0
  %2095 = vmatpush1.msra.mxu0 0.0
  %2096 = vmatprep.subr.mxu0 0.0
  %2097 = vmatpush1.msra.mxu0 0.0
  %2098 = vmatprep.subr.mxu0 0.0
  %2099 = vmatpush1.msra.mxu0 0.0
  %2100 = vmatprep.subr.mxu0 0.0
  %2101 = vmatpush1.msra.mxu0 0.0
  %2102 = vmatprep.subr.mxu0 0.0
  %2103 = vmatpush1.msra.mxu0 0.0
  %2104 = vmatprep.subr.mxu0 0.0
  %2105 = vmatpush1.msra.mxu0 0.0
  %2106 = vmatprep.subr.mxu0 0.0
  %2107 = vmatpush1.msra.mxu0 0.0
  %2108 = vmatprep.subr.mxu0 0.0
  %2109 = vmatpush1.msra.mxu0 0.0
  %2110 = vmatprep.subr.mxu0 0.0
  %2111 = vmatpush1.msra.mxu0 0.0
  %2112 = vmatprep.subr.mxu0 0.0
  %2113 = vmatpush1.msra.mxu0 0.0
  %2114 = vmatprep.subr.mxu0 0.0
  %2115 = vmatpush1.msra.mxu0 0.0
  %2116 = vmatprep.mubr.f32.mxu0 0.0
  %2117 = vmatmul.mubr.f32.gmra.mrb[0].mxu0 %v1798
  %v2118 = vpop.f32.mrb[0].mxu0
  %v2119 = vadd.f32 %v686, %v2118
  %v2120 = vpop.f32.mrb[0].mxu0
  %2121 = vdwg.mxu0
  %v2123 = vrot.slane %v2119, 5
  %v2124 = vrot.slane %v2119, 6
  %v2125 = vrot.slane %v2119, 7
  %v2126 = vrot.slane %v2119, 1
  %v2127 = vrot.slane %v2119, 2
  %v2128 = vrot.slane %v2119, 3
  %v2129 = vrot.slane %v2119, 4
  %v2138 = vmul.f32 %v1988, %v2123
  %v2139 = vmul.f32 %v1989, %v2124
  %v2140 = vmul.f32 %v1990, %v2125
  %v2141 = vmul.f32 %v1991, %v2119
  %v2142 = vmul.f32 %v1992, %v2126
  %v2143 = vmul.f32 %v1993, %v2127
  %v2144 = vmul.f32 %v1994, %v2128
  %v2145 = vmul.f32 %v1995, %v2129
  %v2146 = vadd.f32 %v374, %v2138
  %v2147 = vadd.f32 %v379, %v2139
  %v2148 = vadd.f32 %v384, %v2140
  %v2149 = vadd.f32 %v389, %v2141
  %v2150 = vadd.f32 %v394, %v2142
  %v2151 = vadd.f32 %v399, %v2143
  %v2152 = vadd.f32 %v404, %v2144
  %v2153 = vadd.f32 %v409, %v2145
  %v2154 = vtanh.pop %v2146
  %v2155 = vtanh.pop %v2147
  %v2156 = vtanh.pop %v2148
  %v2157 = vtanh.pop %v2149
  %v2158 = vtanh.pop %v2150
  %v2159 = vtanh.pop %v2151
  %v2160 = vtanh.pop %v2152
  %v2161 = vtanh.pop %v2153
  %v2170 = vrot.slane %v2154, 1
  %v2171 = vrot.slane %v2155, 1
  %v2172 = vrot.slane %v2156, 1
  %v2173 = vrot.slane %v2157, 1
  %v2174 = vrot.slane %v2158, 1
  %v2175 = vrot.slane %v2159, 1
  %v2176 = vrot.slane %v2160, 1
  %v2177 = vrot.slane %v2161, 1
  %v2186 = vsub.f32 %v1768, %v2170
  %v2187 = vsub.f32 %v1769, %v2171
  %v2188 = vsub.f32 %v1770, %v2172
  %v2189 = vsub.f32 %v1771, %v2173
  %v2190 = vsub.f32 %v1772, %v2174
  %v2191 = vsub.f32 %v1773, %v2175
  %v2192 = vsub.f32 %v1774, %v2176
  %v2193 = vsub.f32 %v1775, %v2177
  %v2202 = vrot.slane %v2186, 7
  %v2203 = vrot.slane %v2187, 7
  %v2204 = vrot.slane %v2188, 7
  %v2205 = vrot.slane %v2189, 7
  %v2206 = vrot.slane %v2190, 7
  %v2207 = vrot.slane %v2191, 7
  %v2208 = vrot.slane %v2192, 7
  %v2209 = vrot.slane %v2193, 7
  %v2218 = vmul.f32 %v2044, %v2202
  %v2219 = vmul.f32 %v2045, %v2203
  %v2220 = vmul.f32 %v2046, %v2204
  %v2221 = vmul.f32 %v2047, %v2205
  %v2222 = vmul.f32 %v2048, %v2206
  %v2223 = vmul.f32 %v2049, %v2207
  %v2224 = vmul.f32 %v2050, %v2208
  %v2225 = vmul.f32 %v2051, %v2209
  %v2226 = vadd.f32 %v2154, %v2218
  %v2227 = vadd.f32 %v2155, %v2219
  %v2228 = vadd.f32 %v2156, %v2220
  %v2229 = vadd.f32 %v2157, %v2221
  %v2230 = vadd.f32 %v2158, %v2222
  %v2231 = vadd.f32 %v2159, %v2223
  %v2232 = vadd.f32 %v2160, %v2224
  %v2233 = vadd.f32 %v2161, %v2225
  %v2242 = vrot.slane %v2226, 3
  %v2243 = vrot.slane %v2227, 2
  %v2244 = vsel %vm806, %v2243, %v2242
  %v2245 = vrot.slane %v2228, 1
  %v2246 = vsel %vm809, %v2245, %v2244
  %v2247 = vsel %vm812, %v2229, %v2246
  %v2248 = vrot.slane %v2230, 7
  %v2249 = vsel %vm815, %v2248, %v2247
  %v2250 = vrot.slane %v2231, 6
  %v2251 = vsel %vm818, %v2250, %v2249
  %v2252 = vrot.slane %v2232, 5
  %v2253 = vsel %vm821, %v2252, %v2251
  %v2254 = vrot.slane %v2233, 4
  %v2255 = vsel %vm824, %v2254, %v2253
  %v2256 = vsel %vm62, %v2255, 0
  %2258 = vmatprep.subr.mxu0 0.0
  %2259 = vmatpush1.msra.mxu0 %v414
  %2260 = vmatprep.subr.mxu0 0.0
  %2261 = vmatpush1.msra.mxu0 %v415
  %2262 = vmatprep.subr.mxu0 0.0
  %2263 = vmatpush1.msra.mxu0 %v416
  %2264 = vmatprep.subr.mxu0 0.0
  %2265 = vmatpush1.msra.mxu0 %v417
  %2266 = vmatprep.subr.mxu0 0.0
  %2267 = vmatpush1.msra.mxu0 0.0
  %2268 = vmatprep.subr.mxu0 0.0
  %2269 = vmatpush1.msra.mxu0 0.0
  %2270 = vmatprep.subr.mxu0 0.0
  %2271 = vmatpush1.msra.mxu0 0.0
  %2272 = vmatprep.subr.mxu0 0.0
  %2273 = vmatpush1.msra.mxu0 0.0
  %2274 = vmatprep.subr.mxu0 0.0
  %2275 = vmatpush1.msra.mxu0 0.0
  %2276 = vmatprep.subr.mxu0 0.0
  %2277 = vmatpush1.msra.mxu0 0.0
  %2278 = vmatprep.subr.mxu0 0.0
  %2279 = vmatpush1.msra.mxu0 0.0
  %2280 = vmatprep.subr.mxu0 0.0
  %2281 = vmatpush1.msra.mxu0 0.0
  %2282 = vmatprep.subr.mxu0 0.0
  %2283 = vmatpush1.msra.mxu0 0.0
  %2284 = vmatprep.subr.mxu0 0.0
  %2285 = vmatpush1.msra.mxu0 0.0
  %2286 = vmatprep.subr.mxu0 0.0
  %2287 = vmatpush1.msra.mxu0 0.0
  %2288 = vmatprep.subr.mxu0 0.0
  %2289 = vmatpush1.msra.mxu0 0.0
  %2290 = vmatprep.subr.mxu0 0.0
  %2291 = vmatpush1.msra.mxu0 0.0
  %2292 = vmatprep.subr.mxu0 0.0
  %2293 = vmatpush1.msra.mxu0 0.0
  %2294 = vmatprep.subr.mxu0 0.0
  %2295 = vmatpush1.msra.mxu0 0.0
  %2296 = vmatprep.subr.mxu0 0.0
  %2297 = vmatpush1.msra.mxu0 0.0
  %2298 = vmatprep.subr.mxu0 0.0
  %2299 = vmatpush1.msra.mxu0 0.0
  %2300 = vmatprep.subr.mxu0 0.0
  %2301 = vmatpush1.msra.mxu0 0.0
  %2302 = vmatprep.subr.mxu0 0.0
  %2303 = vmatpush1.msra.mxu0 0.0
  %2304 = vmatprep.subr.mxu0 0.0
  %2305 = vmatpush1.msra.mxu0 0.0
  %2306 = vmatprep.subr.mxu0 0.0
  %2307 = vmatpush1.msra.mxu0 0.0
  %2308 = vmatprep.subr.mxu0 0.0
  %2309 = vmatpush1.msra.mxu0 0.0
  %2310 = vmatprep.subr.mxu0 0.0
  %2311 = vmatpush1.msra.mxu0 0.0
  %2312 = vmatprep.subr.mxu0 0.0
  %2313 = vmatpush1.msra.mxu0 0.0
  %2314 = vmatprep.subr.mxu0 0.0
  %2315 = vmatpush1.msra.mxu0 0.0
  %2316 = vmatprep.subr.mxu0 0.0
  %2317 = vmatpush1.msra.mxu0 0.0
  %2318 = vmatprep.subr.mxu0 0.0
  %2319 = vmatpush1.msra.mxu0 0.0
  %2320 = vmatprep.subr.mxu0 0.0
  %2321 = vmatpush1.msra.mxu0 0.0
  %2322 = vmatprep.mubr.f32.mxu0 0.0
  %2323 = vmatmul.mubr.f32.gmra.mrb[0].mxu0 %v2256
  %v2324 = vpop.f32.mrb[0].mxu0
  %v2325 = vadd.f32 0.0, %v2324
  %v2326 = vpop.f32.mrb[0].mxu0
  %2327 = vdwg.mxu0
  %2328 = vmatprep.subr.mxu0 0.0
  %2329 = vmatpush1.msra.mxu0 %v492
  %2330 = vmatprep.subr.mxu0 0.0
  %2331 = vmatpush1.msra.mxu0 %v493
  %2332 = vmatprep.subr.mxu0 0.0
  %2333 = vmatpush1.msra.mxu0 %v494
  %2334 = vmatprep.subr.mxu0 0.0
  %2335 = vmatpush1.msra.mxu0 %v495
  %2336 = vmatprep.subr.mxu0 0.0
  %2337 = vmatpush1.msra.mxu0 0.0
  %2338 = vmatprep.subr.mxu0 0.0
  %2339 = vmatpush1.msra.mxu0 0.0
  %2340 = vmatprep.subr.mxu0 0.0
  %2341 = vmatpush1.msra.mxu0 0.0
  %2342 = vmatprep.subr.mxu0 0.0
  %2343 = vmatpush1.msra.mxu0 0.0
  %2344 = vmatprep.subr.mxu0 0.0
  %2345 = vmatpush1.msra.mxu0 0.0
  %2346 = vmatprep.subr.mxu0 0.0
  %2347 = vmatpush1.msra.mxu0 0.0
  %2348 = vmatprep.subr.mxu0 0.0
  %2349 = vmatpush1.msra.mxu0 0.0
  %2350 = vmatprep.subr.mxu0 0.0
  %2351 = vmatpush1.msra.mxu0 0.0
  %2352 = vmatprep.subr.mxu0 0.0
  %2353 = vmatpush1.msra.mxu0 0.0
  %2354 = vmatprep.subr.mxu0 0.0
  %2355 = vmatpush1.msra.mxu0 0.0
  %2356 = vmatprep.subr.mxu0 0.0
  %2357 = vmatpush1.msra.mxu0 0.0
  %2358 = vmatprep.subr.mxu0 0.0
  %2359 = vmatpush1.msra.mxu0 0.0
  %2360 = vmatprep.subr.mxu0 0.0
  %2361 = vmatpush1.msra.mxu0 0.0
  %2362 = vmatprep.subr.mxu0 0.0
  %2363 = vmatpush1.msra.mxu0 0.0
  %2364 = vmatprep.subr.mxu0 0.0
  %2365 = vmatpush1.msra.mxu0 0.0
  %2366 = vmatprep.subr.mxu0 0.0
  %2367 = vmatpush1.msra.mxu0 0.0
  %2368 = vmatprep.subr.mxu0 0.0
  %2369 = vmatpush1.msra.mxu0 0.0
  %2370 = vmatprep.subr.mxu0 0.0
  %2371 = vmatpush1.msra.mxu0 0.0
  %2372 = vmatprep.subr.mxu0 0.0
  %2373 = vmatpush1.msra.mxu0 0.0
  %2374 = vmatprep.subr.mxu0 0.0
  %2375 = vmatpush1.msra.mxu0 0.0
  %2376 = vmatprep.subr.mxu0 0.0
  %2377 = vmatpush1.msra.mxu0 0.0
  %2378 = vmatprep.subr.mxu0 0.0
  %2379 = vmatpush1.msra.mxu0 0.0
  %2380 = vmatprep.subr.mxu0 0.0
  %2381 = vmatpush1.msra.mxu0 0.0
  %2382 = vmatprep.subr.mxu0 0.0
  %2383 = vmatpush1.msra.mxu0 0.0
  %2384 = vmatprep.subr.mxu0 0.0
  %2385 = vmatpush1.msra.mxu0 0.0
  %2386 = vmatprep.subr.mxu0 0.0
  %2387 = vmatpush1.msra.mxu0 0.0
  %2388 = vmatprep.subr.mxu0 0.0
  %2389 = vmatpush1.msra.mxu0 0.0
  %2390 = vmatprep.subr.mxu0 0.0
  %2391 = vmatpush1.msra.mxu0 0.0
  %2392 = vmatprep.mubr.f32.mxu0 0.0
  %2393 = vmatmul.mubr.f32.gmra.mrb[0].mxu0 %v2256
  %v2394 = vpop.f32.mrb[0].mxu0
  %v2395 = vadd.f32 0.0, %v2394
  %v2396 = vpop.f32.mrb[0].mxu0
  %2397 = vdwg.mxu0
  %v2399 = vrot.slane %v2325, 4
  %v2400 = vrot.slane %v2325, 5
  %v2401 = vrot.slane %v2325, 6
  %v2402 = vrot.slane %v2325, 7
  %v2403 = vrot.slane %v2325, 1
  %v2404 = vrot.slane %v2325, 2
  %v2405 = vrot.slane %v2325, 3
  %v2414 = vadd.f32 %v154, %v2399
  %v2415 = vadd.f32 %v159, %v2400
  %v2416 = vadd.f32 %v164, %v2401
  %v2417 = vadd.f32 %v169, %v2402
  %v2418 = vadd.f32 %v174, %v2325
  %v2419 = vadd.f32 %v179, %v2403
  %v2420 = vadd.f32 %v184, %v2404
  %v2421 = vadd.f32 %v189, %v2405
  %v2422 = vmul.f32 %v2414, 0.5
  %v2423 = vmul.f32 %v2415, 0.5
  %v2424 = vmul.f32 %v2416, 0.5
  %v2425 = vmul.f32 %v2417, 0.5
  %v2426 = vmul.f32 %v2418, 0.5
  %v2427 = vmul.f32 %v2419, 0.5
  %v2428 = vmul.f32 %v2420, 0.5
  %v2429 = vmul.f32 %v2421, 0.5
  %v2430 = vtanh.pop %v2422
  %v2431 = vtanh.pop %v2423
  %v2432 = vtanh.pop %v2424
  %v2433 = vtanh.pop %v2425
  %v2434 = vtanh.pop %v2426
  %v2435 = vtanh.pop %v2427
  %v2436 = vtanh.pop %v2428
  %v2437 = vtanh.pop %v2429
  %v2438 = vmul.f32 %v2430, 0.5
  %v2439 = vmul.f32 %v2431, 0.5
  %v2440 = vmul.f32 %v2432, 0.5
  %v2441 = vmul.f32 %v2433, 0.5
  %v2442 = vmul.f32 %v2434, 0.5
  %v2443 = vmul.f32 %v2435, 0.5
  %v2444 = vmul.f32 %v2436, 0.5
  %v2445 = vmul.f32 %v2437, 0.5
  %v2446 = vadd.f32 %v2438, 0.5
  %v2447 = vadd.f32 %v2439, 0.5
  %v2448 = vadd.f32 %v2440, 0.5
  %v2449 = vadd.f32 %v2441, 0.5
  %v2450 = vadd.f32 %v2442, 0.5
  %v2451 = vadd.f32 %v2443, 0.5
  %v2452 = vadd.f32 %v2444, 0.5
  %v2453 = vadd.f32 %v2445, 0.5
  %v2455 = vrot.slane %v2395, 4
  %v2456 = vrot.slane %v2395, 5
  %v2457 = vrot.slane %v2395, 6
  %v2458 = vrot.slane %v2395, 7
  %v2459 = vrot.slane %v2395, 1
  %v2460 = vrot.slane %v2395, 2
  %v2461 = vrot.slane %v2395, 3
  %v2470 = vadd.f32 %v264, %v2455
  %v2471 = vadd.f32 %v269, %v2456
  %v2472 = vadd.f32 %v274, %v2457
  %v2473 = vadd.f32 %v279, %v2458
  %v2474 = vadd.f32 %v284, %v2395
  %v2475 = vadd.f32 %v289, %v2459
  %v2476 = vadd.f32 %v294, %v2460
  %v2477 = vadd.f32 %v299, %v2461
  %v2478 = vmul.f32 %v2470, 0.5
  %v2479 = vmul.f32 %v2471, 0.5
  %v2480 = vmul.f32 %v2472, 0.5
  %v2481 = vmul.f32 %v2473, 0.5
  %v2482 = vmul.f32 %v2474, 0.5
  %v2483 = vmul.f32 %v2475, 0.5
  %v2484 = vmul.f32 %v2476, 0.5
  %v2485 = vmul.f32 %v2477, 0.5
  %v2486 = vtanh.pop %v2478
  %v2487 = vtanh.pop %v2479
  %v2488 = vtanh.pop %v2480
  %v2489 = vtanh.pop %v2481
  %v2490 = vtanh.pop %v2482
  %v2491 = vtanh.pop %v2483
  %v2492 = vtanh.pop %v2484
  %v2493 = vtanh.pop %v2485
  %v2494 = vmul.f32 %v2486, 0.5
  %v2495 = vmul.f32 %v2487, 0.5
  %v2496 = vmul.f32 %v2488, 0.5
  %v2497 = vmul.f32 %v2489, 0.5
  %v2498 = vmul.f32 %v2490, 0.5
  %v2499 = vmul.f32 %v2491, 0.5
  %v2500 = vmul.f32 %v2492, 0.5
  %v2501 = vmul.f32 %v2493, 0.5
  %v2502 = vadd.f32 %v2494, 0.5
  %v2503 = vadd.f32 %v2495, 0.5
  %v2504 = vadd.f32 %v2496, 0.5
  %v2505 = vadd.f32 %v2497, 0.5
  %v2506 = vadd.f32 %v2498, 0.5
  %v2507 = vadd.f32 %v2499, 0.5
  %v2508 = vadd.f32 %v2500, 0.5
  %v2509 = vadd.f32 %v2501, 0.5
  %2510 = vmatprep.subr.mxu0 0.0
  %2511 = vmatpush1.msra.mxu0 %v567
  %2512 = vmatprep.subr.mxu0 0.0
  %2513 = vmatpush1.msra.mxu0 %v568
  %2514 = vmatprep.subr.mxu0 0.0
  %2515 = vmatpush1.msra.mxu0 %v569
  %2516 = vmatprep.subr.mxu0 0.0
  %2517 = vmatpush1.msra.mxu0 %v570
  %2518 = vmatprep.subr.mxu0 0.0
  %2519 = vmatpush1.msra.mxu0 0.0
  %2520 = vmatprep.subr.mxu0 0.0
  %2521 = vmatpush1.msra.mxu0 0.0
  %2522 = vmatprep.subr.mxu0 0.0
  %2523 = vmatpush1.msra.mxu0 0.0
  %2524 = vmatprep.subr.mxu0 0.0
  %2525 = vmatpush1.msra.mxu0 0.0
  %2526 = vmatprep.subr.mxu0 0.0
  %2527 = vmatpush1.msra.mxu0 0.0
  %2528 = vmatprep.subr.mxu0 0.0
  %2529 = vmatpush1.msra.mxu0 0.0
  %2530 = vmatprep.subr.mxu0 0.0
  %2531 = vmatpush1.msra.mxu0 0.0
  %2532 = vmatprep.subr.mxu0 0.0
  %2533 = vmatpush1.msra.mxu0 0.0
  %2534 = vmatprep.subr.mxu0 0.0
  %2535 = vmatpush1.msra.mxu0 0.0
  %2536 = vmatprep.subr.mxu0 0.0
  %2537 = vmatpush1.msra.mxu0 0.0
  %2538 = vmatprep.subr.mxu0 0.0
  %2539 = vmatpush1.msra.mxu0 0.0
  %2540 = vmatprep.subr.mxu0 0.0
  %2541 = vmatpush1.msra.mxu0 0.0
  %2542 = vmatprep.subr.mxu0 0.0
  %2543 = vmatpush1.msra.mxu0 0.0
  %2544 = vmatprep.subr.mxu0 0.0
  %2545 = vmatpush1.msra.mxu0 0.0
  %2546 = vmatprep.subr.mxu0 0.0
  %2547 = vmatpush1.msra.mxu0 0.0
  %2548 = vmatprep.subr.mxu0 0.0
  %2549 = vmatpush1.msra.mxu0 0.0
  %2550 = vmatprep.subr.mxu0 0.0
  %2551 = vmatpush1.msra.mxu0 0.0
  %2552 = vmatprep.subr.mxu0 0.0
  %2553 = vmatpush1.msra.mxu0 0.0
  %2554 = vmatprep.subr.mxu0 0.0
  %2555 = vmatpush1.msra.mxu0 0.0
  %2556 = vmatprep.subr.mxu0 0.0
  %2557 = vmatpush1.msra.mxu0 0.0
  %2558 = vmatprep.subr.mxu0 0.0
  %2559 = vmatpush1.msra.mxu0 0.0
  %2560 = vmatprep.subr.mxu0 0.0
  %2561 = vmatpush1.msra.mxu0 0.0
  %2562 = vmatprep.subr.mxu0 0.0
  %2563 = vmatpush1.msra.mxu0 0.0
  %2564 = vmatprep.subr.mxu0 0.0
  %2565 = vmatpush1.msra.mxu0 0.0
  %2566 = vmatprep.subr.mxu0 0.0
  %2567 = vmatpush1.msra.mxu0 0.0
  %2568 = vmatprep.subr.mxu0 0.0
  %2569 = vmatpush1.msra.mxu0 0.0
  %2570 = vmatprep.subr.mxu0 0.0
  %2571 = vmatpush1.msra.mxu0 0.0
  %2572 = vmatprep.subr.mxu0 0.0
  %2573 = vmatpush1.msra.mxu0 0.0
  %2574 = vmatprep.mubr.f32.mxu0 0.0
  %2575 = vmatmul.mubr.f32.gmra.mrb[0].mxu0 %v2256
  %v2576 = vpop.f32.mrb[0].mxu0
  %v2577 = vadd.f32 %v686, %v2576
  %v2578 = vpop.f32.mrb[0].mxu0
  %2579 = vdwg.mxu0
  %v2581 = vrot.slane %v2577, 4
  %v2582 = vrot.slane %v2577, 5
  %v2583 = vrot.slane %v2577, 6
  %v2584 = vrot.slane %v2577, 7
  %v2585 = vrot.slane %v2577, 1
  %v2586 = vrot.slane %v2577, 2
  %v2587 = vrot.slane %v2577, 3
  %v2596 = vmul.f32 %v2446, %v2581
  %v2597 = vmul.f32 %v2447, %v2582
  %v2598 = vmul.f32 %v2448, %v2583
  %v2599 = vmul.f32 %v2449, %v2584
  %v2600 = vmul.f32 %v2450, %v2577
  %v2601 = vmul.f32 %v2451, %v2585
  %v2602 = vmul.f32 %v2452, %v2586
  %v2603 = vmul.f32 %v2453, %v2587
  %v2604 = vadd.f32 %v374, %v2596
  %v2605 = vadd.f32 %v379, %v2597
  %v2606 = vadd.f32 %v384, %v2598
  %v2607 = vadd.f32 %v389, %v2599
  %v2608 = vadd.f32 %v394, %v2600
  %v2609 = vadd.f32 %v399, %v2601
  %v2610 = vadd.f32 %v404, %v2602
  %v2611 = vadd.f32 %v409, %v2603
  %v2612 = vtanh.pop %v2604
  %v2613 = vtanh.pop %v2605
  %v2614 = vtanh.pop %v2606
  %v2615 = vtanh.pop %v2607
  %v2616 = vtanh.pop %v2608
  %v2617 = vtanh.pop %v2609
  %v2618 = vtanh.pop %v2610
  %v2619 = vtanh.pop %v2611
  %v2628 = vrot.slane %v2612, 1
  %v2629 = vrot.slane %v2613, 1
  %v2630 = vrot.slane %v2614, 1
  %v2631 = vrot.slane %v2615, 1
  %v2632 = vrot.slane %v2616, 1
  %v2633 = vrot.slane %v2617, 1
  %v2634 = vrot.slane %v2618, 1
  %v2635 = vrot.slane %v2619, 1
  %v2644 = vsub.f32 %v2226, %v2628
  %v2645 = vsub.f32 %v2227, %v2629
  %v2646 = vsub.f32 %v2228, %v2630
  %v2647 = vsub.f32 %v2229, %v2631
  %v2648 = vsub.f32 %v2230, %v2632
  %v2649 = vsub.f32 %v2231, %v2633
  %v2650 = vsub.f32 %v2232, %v2634
  %v2651 = vsub.f32 %v2233, %v2635
  %v2660 = vrot.slane %v2644, 7
  %v2661 = vrot.slane %v2645, 7
  %v2662 = vrot.slane %v2646, 7
  %v2663 = vrot.slane %v2647, 7
  %v2664 = vrot.slane %v2648, 7
  %v2665 = vrot.slane %v2649, 7
  %v2666 = vrot.slane %v2650, 7
  %v2667 = vrot.slane %v2651, 7
  %v2676 = vmul.f32 %v2502, %v2660
  %v2677 = vmul.f32 %v2503, %v2661
  %v2678 = vmul.f32 %v2504, %v2662
  %v2679 = vmul.f32 %v2505, %v2663
  %v2680 = vmul.f32 %v2506, %v2664
  %v2681 = vmul.f32 %v2507, %v2665
  %v2682 = vmul.f32 %v2508, %v2666
  %v2683 = vmul.f32 %v2509, %v2667
  %v2684 = vadd.f32 %v2612, %v2676
  %v2685 = vadd.f32 %v2613, %v2677
  %v2686 = vadd.f32 %v2614, %v2678
  %v2687 = vadd.f32 %v2615, %v2679
  %v2688 = vadd.f32 %v2616, %v2680
  %v2689 = vadd.f32 %v2617, %v2681
  %v2690 = vadd.f32 %v2618, %v2682
  %v2691 = vadd.f32 %v2619, %v2683
  %v2700 = vrot.slane %v2684, 4
  %v2701 = vrot.slane %v2685, 3
  %v2702 = vsel %vm806, %v2701, %v2700
  %v2703 = vrot.slane %v2686, 2
  %v2704 = vsel %vm809, %v2703, %v2702
  %v2705 = vrot.slane %v2687, 1
  %v2706 = vsel %vm812, %v2705, %v2704
  %v2707 = vsel %vm815, %v2688, %v2706
  %v2708 = vrot.slane %v2689, 7
  %v2709 = vsel %vm818, %v2708, %v2707
  %v2710 = vrot.slane %v2690, 6
  %v2711 = vsel %vm821, %v2710, %v2709
  %v2712 = vrot.slane %v2691, 5
  %v2713 = vsel %vm824, %v2712, %v2711
  %v2714 = vsel %vm62, %v2713, 0
  %2716 = vmatprep.subr.mxu0 0.0
  %2717 = vmatpush1.msra.mxu0 %v414
  %2718 = vmatprep.subr.mxu0 0.0
  %2719 = vmatpush1.msra.mxu0 %v415
  %2720 = vmatprep.subr.mxu0 0.0
  %2721 = vmatpush1.msra.mxu0 %v416
  %2722 = vmatprep.subr.mxu0 0.0
  %2723 = vmatpush1.msra.mxu0 %v417
  %2724 = vmatprep.subr.mxu0 0.0
  %2725 = vmatpush1.msra.mxu0 0.0
  %2726 = vmatprep.subr.mxu0 0.0
  %2727 = vmatpush1.msra.mxu0 0.0
  %2728 = vmatprep.subr.mxu0 0.0
  %2729 = vmatpush1.msra.mxu0 0.0
  %2730 = vmatprep.subr.mxu0 0.0
  %2731 = vmatpush1.msra.mxu0 0.0
  %2732 = vmatprep.subr.mxu0 0.0
  %2733 = vmatpush1.msra.mxu0 0.0
  %2734 = vmatprep.subr.mxu0 0.0
  %2735 = vmatpush1.msra.mxu0 0.0
  %2736 = vmatprep.subr.mxu0 0.0
  %2737 = vmatpush1.msra.mxu0 0.0
  %2738 = vmatprep.subr.mxu0 0.0
  %2739 = vmatpush1.msra.mxu0 0.0
  %2740 = vmatprep.subr.mxu0 0.0
  %2741 = vmatpush1.msra.mxu0 0.0
  %2742 = vmatprep.subr.mxu0 0.0
  %2743 = vmatpush1.msra.mxu0 0.0
  %2744 = vmatprep.subr.mxu0 0.0
  %2745 = vmatpush1.msra.mxu0 0.0
  %2746 = vmatprep.subr.mxu0 0.0
  %2747 = vmatpush1.msra.mxu0 0.0
  %2748 = vmatprep.subr.mxu0 0.0
  %2749 = vmatpush1.msra.mxu0 0.0
  %2750 = vmatprep.subr.mxu0 0.0
  %2751 = vmatpush1.msra.mxu0 0.0
  %2752 = vmatprep.subr.mxu0 0.0
  %2753 = vmatpush1.msra.mxu0 0.0
  %2754 = vmatprep.subr.mxu0 0.0
  %2755 = vmatpush1.msra.mxu0 0.0
  %2756 = vmatprep.subr.mxu0 0.0
  %2757 = vmatpush1.msra.mxu0 0.0
  %2758 = vmatprep.subr.mxu0 0.0
  %2759 = vmatpush1.msra.mxu0 0.0
  %2760 = vmatprep.subr.mxu0 0.0
  %2761 = vmatpush1.msra.mxu0 0.0
  %2762 = vmatprep.subr.mxu0 0.0
  %2763 = vmatpush1.msra.mxu0 0.0
  %2764 = vmatprep.subr.mxu0 0.0
  %2765 = vmatpush1.msra.mxu0 0.0
  %2766 = vmatprep.subr.mxu0 0.0
  %2767 = vmatpush1.msra.mxu0 0.0
  %2768 = vmatprep.subr.mxu0 0.0
  %2769 = vmatpush1.msra.mxu0 0.0
  %2770 = vmatprep.subr.mxu0 0.0
  %2771 = vmatpush1.msra.mxu0 0.0
  %2772 = vmatprep.subr.mxu0 0.0
  %2773 = vmatpush1.msra.mxu0 0.0
  %2774 = vmatprep.subr.mxu0 0.0
  %2775 = vmatpush1.msra.mxu0 0.0
  %2776 = vmatprep.subr.mxu0 0.0
  %2777 = vmatpush1.msra.mxu0 0.0
  %2778 = vmatprep.subr.mxu0 0.0
  %2779 = vmatpush1.msra.mxu0 0.0
  %2780 = vmatprep.mubr.f32.mxu0 0.0
  %2781 = vmatmul.mubr.f32.gmra.mrb[0].mxu0 %v2714
  %v2782 = vpop.f32.mrb[0].mxu0
  %v2783 = vadd.f32 0.0, %v2782
  %v2784 = vpop.f32.mrb[0].mxu0
  %2785 = vdwg.mxu0
  %2786 = vmatprep.subr.mxu0 0.0
  %2787 = vmatpush1.msra.mxu0 %v492
  %2788 = vmatprep.subr.mxu0 0.0
  %2789 = vmatpush1.msra.mxu0 %v493
  %2790 = vmatprep.subr.mxu0 0.0
  %2791 = vmatpush1.msra.mxu0 %v494
  %2792 = vmatprep.subr.mxu0 0.0
  %2793 = vmatpush1.msra.mxu0 %v495
  %2794 = vmatprep.subr.mxu0 0.0
  %2795 = vmatpush1.msra.mxu0 0.0
  %2796 = vmatprep.subr.mxu0 0.0
  %2797 = vmatpush1.msra.mxu0 0.0
  %2798 = vmatprep.subr.mxu0 0.0
  %2799 = vmatpush1.msra.mxu0 0.0
  %2800 = vmatprep.subr.mxu0 0.0
  %2801 = vmatpush1.msra.mxu0 0.0
  %2802 = vmatprep.subr.mxu0 0.0
  %2803 = vmatpush1.msra.mxu0 0.0
  %2804 = vmatprep.subr.mxu0 0.0
  %2805 = vmatpush1.msra.mxu0 0.0
  %2806 = vmatprep.subr.mxu0 0.0
  %2807 = vmatpush1.msra.mxu0 0.0
  %2808 = vmatprep.subr.mxu0 0.0
  %2809 = vmatpush1.msra.mxu0 0.0
  %2810 = vmatprep.subr.mxu0 0.0
  %2811 = vmatpush1.msra.mxu0 0.0
  %2812 = vmatprep.subr.mxu0 0.0
  %2813 = vmatpush1.msra.mxu0 0.0
  %2814 = vmatprep.subr.mxu0 0.0
  %2815 = vmatpush1.msra.mxu0 0.0
  %2816 = vmatprep.subr.mxu0 0.0
  %2817 = vmatpush1.msra.mxu0 0.0
  %2818 = vmatprep.subr.mxu0 0.0
  %2819 = vmatpush1.msra.mxu0 0.0
  %2820 = vmatprep.subr.mxu0 0.0
  %2821 = vmatpush1.msra.mxu0 0.0
  %2822 = vmatprep.subr.mxu0 0.0
  %2823 = vmatpush1.msra.mxu0 0.0
  %2824 = vmatprep.subr.mxu0 0.0
  %2825 = vmatpush1.msra.mxu0 0.0
  %2826 = vmatprep.subr.mxu0 0.0
  %2827 = vmatpush1.msra.mxu0 0.0
  %2828 = vmatprep.subr.mxu0 0.0
  %2829 = vmatpush1.msra.mxu0 0.0
  %2830 = vmatprep.subr.mxu0 0.0
  %2831 = vmatpush1.msra.mxu0 0.0
  %2832 = vmatprep.subr.mxu0 0.0
  %2833 = vmatpush1.msra.mxu0 0.0
  %2834 = vmatprep.subr.mxu0 0.0
  %2835 = vmatpush1.msra.mxu0 0.0
  %2836 = vmatprep.subr.mxu0 0.0
  %2837 = vmatpush1.msra.mxu0 0.0
  %2838 = vmatprep.subr.mxu0 0.0
  %2839 = vmatpush1.msra.mxu0 0.0
  %2840 = vmatprep.subr.mxu0 0.0
  %2841 = vmatpush1.msra.mxu0 0.0
  %2842 = vmatprep.subr.mxu0 0.0
  %2843 = vmatpush1.msra.mxu0 0.0
  %2844 = vmatprep.subr.mxu0 0.0
  %2845 = vmatpush1.msra.mxu0 0.0
  %2846 = vmatprep.subr.mxu0 0.0
  %2847 = vmatpush1.msra.mxu0 0.0
  %2848 = vmatprep.subr.mxu0 0.0
  %2849 = vmatpush1.msra.mxu0 0.0
  %2850 = vmatprep.mubr.f32.mxu0 0.0
  %2851 = vmatmul.mubr.f32.gmra.mrb[0].mxu0 %v2714
  %v2852 = vpop.f32.mrb[0].mxu0
  %v2853 = vadd.f32 0.0, %v2852
  %v2854 = vpop.f32.mrb[0].mxu0
  %2855 = vdwg.mxu0
  %v2857 = vrot.slane %v2783, 3
  %v2858 = vrot.slane %v2783, 4
  %v2859 = vrot.slane %v2783, 5
  %v2860 = vrot.slane %v2783, 6
  %v2861 = vrot.slane %v2783, 7
  %v2862 = vrot.slane %v2783, 1
  %v2863 = vrot.slane %v2783, 2
  %v2872 = vadd.f32 %v154, %v2857
  %v2873 = vadd.f32 %v159, %v2858
  %v2874 = vadd.f32 %v164, %v2859
  %v2875 = vadd.f32 %v169, %v2860
  %v2876 = vadd.f32 %v174, %v2861
  %v2877 = vadd.f32 %v179, %v2783
  %v2878 = vadd.f32 %v184, %v2862
  %v2879 = vadd.f32 %v189, %v2863
  %v2880 = vmul.f32 %v2872, 0.5
  %v2881 = vmul.f32 %v2873, 0.5
  %v2882 = vmul.f32 %v2874, 0.5
  %v2883 = vmul.f32 %v2875, 0.5
  %v2884 = vmul.f32 %v2876, 0.5
  %v2885 = vmul.f32 %v2877, 0.5
  %v2886 = vmul.f32 %v2878, 0.5
  %v2887 = vmul.f32 %v2879, 0.5
  %v2888 = vtanh.pop %v2880
  %v2889 = vtanh.pop %v2881
  %v2890 = vtanh.pop %v2882
  %v2891 = vtanh.pop %v2883
  %v2892 = vtanh.pop %v2884
  %v2893 = vtanh.pop %v2885
  %v2894 = vtanh.pop %v2886
  %v2895 = vtanh.pop %v2887
  %v2896 = vmul.f32 %v2888, 0.5
  %v2897 = vmul.f32 %v2889, 0.5
  %v2898 = vmul.f32 %v2890, 0.5
  %v2899 = vmul.f32 %v2891, 0.5
  %v2900 = vmul.f32 %v2892, 0.5
  %v2901 = vmul.f32 %v2893, 0.5
  %v2902 = vmul.f32 %v2894, 0.5
  %v2903 = vmul.f32 %v2895, 0.5
  %v2904 = vadd.f32 %v2896, 0.5
  %v2905 = vadd.f32 %v2897, 0.5
  %v2906 = vadd.f32 %v2898, 0.5
  %v2907 = vadd.f32 %v2899, 0.5
  %v2908 = vadd.f32 %v2900, 0.5
  %v2909 = vadd.f32 %v2901, 0.5
  %v2910 = vadd.f32 %v2902, 0.5
  %v2911 = vadd.f32 %v2903, 0.5
  %v2913 = vrot.slane %v2853, 3
  %v2914 = vrot.slane %v2853, 4
  %v2915 = vrot.slane %v2853, 5
  %v2916 = vrot.slane %v2853, 6
  %v2917 = vrot.slane %v2853, 7
  %v2918 = vrot.slane %v2853, 1
  %v2919 = vrot.slane %v2853, 2
  %v2928 = vadd.f32 %v264, %v2913
  %v2929 = vadd.f32 %v269, %v2914
  %v2930 = vadd.f32 %v274, %v2915
  %v2931 = vadd.f32 %v279, %v2916
  %v2932 = vadd.f32 %v284, %v2917
  %v2933 = vadd.f32 %v289, %v2853
  %v2934 = vadd.f32 %v294, %v2918
  %v2935 = vadd.f32 %v299, %v2919
  %v2936 = vmul.f32 %v2928, 0.5
  %v2937 = vmul.f32 %v2929, 0.5
  %v2938 = vmul.f32 %v2930, 0.5
  %v2939 = vmul.f32 %v2931, 0.5
  %v2940 = vmul.f32 %v2932, 0.5
  %v2941 = vmul.f32 %v2933, 0.5
  %v2942 = vmul.f32 %v2934, 0.5
  %v2943 = vmul.f32 %v2935, 0.5
  %v2944 = vtanh.pop %v2936
  %v2945 = vtanh.pop %v2937
  %v2946 = vtanh.pop %v2938
  %v2947 = vtanh.pop %v2939
  %v2948 = vtanh.pop %v2940
  %v2949 = vtanh.pop %v2941
  %v2950 = vtanh.pop %v2942
  %v2951 = vtanh.pop %v2943
  %v2952 = vmul.f32 %v2944, 0.5
  %v2953 = vmul.f32 %v2945, 0.5
  %v2954 = vmul.f32 %v2946, 0.5
  %v2955 = vmul.f32 %v2947, 0.5
  %v2956 = vmul.f32 %v2948, 0.5
  %v2957 = vmul.f32 %v2949, 0.5
  %v2958 = vmul.f32 %v2950, 0.5
  %v2959 = vmul.f32 %v2951, 0.5
  %v2960 = vadd.f32 %v2952, 0.5
  %v2961 = vadd.f32 %v2953, 0.5
  %v2962 = vadd.f32 %v2954, 0.5
  %v2963 = vadd.f32 %v2955, 0.5
  %v2964 = vadd.f32 %v2956, 0.5
  %v2965 = vadd.f32 %v2957, 0.5
  %v2966 = vadd.f32 %v2958, 0.5
  %v2967 = vadd.f32 %v2959, 0.5
  %2968 = vmatprep.subr.mxu0 0.0
  %2969 = vmatpush1.msra.mxu0 %v567
  %2970 = vmatprep.subr.mxu0 0.0
  %2971 = vmatpush1.msra.mxu0 %v568
  %2972 = vmatprep.subr.mxu0 0.0
  %2973 = vmatpush1.msra.mxu0 %v569
  %2974 = vmatprep.subr.mxu0 0.0
  %2975 = vmatpush1.msra.mxu0 %v570
  %2976 = vmatprep.subr.mxu0 0.0
  %2977 = vmatpush1.msra.mxu0 0.0
  %2978 = vmatprep.subr.mxu0 0.0
  %2979 = vmatpush1.msra.mxu0 0.0
  %2980 = vmatprep.subr.mxu0 0.0
  %2981 = vmatpush1.msra.mxu0 0.0
  %2982 = vmatprep.subr.mxu0 0.0
  %2983 = vmatpush1.msra.mxu0 0.0
  %2984 = vmatprep.subr.mxu0 0.0
  %2985 = vmatpush1.msra.mxu0 0.0
  %2986 = vmatprep.subr.mxu0 0.0
  %2987 = vmatpush1.msra.mxu0 0.0
  %2988 = vmatprep.subr.mxu0 0.0
  %2989 = vmatpush1.msra.mxu0 0.0
  %2990 = vmatprep.subr.mxu0 0.0
  %2991 = vmatpush1.msra.mxu0 0.0
  %2992 = vmatprep.subr.mxu0 0.0
  %2993 = vmatpush1.msra.mxu0 0.0
  %2994 = vmatprep.subr.mxu0 0.0
  %2995 = vmatpush1.msra.mxu0 0.0
  %2996 = vmatprep.subr.mxu0 0.0
  %2997 = vmatpush1.msra.mxu0 0.0
  %2998 = vmatprep.subr.mxu0 0.0
  %2999 = vmatpush1.msra.mxu0 0.0
  %3000 = vmatprep.subr.mxu0 0.0
  %3001 = vmatpush1.msra.mxu0 0.0
  %3002 = vmatprep.subr.mxu0 0.0
  %3003 = vmatpush1.msra.mxu0 0.0
  %3004 = vmatprep.subr.mxu0 0.0
  %3005 = vmatpush1.msra.mxu0 0.0
  %3006 = vmatprep.subr.mxu0 0.0
  %3007 = vmatpush1.msra.mxu0 0.0
  %3008 = vmatprep.subr.mxu0 0.0
  %3009 = vmatpush1.msra.mxu0 0.0
  %3010 = vmatprep.subr.mxu0 0.0
  %3011 = vmatpush1.msra.mxu0 0.0
  %3012 = vmatprep.subr.mxu0 0.0
  %3013 = vmatpush1.msra.mxu0 0.0
  %3014 = vmatprep.subr.mxu0 0.0
  %3015 = vmatpush1.msra.mxu0 0.0
  %3016 = vmatprep.subr.mxu0 0.0
  %3017 = vmatpush1.msra.mxu0 0.0
  %3018 = vmatprep.subr.mxu0 0.0
  %3019 = vmatpush1.msra.mxu0 0.0
  %3020 = vmatprep.subr.mxu0 0.0
  %3021 = vmatpush1.msra.mxu0 0.0
  %3022 = vmatprep.subr.mxu0 0.0
  %3023 = vmatpush1.msra.mxu0 0.0
  %3024 = vmatprep.subr.mxu0 0.0
  %3025 = vmatpush1.msra.mxu0 0.0
  %3026 = vmatprep.subr.mxu0 0.0
  %3027 = vmatpush1.msra.mxu0 0.0
  %3028 = vmatprep.subr.mxu0 0.0
  %3029 = vmatpush1.msra.mxu0 0.0
  %3030 = vmatprep.subr.mxu0 0.0
  %3031 = vmatpush1.msra.mxu0 0.0
  %3032 = vmatprep.mubr.f32.mxu0 0.0
  %3033 = vmatmul.mubr.f32.gmra.mrb[0].mxu0 %v2714
  %v3034 = vpop.f32.mrb[0].mxu0
  %v3035 = vadd.f32 %v686, %v3034
  %v3036 = vpop.f32.mrb[0].mxu0
  %3037 = vdwg.mxu0
  %v3039 = vrot.slane %v3035, 3
  %v3040 = vrot.slane %v3035, 4
  %v3041 = vrot.slane %v3035, 5
  %v3042 = vrot.slane %v3035, 6
  %v3043 = vrot.slane %v3035, 7
  %v3044 = vrot.slane %v3035, 1
  %v3045 = vrot.slane %v3035, 2
  %v3054 = vmul.f32 %v2904, %v3039
  %v3055 = vmul.f32 %v2905, %v3040
  %v3056 = vmul.f32 %v2906, %v3041
  %v3057 = vmul.f32 %v2907, %v3042
  %v3058 = vmul.f32 %v2908, %v3043
  %v3059 = vmul.f32 %v2909, %v3035
  %v3060 = vmul.f32 %v2910, %v3044
  %v3061 = vmul.f32 %v2911, %v3045
  %v3062 = vadd.f32 %v374, %v3054
  %v3063 = vadd.f32 %v379, %v3055
  %v3064 = vadd.f32 %v384, %v3056
  %v3065 = vadd.f32 %v389, %v3057
  %v3066 = vadd.f32 %v394, %v3058
  %v3067 = vadd.f32 %v399, %v3059
  %v3068 = vadd.f32 %v404, %v3060
  %v3069 = vadd.f32 %v409, %v3061
  %v3070 = vtanh.pop %v3062
  %v3071 = vtanh.pop %v3063
  %v3072 = vtanh.pop %v3064
  %v3073 = vtanh.pop %v3065
  %v3074 = vtanh.pop %v3066
  %v3075 = vtanh.pop %v3067
  %v3076 = vtanh.pop %v3068
  %v3077 = vtanh.pop %v3069
  %v3086 = vrot.slane %v3070, 1
  %v3087 = vrot.slane %v3071, 1
  %v3088 = vrot.slane %v3072, 1
  %v3089 = vrot.slane %v3073, 1
  %v3090 = vrot.slane %v3074, 1
  %v3091 = vrot.slane %v3075, 1
  %v3092 = vrot.slane %v3076, 1
  %v3093 = vrot.slane %v3077, 1
  %v3102 = vsub.f32 %v2684, %v3086
  %v3103 = vsub.f32 %v2685, %v3087
  %v3104 = vsub.f32 %v2686, %v3088
  %v3105 = vsub.f32 %v2687, %v3089
  %v3106 = vsub.f32 %v2688, %v3090
  %v3107 = vsub.f32 %v2689, %v3091
  %v3108 = vsub.f32 %v2690, %v3092
  %v3109 = vsub.f32 %v2691, %v3093
  %v3118 = vrot.slane %v3102, 7
  %v3119 = vrot.slane %v3103, 7
  %v3120 = vrot.slane %v3104, 7
  %v3121 = vrot.slane %v3105, 7
  %v3122 = vrot.slane %v3106, 7
  %v3123 = vrot.slane %v3107, 7
  %v3124 = vrot.slane %v3108, 7
  %v3125 = vrot.slane %v3109, 7
  %v3134 = vmul.f32 %v2960, %v3118
  %v3135 = vmul.f32 %v2961, %v3119
  %v3136 = vmul.f32 %v2962, %v3120
  %v3137 = vmul.f32 %v2963, %v3121
  %v3138 = vmul.f32 %v2964, %v3122
  %v3139 = vmul.f32 %v2965, %v3123
  %v3140 = vmul.f32 %v2966, %v3124
  %v3141 = vmul.f32 %v2967, %v3125
  %v3142 = vadd.f32 %v3070, %v3134
  %v3143 = vadd.f32 %v3071, %v3135
  %v3144 = vadd.f32 %v3072, %v3136
  %v3145 = vadd.f32 %v3073, %v3137
  %v3146 = vadd.f32 %v3074, %v3138
  %v3147 = vadd.f32 %v3075, %v3139
  %v3148 = vadd.f32 %v3076, %v3140
  %v3149 = vadd.f32 %v3077, %v3141
  %v3158 = vrot.slane %v3142, 5
  %v3159 = vrot.slane %v3143, 4
  %v3160 = vsel %vm806, %v3159, %v3158
  %v3161 = vrot.slane %v3144, 3
  %v3162 = vsel %vm809, %v3161, %v3160
  %v3163 = vrot.slane %v3145, 2
  %v3164 = vsel %vm812, %v3163, %v3162
  %v3165 = vrot.slane %v3146, 1
  %v3166 = vsel %vm815, %v3165, %v3164
  %v3167 = vsel %vm818, %v3147, %v3166
  %v3168 = vrot.slane %v3148, 7
  %v3169 = vsel %vm821, %v3168, %v3167
  %v3170 = vrot.slane %v3149, 6
  %v3171 = vsel %vm824, %v3170, %v3169
  %v3172 = vsel %vm62, %v3171, 0
  %3174 = vmatprep.subr.mxu0 0.0
  %3175 = vmatpush1.msra.mxu0 %v414
  %3176 = vmatprep.subr.mxu0 0.0
  %3177 = vmatpush1.msra.mxu0 %v415
  %3178 = vmatprep.subr.mxu0 0.0
  %3179 = vmatpush1.msra.mxu0 %v416
  %3180 = vmatprep.subr.mxu0 0.0
  %3181 = vmatpush1.msra.mxu0 %v417
  %3182 = vmatprep.subr.mxu0 0.0
  %3183 = vmatpush1.msra.mxu0 0.0
  %3184 = vmatprep.subr.mxu0 0.0
  %3185 = vmatpush1.msra.mxu0 0.0
  %3186 = vmatprep.subr.mxu0 0.0
  %3187 = vmatpush1.msra.mxu0 0.0
  %3188 = vmatprep.subr.mxu0 0.0
  %3189 = vmatpush1.msra.mxu0 0.0
  %3190 = vmatprep.subr.mxu0 0.0
  %3191 = vmatpush1.msra.mxu0 0.0
  %3192 = vmatprep.subr.mxu0 0.0
  %3193 = vmatpush1.msra.mxu0 0.0
  %3194 = vmatprep.subr.mxu0 0.0
  %3195 = vmatpush1.msra.mxu0 0.0
  %3196 = vmatprep.subr.mxu0 0.0
  %3197 = vmatpush1.msra.mxu0 0.0
  %3198 = vmatprep.subr.mxu0 0.0
  %3199 = vmatpush1.msra.mxu0 0.0
  %3200 = vmatprep.subr.mxu0 0.0
  %3201 = vmatpush1.msra.mxu0 0.0
  %3202 = vmatprep.subr.mxu0 0.0
  %3203 = vmatpush1.msra.mxu0 0.0
  %3204 = vmatprep.subr.mxu0 0.0
  %3205 = vmatpush1.msra.mxu0 0.0
  %3206 = vmatprep.subr.mxu0 0.0
  %3207 = vmatpush1.msra.mxu0 0.0
  %3208 = vmatprep.subr.mxu0 0.0
  %3209 = vmatpush1.msra.mxu0 0.0
  %3210 = vmatprep.subr.mxu0 0.0
  %3211 = vmatpush1.msra.mxu0 0.0
  %3212 = vmatprep.subr.mxu0 0.0
  %3213 = vmatpush1.msra.mxu0 0.0
  %3214 = vmatprep.subr.mxu0 0.0
  %3215 = vmatpush1.msra.mxu0 0.0
  %3216 = vmatprep.subr.mxu0 0.0
  %3217 = vmatpush1.msra.mxu0 0.0
  %3218 = vmatprep.subr.mxu0 0.0
  %3219 = vmatpush1.msra.mxu0 0.0
  %3220 = vmatprep.subr.mxu0 0.0
  %3221 = vmatpush1.msra.mxu0 0.0
  %3222 = vmatprep.subr.mxu0 0.0
  %3223 = vmatpush1.msra.mxu0 0.0
  %3224 = vmatprep.subr.mxu0 0.0
  %3225 = vmatpush1.msra.mxu0 0.0
  %3226 = vmatprep.subr.mxu0 0.0
  %3227 = vmatpush1.msra.mxu0 0.0
  %3228 = vmatprep.subr.mxu0 0.0
  %3229 = vmatpush1.msra.mxu0 0.0
  %3230 = vmatprep.subr.mxu0 0.0
  %3231 = vmatpush1.msra.mxu0 0.0
  %3232 = vmatprep.subr.mxu0 0.0
  %3233 = vmatpush1.msra.mxu0 0.0
  %3234 = vmatprep.subr.mxu0 0.0
  %3235 = vmatpush1.msra.mxu0 0.0
  %3236 = vmatprep.subr.mxu0 0.0
  %3237 = vmatpush1.msra.mxu0 0.0
  %3238 = vmatprep.mubr.f32.mxu0 0.0
  %3239 = vmatmul.mubr.f32.gmra.mrb[0].mxu0 %v3172
  %v3240 = vpop.f32.mrb[0].mxu0
  %v3241 = vadd.f32 0.0, %v3240
  %v3242 = vpop.f32.mrb[0].mxu0
  %3243 = vdwg.mxu0
  %3244 = vmatprep.subr.mxu0 0.0
  %3245 = vmatpush1.msra.mxu0 %v492
  %3246 = vmatprep.subr.mxu0 0.0
  %3247 = vmatpush1.msra.mxu0 %v493
  %3248 = vmatprep.subr.mxu0 0.0
  %3249 = vmatpush1.msra.mxu0 %v494
  %3250 = vmatprep.subr.mxu0 0.0
  %3251 = vmatpush1.msra.mxu0 %v495
  %3252 = vmatprep.subr.mxu0 0.0
  %3253 = vmatpush1.msra.mxu0 0.0
  %3254 = vmatprep.subr.mxu0 0.0
  %3255 = vmatpush1.msra.mxu0 0.0
  %3256 = vmatprep.subr.mxu0 0.0
  %3257 = vmatpush1.msra.mxu0 0.0
  %3258 = vmatprep.subr.mxu0 0.0
  %3259 = vmatpush1.msra.mxu0 0.0
  %3260 = vmatprep.subr.mxu0 0.0
  %3261 = vmatpush1.msra.mxu0 0.0
  %3262 = vmatprep.subr.mxu0 0.0
  %3263 = vmatpush1.msra.mxu0 0.0
  %3264 = vmatprep.subr.mxu0 0.0
  %3265 = vmatpush1.msra.mxu0 0.0
  %3266 = vmatprep.subr.mxu0 0.0
  %3267 = vmatpush1.msra.mxu0 0.0
  %3268 = vmatprep.subr.mxu0 0.0
  %3269 = vmatpush1.msra.mxu0 0.0
  %3270 = vmatprep.subr.mxu0 0.0
  %3271 = vmatpush1.msra.mxu0 0.0
  %3272 = vmatprep.subr.mxu0 0.0
  %3273 = vmatpush1.msra.mxu0 0.0
  %3274 = vmatprep.subr.mxu0 0.0
  %3275 = vmatpush1.msra.mxu0 0.0
  %3276 = vmatprep.subr.mxu0 0.0
  %3277 = vmatpush1.msra.mxu0 0.0
  %3278 = vmatprep.subr.mxu0 0.0
  %3279 = vmatpush1.msra.mxu0 0.0
  %3280 = vmatprep.subr.mxu0 0.0
  %3281 = vmatpush1.msra.mxu0 0.0
  %3282 = vmatprep.subr.mxu0 0.0
  %3283 = vmatpush1.msra.mxu0 0.0
  %3284 = vmatprep.subr.mxu0 0.0
  %3285 = vmatpush1.msra.mxu0 0.0
  %3286 = vmatprep.subr.mxu0 0.0
  %3287 = vmatpush1.msra.mxu0 0.0
  %3288 = vmatprep.subr.mxu0 0.0
  %3289 = vmatpush1.msra.mxu0 0.0
  %3290 = vmatprep.subr.mxu0 0.0
  %3291 = vmatpush1.msra.mxu0 0.0
  %3292 = vmatprep.subr.mxu0 0.0
  %3293 = vmatpush1.msra.mxu0 0.0
  %3294 = vmatprep.subr.mxu0 0.0
  %3295 = vmatpush1.msra.mxu0 0.0
  %3296 = vmatprep.subr.mxu0 0.0
  %3297 = vmatpush1.msra.mxu0 0.0
  %3298 = vmatprep.subr.mxu0 0.0
  %3299 = vmatpush1.msra.mxu0 0.0
  %3300 = vmatprep.subr.mxu0 0.0
  %3301 = vmatpush1.msra.mxu0 0.0
  %3302 = vmatprep.subr.mxu0 0.0
  %3303 = vmatpush1.msra.mxu0 0.0
  %3304 = vmatprep.subr.mxu0 0.0
  %3305 = vmatpush1.msra.mxu0 0.0
  %3306 = vmatprep.subr.mxu0 0.0
  %3307 = vmatpush1.msra.mxu0 0.0
  %3308 = vmatprep.mubr.f32.mxu0 0.0
  %3309 = vmatmul.mubr.f32.gmra.mrb[0].mxu0 %v3172
  %v3310 = vpop.f32.mrb[0].mxu0
  %v3311 = vadd.f32 0.0, %v3310
  %v3312 = vpop.f32.mrb[0].mxu0
  %3313 = vdwg.mxu0
  %v3315 = vrot.slane %v3241, 2
  %v3316 = vrot.slane %v3241, 3
  %v3317 = vrot.slane %v3241, 4
  %v3318 = vrot.slane %v3241, 5
  %v3319 = vrot.slane %v3241, 6
  %v3320 = vrot.slane %v3241, 7
  %v3321 = vrot.slane %v3241, 1
  %v3330 = vadd.f32 %v154, %v3315
  %v3331 = vadd.f32 %v159, %v3316
  %v3332 = vadd.f32 %v164, %v3317
  %v3333 = vadd.f32 %v169, %v3318
  %v3334 = vadd.f32 %v174, %v3319
  %v3335 = vadd.f32 %v179, %v3320
  %v3336 = vadd.f32 %v184, %v3241
  %v3337 = vadd.f32 %v189, %v3321
  %v3338 = vmul.f32 %v3330, 0.5
  %v3339 = vmul.f32 %v3331, 0.5
  %v3340 = vmul.f32 %v3332, 0.5
  %v3341 = vmul.f32 %v3333, 0.5
  %v3342 = vmul.f32 %v3334, 0.5
  %v3343 = vmul.f32 %v3335, 0.5
  %v3344 = vmul.f32 %v3336, 0.5
  %v3345 = vmul.f32 %v3337, 0.5
  %v3346 = vtanh.pop %v3338
  %v3347 = vtanh.pop %v3339
  %v3348 = vtanh.pop %v3340
  %v3349 = vtanh.pop %v3341
  %v3350 = vtanh.pop %v3342
  %v3351 = vtanh.pop %v3343
  %v3352 = vtanh.pop %v3344
  %v3353 = vtanh.pop %v3345
  %v3354 = vmul.f32 %v3346, 0.5
  %v3355 = vmul.f32 %v3347, 0.5
  %v3356 = vmul.f32 %v3348, 0.5
  %v3357 = vmul.f32 %v3349, 0.5
  %v3358 = vmul.f32 %v3350, 0.5
  %v3359 = vmul.f32 %v3351, 0.5
  %v3360 = vmul.f32 %v3352, 0.5
  %v3361 = vmul.f32 %v3353, 0.5
  %v3362 = vadd.f32 %v3354, 0.5
  %v3363 = vadd.f32 %v3355, 0.5
  %v3364 = vadd.f32 %v3356, 0.5
  %v3365 = vadd.f32 %v3357, 0.5
  %v3366 = vadd.f32 %v3358, 0.5
  %v3367 = vadd.f32 %v3359, 0.5
  %v3368 = vadd.f32 %v3360, 0.5
  %v3369 = vadd.f32 %v3361, 0.5
  %v3371 = vrot.slane %v3311, 2
  %v3372 = vrot.slane %v3311, 3
  %v3373 = vrot.slane %v3311, 4
  %v3374 = vrot.slane %v3311, 5
  %v3375 = vrot.slane %v3311, 6
  %v3376 = vrot.slane %v3311, 7
  %v3377 = vrot.slane %v3311, 1
  %v3386 = vadd.f32 %v264, %v3371
  %v3387 = vadd.f32 %v269, %v3372
  %v3388 = vadd.f32 %v274, %v3373
  %v3389 = vadd.f32 %v279, %v3374
  %v3390 = vadd.f32 %v284, %v3375
  %v3391 = vadd.f32 %v289, %v3376
  %v3392 = vadd.f32 %v294, %v3311
  %v3393 = vadd.f32 %v299, %v3377
  %v3394 = vmul.f32 %v3386, 0.5
  %v3395 = vmul.f32 %v3387, 0.5
  %v3396 = vmul.f32 %v3388, 0.5
  %v3397 = vmul.f32 %v3389, 0.5
  %v3398 = vmul.f32 %v3390, 0.5
  %v3399 = vmul.f32 %v3391, 0.5
  %v3400 = vmul.f32 %v3392, 0.5
  %v3401 = vmul.f32 %v3393, 0.5
  %v3402 = vtanh.pop %v3394
  %v3403 = vtanh.pop %v3395
  %v3404 = vtanh.pop %v3396
  %v3405 = vtanh.pop %v3397
  %v3406 = vtanh.pop %v3398
  %v3407 = vtanh.pop %v3399
  %v3408 = vtanh.pop %v3400
  %v3409 = vtanh.pop %v3401
  %v3410 = vmul.f32 %v3402, 0.5
  %v3411 = vmul.f32 %v3403, 0.5
  %v3412 = vmul.f32 %v3404, 0.5
  %v3413 = vmul.f32 %v3405, 0.5
  %v3414 = vmul.f32 %v3406, 0.5
  %v3415 = vmul.f32 %v3407, 0.5
  %v3416 = vmul.f32 %v3408, 0.5
  %v3417 = vmul.f32 %v3409, 0.5
  %v3418 = vadd.f32 %v3410, 0.5
  %v3419 = vadd.f32 %v3411, 0.5
  %v3420 = vadd.f32 %v3412, 0.5
  %v3421 = vadd.f32 %v3413, 0.5
  %v3422 = vadd.f32 %v3414, 0.5
  %v3423 = vadd.f32 %v3415, 0.5
  %v3424 = vadd.f32 %v3416, 0.5
  %v3425 = vadd.f32 %v3417, 0.5
  %3426 = vmatprep.subr.mxu0 0.0
  %3427 = vmatpush1.msra.mxu0 %v567
  %3428 = vmatprep.subr.mxu0 0.0
  %3429 = vmatpush1.msra.mxu0 %v568
  %3430 = vmatprep.subr.mxu0 0.0
  %3431 = vmatpush1.msra.mxu0 %v569
  %3432 = vmatprep.subr.mxu0 0.0
  %3433 = vmatpush1.msra.mxu0 %v570
  %3434 = vmatprep.subr.mxu0 0.0
  %3435 = vmatpush1.msra.mxu0 0.0
  %3436 = vmatprep.subr.mxu0 0.0
  %3437 = vmatpush1.msra.mxu0 0.0
  %3438 = vmatprep.subr.mxu0 0.0
  %3439 = vmatpush1.msra.mxu0 0.0
  %3440 = vmatprep.subr.mxu0 0.0
  %3441 = vmatpush1.msra.mxu0 0.0
  %3442 = vmatprep.subr.mxu0 0.0
  %3443 = vmatpush1.msra.mxu0 0.0
  %3444 = vmatprep.subr.mxu0 0.0
  %3445 = vmatpush1.msra.mxu0 0.0
  %3446 = vmatprep.subr.mxu0 0.0
  %3447 = vmatpush1.msra.mxu0 0.0
  %3448 = vmatprep.subr.mxu0 0.0
  %3449 = vmatpush1.msra.mxu0 0.0
  %3450 = vmatprep.subr.mxu0 0.0
  %3451 = vmatpush1.msra.mxu0 0.0
  %3452 = vmatprep.subr.mxu0 0.0
  %3453 = vmatpush1.msra.mxu0 0.0
  %3454 = vmatprep.subr.mxu0 0.0
  %3455 = vmatpush1.msra.mxu0 0.0
  %3456 = vmatprep.subr.mxu0 0.0
  %3457 = vmatpush1.msra.mxu0 0.0
  %3458 = vmatprep.subr.mxu0 0.0
  %3459 = vmatpush1.msra.mxu0 0.0
  %3460 = vmatprep.subr.mxu0 0.0
  %3461 = vmatpush1.msra.mxu0 0.0
  %3462 = vmatprep.subr.mxu0 0.0
  %3463 = vmatpush1.msra.mxu0 0.0
  %3464 = vmatprep.subr.mxu0 0.0
  %3465 = vmatpush1.msra.mxu0 0.0
  %3466 = vmatprep.subr.mxu0 0.0
  %3467 = vmatpush1.msra.mxu0 0.0
  %3468 = vmatprep.subr.mxu0 0.0
  %3469 = vmatpush1.msra.mxu0 0.0
  %3470 = vmatprep.subr.mxu0 0.0
  %3471 = vmatpush1.msra.mxu0 0.0
  %3472 = vmatprep.subr.mxu0 0.0
  %3473 = vmatpush1.msra.mxu0 0.0
  %3474 = vmatprep.subr.mxu0 0.0
  %3475 = vmatpush1.msra.mxu0 0.0
  %3476 = vmatprep.subr.mxu0 0.0
  %3477 = vmatpush1.msra.mxu0 0.0
  %3478 = vmatprep.subr.mxu0 0.0
  %3479 = vmatpush1.msra.mxu0 0.0
  %3480 = vmatprep.subr.mxu0 0.0
  %3481 = vmatpush1.msra.mxu0 0.0
  %3482 = vmatprep.subr.mxu0 0.0
  %3483 = vmatpush1.msra.mxu0 0.0
  %3484 = vmatprep.subr.mxu0 0.0
  %3485 = vmatpush1.msra.mxu0 0.0
  %3486 = vmatprep.subr.mxu0 0.0
  %3487 = vmatpush1.msra.mxu0 0.0
  %3488 = vmatprep.subr.mxu0 0.0
  %3489 = vmatpush1.msra.mxu0 0.0
  %3490 = vmatprep.mubr.f32.mxu0 0.0
  %3491 = vmatmul.mubr.f32.gmra.mrb[0].mxu0 %v3172
  %v3492 = vpop.f32.mrb[0].mxu0
  %v3493 = vadd.f32 %v686, %v3492
  %v3494 = vpop.f32.mrb[0].mxu0
  %3495 = vdwg.mxu0
  %v3497 = vrot.slane %v3493, 2
  %v3498 = vrot.slane %v3493, 3
  %v3499 = vrot.slane %v3493, 4
  %v3500 = vrot.slane %v3493, 5
  %v3501 = vrot.slane %v3493, 6
  %v3502 = vrot.slane %v3493, 7
  %v3503 = vrot.slane %v3493, 1
  %v3512 = vmul.f32 %v3362, %v3497
  %v3513 = vmul.f32 %v3363, %v3498
  %v3514 = vmul.f32 %v3364, %v3499
  %v3515 = vmul.f32 %v3365, %v3500
  %v3516 = vmul.f32 %v3366, %v3501
  %v3517 = vmul.f32 %v3367, %v3502
  %v3518 = vmul.f32 %v3368, %v3493
  %v3519 = vmul.f32 %v3369, %v3503
  %v3520 = vadd.f32 %v374, %v3512
  %v3521 = vadd.f32 %v379, %v3513
  %v3522 = vadd.f32 %v384, %v3514
  %v3523 = vadd.f32 %v389, %v3515
  %v3524 = vadd.f32 %v394, %v3516
  %v3525 = vadd.f32 %v399, %v3517
  %v3526 = vadd.f32 %v404, %v3518
  %v3527 = vadd.f32 %v409, %v3519
  %v3528 = vtanh.pop %v3520
  %v3529 = vtanh.pop %v3521
  %v3530 = vtanh.pop %v3522
  %v3531 = vtanh.pop %v3523
  %v3532 = vtanh.pop %v3524
  %v3533 = vtanh.pop %v3525
  %v3534 = vtanh.pop %v3526
  %v3535 = vtanh.pop %v3527
  %v3544 = vrot.slane %v3528, 1
  %v3545 = vrot.slane %v3529, 1
  %v3546 = vrot.slane %v3530, 1
  %v3547 = vrot.slane %v3531, 1
  %v3548 = vrot.slane %v3532, 1
  %v3549 = vrot.slane %v3533, 1
  %v3550 = vrot.slane %v3534, 1
  %v3551 = vrot.slane %v3535, 1
  %v3560 = vsub.f32 %v3142, %v3544
  %v3561 = vsub.f32 %v3143, %v3545
  %v3562 = vsub.f32 %v3144, %v3546
  %v3563 = vsub.f32 %v3145, %v3547
  %v3564 = vsub.f32 %v3146, %v3548
  %v3565 = vsub.f32 %v3147, %v3549
  %v3566 = vsub.f32 %v3148, %v3550
  %v3567 = vsub.f32 %v3149, %v3551
  %v3576 = vrot.slane %v3560, 7
  %v3577 = vrot.slane %v3561, 7
  %v3578 = vrot.slane %v3562, 7
  %v3579 = vrot.slane %v3563, 7
  %v3580 = vrot.slane %v3564, 7
  %v3581 = vrot.slane %v3565, 7
  %v3582 = vrot.slane %v3566, 7
  %v3583 = vrot.slane %v3567, 7
  %v3592 = vmul.f32 %v3418, %v3576
  %v3593 = vmul.f32 %v3419, %v3577
  %v3594 = vmul.f32 %v3420, %v3578
  %v3595 = vmul.f32 %v3421, %v3579
  %v3596 = vmul.f32 %v3422, %v3580
  %v3597 = vmul.f32 %v3423, %v3581
  %v3598 = vmul.f32 %v3424, %v3582
  %v3599 = vmul.f32 %v3425, %v3583
  %v3600 = vadd.f32 %v3528, %v3592
  %v3601 = vadd.f32 %v3529, %v3593
  %v3602 = vadd.f32 %v3530, %v3594
  %v3603 = vadd.f32 %v3531, %v3595
  %v3604 = vadd.f32 %v3532, %v3596
  %v3605 = vadd.f32 %v3533, %v3597
  %v3606 = vadd.f32 %v3534, %v3598
  %v3607 = vadd.f32 %v3535, %v3599
  %v3616 = vrot.slane %v3600, 6
  %v3617 = vrot.slane %v3601, 5
  %v3618 = vsel %vm806, %v3617, %v3616
  %v3619 = vrot.slane %v3602, 4
  %v3620 = vsel %vm809, %v3619, %v3618
  %v3621 = vrot.slane %v3603, 3
  %v3622 = vsel %vm812, %v3621, %v3620
  %v3623 = vrot.slane %v3604, 2
  %v3624 = vsel %vm815, %v3623, %v3622
  %v3625 = vrot.slane %v3605, 1
  %v3626 = vsel %vm818, %v3625, %v3624
  %v3627 = vsel %vm821, %v3606, %v3626
  %v3628 = vrot.slane %v3607, 7
  %v3629 = vsel %vm824, %v3628, %v3627
  %v3630 = vsel %vm62, %v3629, 0
  %3632 = vmatprep.subr.mxu0 0.0
  %3633 = vmatpush1.msra.mxu0 %v414
  %3634 = vmatprep.subr.mxu0 0.0
  %3635 = vmatpush1.msra.mxu0 %v415
  %3636 = vmatprep.subr.mxu0 0.0
  %3637 = vmatpush1.msra.mxu0 %v416
  %3638 = vmatprep.subr.mxu0 0.0
  %3639 = vmatpush1.msra.mxu0 %v417
  %3640 = vmatprep.subr.mxu0 0.0
  %3641 = vmatpush1.msra.mxu0 0.0
  %3642 = vmatprep.subr.mxu0 0.0
  %3643 = vmatpush1.msra.mxu0 0.0
  %3644 = vmatprep.subr.mxu0 0.0
  %3645 = vmatpush1.msra.mxu0 0.0
  %3646 = vmatprep.subr.mxu0 0.0
  %3647 = vmatpush1.msra.mxu0 0.0
  %3648 = vmatprep.subr.mxu0 0.0
  %3649 = vmatpush1.msra.mxu0 0.0
  %3650 = vmatprep.subr.mxu0 0.0
  %3651 = vmatpush1.msra.mxu0 0.0
  %3652 = vmatprep.subr.mxu0 0.0
  %3653 = vmatpush1.msra.mxu0 0.0
  %3654 = vmatprep.subr.mxu0 0.0
  %3655 = vmatpush1.msra.mxu0 0.0
  %3656 = vmatprep.subr.mxu0 0.0
  %3657 = vmatpush1.msra.mxu0 0.0
  %3658 = vmatprep.subr.mxu0 0.0
  %3659 = vmatpush1.msra.mxu0 0.0
  %3660 = vmatprep.subr.mxu0 0.0
  %3661 = vmatpush1.msra.mxu0 0.0
  %3662 = vmatprep.subr.mxu0 0.0
  %3663 = vmatpush1.msra.mxu0 0.0
  %3664 = vmatprep.subr.mxu0 0.0
  %3665 = vmatpush1.msra.mxu0 0.0
  %3666 = vmatprep.subr.mxu0 0.0
  %3667 = vmatpush1.msra.mxu0 0.0
  %3668 = vmatprep.subr.mxu0 0.0
  %3669 = vmatpush1.msra.mxu0 0.0
  %3670 = vmatprep.subr.mxu0 0.0
  %3671 = vmatpush1.msra.mxu0 0.0
  %3672 = vmatprep.subr.mxu0 0.0
  %3673 = vmatpush1.msra.mxu0 0.0
  %3674 = vmatprep.subr.mxu0 0.0
  %3675 = vmatpush1.msra.mxu0 0.0
  %3676 = vmatprep.subr.mxu0 0.0
  %3677 = vmatpush1.msra.mxu0 0.0
  %3678 = vmatprep.subr.mxu0 0.0
  %3679 = vmatpush1.msra.mxu0 0.0
  %3680 = vmatprep.subr.mxu0 0.0
  %3681 = vmatpush1.msra.mxu0 0.0
  %3682 = vmatprep.subr.mxu0 0.0
  %3683 = vmatpush1.msra.mxu0 0.0
  %3684 = vmatprep.subr.mxu0 0.0
  %3685 = vmatpush1.msra.mxu0 0.0
  %3686 = vmatprep.subr.mxu0 0.0
  %3687 = vmatpush1.msra.mxu0 0.0
  %3688 = vmatprep.subr.mxu0 0.0
  %3689 = vmatpush1.msra.mxu0 0.0
  %3690 = vmatprep.subr.mxu0 0.0
  %3691 = vmatpush1.msra.mxu0 0.0
  %3692 = vmatprep.subr.mxu0 0.0
  %3693 = vmatpush1.msra.mxu0 0.0
  %3694 = vmatprep.subr.mxu0 0.0
  %3695 = vmatpush1.msra.mxu0 0.0
  %3696 = vmatprep.mubr.f32.mxu0 0.0
  %3697 = vmatmul.mubr.f32.gmra.mrb[0].mxu0 %v3630
  %v3698 = vpop.f32.mrb[0].mxu0
  %v3699 = vadd.f32 0.0, %v3698
  %v3700 = vpop.f32.mrb[0].mxu0
  %3701 = vdwg.mxu0
  %3702 = vmatprep.subr.mxu0 0.0
  %3703 = vmatpush1.msra.mxu0 %v492
  %3704 = vmatprep.subr.mxu0 0.0
  %3705 = vmatpush1.msra.mxu0 %v493
  %3706 = vmatprep.subr.mxu0 0.0
  %3707 = vmatpush1.msra.mxu0 %v494
  %3708 = vmatprep.subr.mxu0 0.0
  %3709 = vmatpush1.msra.mxu0 %v495
  %3710 = vmatprep.subr.mxu0 0.0
  %3711 = vmatpush1.msra.mxu0 0.0
  %3712 = vmatprep.subr.mxu0 0.0
  %3713 = vmatpush1.msra.mxu0 0.0
  %3714 = vmatprep.subr.mxu0 0.0
  %3715 = vmatpush1.msra.mxu0 0.0
  %3716 = vmatprep.subr.mxu0 0.0
  %3717 = vmatpush1.msra.mxu0 0.0
  %3718 = vmatprep.subr.mxu0 0.0
  %3719 = vmatpush1.msra.mxu0 0.0
  %3720 = vmatprep.subr.mxu0 0.0
  %3721 = vmatpush1.msra.mxu0 0.0
  %3722 = vmatprep.subr.mxu0 0.0
  %3723 = vmatpush1.msra.mxu0 0.0
  %3724 = vmatprep.subr.mxu0 0.0
  %3725 = vmatpush1.msra.mxu0 0.0
  %3726 = vmatprep.subr.mxu0 0.0
  %3727 = vmatpush1.msra.mxu0 0.0
  %3728 = vmatprep.subr.mxu0 0.0
  %3729 = vmatpush1.msra.mxu0 0.0
  %3730 = vmatprep.subr.mxu0 0.0
  %3731 = vmatpush1.msra.mxu0 0.0
  %3732 = vmatprep.subr.mxu0 0.0
  %3733 = vmatpush1.msra.mxu0 0.0
  %3734 = vmatprep.subr.mxu0 0.0
  %3735 = vmatpush1.msra.mxu0 0.0
  %3736 = vmatprep.subr.mxu0 0.0
  %3737 = vmatpush1.msra.mxu0 0.0
  %3738 = vmatprep.subr.mxu0 0.0
  %3739 = vmatpush1.msra.mxu0 0.0
  %3740 = vmatprep.subr.mxu0 0.0
  %3741 = vmatpush1.msra.mxu0 0.0
  %3742 = vmatprep.subr.mxu0 0.0
  %3743 = vmatpush1.msra.mxu0 0.0
  %3744 = vmatprep.subr.mxu0 0.0
  %3745 = vmatpush1.msra.mxu0 0.0
  %3746 = vmatprep.subr.mxu0 0.0
  %3747 = vmatpush1.msra.mxu0 0.0
  %3748 = vmatprep.subr.mxu0 0.0
  %3749 = vmatpush1.msra.mxu0 0.0
  %3750 = vmatprep.subr.mxu0 0.0
  %3751 = vmatpush1.msra.mxu0 0.0
  %3752 = vmatprep.subr.mxu0 0.0
  %3753 = vmatpush1.msra.mxu0 0.0
  %3754 = vmatprep.subr.mxu0 0.0
  %3755 = vmatpush1.msra.mxu0 0.0
  %3756 = vmatprep.subr.mxu0 0.0
  %3757 = vmatpush1.msra.mxu0 0.0
  %3758 = vmatprep.subr.mxu0 0.0
  %3759 = vmatpush1.msra.mxu0 0.0
  %3760 = vmatprep.subr.mxu0 0.0
  %3761 = vmatpush1.msra.mxu0 0.0
  %3762 = vmatprep.subr.mxu0 0.0
  %3763 = vmatpush1.msra.mxu0 0.0
  %3764 = vmatprep.subr.mxu0 0.0
  %3765 = vmatpush1.msra.mxu0 0.0
  %3766 = vmatprep.mubr.f32.mxu0 0.0
  %3767 = vmatmul.mubr.f32.gmra.mrb[0].mxu0 %v3630
  %v3768 = vpop.f32.mrb[0].mxu0
  %v3769 = vadd.f32 0.0, %v3768
  %v3770 = vpop.f32.mrb[0].mxu0
  %3771 = vdwg.mxu0
  %v3773 = vrot.slane %v3699, 1
  %v3774 = vrot.slane %v3699, 2
  %v3775 = vrot.slane %v3699, 3
  %v3776 = vrot.slane %v3699, 4
  %v3777 = vrot.slane %v3699, 5
  %v3778 = vrot.slane %v3699, 6
  %v3779 = vrot.slane %v3699, 7
  %v3788 = vadd.f32 %v154, %v3773
  %v3789 = vadd.f32 %v159, %v3774
  %v3790 = vadd.f32 %v164, %v3775
  %v3791 = vadd.f32 %v169, %v3776
  %v3792 = vadd.f32 %v174, %v3777
  %v3793 = vadd.f32 %v179, %v3778
  %v3794 = vadd.f32 %v184, %v3779
  %v3795 = vadd.f32 %v189, %v3699
  %v3796 = vmul.f32 %v3788, 0.5
  %v3797 = vmul.f32 %v3789, 0.5
  %v3798 = vmul.f32 %v3790, 0.5
  %v3799 = vmul.f32 %v3791, 0.5
  %v3800 = vmul.f32 %v3792, 0.5
  %v3801 = vmul.f32 %v3793, 0.5
  %v3802 = vmul.f32 %v3794, 0.5
  %v3803 = vmul.f32 %v3795, 0.5
  %v3804 = vtanh.pop %v3796
  %v3805 = vtanh.pop %v3797
  %v3806 = vtanh.pop %v3798
  %v3807 = vtanh.pop %v3799
  %v3808 = vtanh.pop %v3800
  %v3809 = vtanh.pop %v3801
  %v3810 = vtanh.pop %v3802
  %v3811 = vtanh.pop %v3803
  %v3812 = vmul.f32 %v3804, 0.5
  %v3813 = vmul.f32 %v3805, 0.5
  %v3814 = vmul.f32 %v3806, 0.5
  %v3815 = vmul.f32 %v3807, 0.5
  %v3816 = vmul.f32 %v3808, 0.5
  %v3817 = vmul.f32 %v3809, 0.5
  %v3818 = vmul.f32 %v3810, 0.5
  %v3819 = vmul.f32 %v3811, 0.5
  %v3820 = vadd.f32 %v3812, 0.5
  %v3821 = vadd.f32 %v3813, 0.5
  %v3822 = vadd.f32 %v3814, 0.5
  %v3823 = vadd.f32 %v3815, 0.5
  %v3824 = vadd.f32 %v3816, 0.5
  %v3825 = vadd.f32 %v3817, 0.5
  %v3826 = vadd.f32 %v3818, 0.5
  %v3827 = vadd.f32 %v3819, 0.5
  %v3829 = vrot.slane %v3769, 1
  %v3830 = vrot.slane %v3769, 2
  %v3831 = vrot.slane %v3769, 3
  %v3832 = vrot.slane %v3769, 4
  %v3833 = vrot.slane %v3769, 5
  %v3834 = vrot.slane %v3769, 6
  %v3835 = vrot.slane %v3769, 7
  %v3844 = vadd.f32 %v264, %v3829
  %v3845 = vadd.f32 %v269, %v3830
  %v3846 = vadd.f32 %v274, %v3831
  %v3847 = vadd.f32 %v279, %v3832
  %v3848 = vadd.f32 %v284, %v3833
  %v3849 = vadd.f32 %v289, %v3834
  %v3850 = vadd.f32 %v294, %v3835
  %v3851 = vadd.f32 %v299, %v3769
  %v3852 = vmul.f32 %v3844, 0.5
  %v3853 = vmul.f32 %v3845, 0.5
  %v3854 = vmul.f32 %v3846, 0.5
  %v3855 = vmul.f32 %v3847, 0.5
  %v3856 = vmul.f32 %v3848, 0.5
  %v3857 = vmul.f32 %v3849, 0.5
  %v3858 = vmul.f32 %v3850, 0.5
  %v3859 = vmul.f32 %v3851, 0.5
  %v3860 = vtanh.pop %v3852
  %v3861 = vtanh.pop %v3853
  %v3862 = vtanh.pop %v3854
  %v3863 = vtanh.pop %v3855
  %v3864 = vtanh.pop %v3856
  %v3865 = vtanh.pop %v3857
  %v3866 = vtanh.pop %v3858
  %v3867 = vtanh.pop %v3859
  %v3868 = vmul.f32 %v3860, 0.5
  %v3869 = vmul.f32 %v3861, 0.5
  %v3870 = vmul.f32 %v3862, 0.5
  %v3871 = vmul.f32 %v3863, 0.5
  %v3872 = vmul.f32 %v3864, 0.5
  %v3873 = vmul.f32 %v3865, 0.5
  %v3874 = vmul.f32 %v3866, 0.5
  %v3875 = vmul.f32 %v3867, 0.5
  %v3876 = vadd.f32 %v3868, 0.5
  %v3877 = vadd.f32 %v3869, 0.5
  %v3878 = vadd.f32 %v3870, 0.5
  %v3879 = vadd.f32 %v3871, 0.5
  %v3880 = vadd.f32 %v3872, 0.5
  %v3881 = vadd.f32 %v3873, 0.5
  %v3882 = vadd.f32 %v3874, 0.5
  %v3883 = vadd.f32 %v3875, 0.5
  %3884 = vmatprep.subr.mxu0 0.0
  %3885 = vmatpush1.msra.mxu0 %v567
  %3886 = vmatprep.subr.mxu0 0.0
  %3887 = vmatpush1.msra.mxu0 %v568
  %3888 = vmatprep.subr.mxu0 0.0
  %3889 = vmatpush1.msra.mxu0 %v569
  %3890 = vmatprep.subr.mxu0 0.0
  %3891 = vmatpush1.msra.mxu0 %v570
  %3892 = vmatprep.subr.mxu0 0.0
  %3893 = vmatpush1.msra.mxu0 0.0
  %3894 = vmatprep.subr.mxu0 0.0
  %3895 = vmatpush1.msra.mxu0 0.0
  %3896 = vmatprep.subr.mxu0 0.0
  %3897 = vmatpush1.msra.mxu0 0.0
  %3898 = vmatprep.subr.mxu0 0.0
  %3899 = vmatpush1.msra.mxu0 0.0
  %3900 = vmatprep.subr.mxu0 0.0
  %3901 = vmatpush1.msra.mxu0 0.0
  %3902 = vmatprep.subr.mxu0 0.0
  %3903 = vmatpush1.msra.mxu0 0.0
  %3904 = vmatprep.subr.mxu0 0.0
  %3905 = vmatpush1.msra.mxu0 0.0
  %3906 = vmatprep.subr.mxu0 0.0
  %3907 = vmatpush1.msra.mxu0 0.0
  %3908 = vmatprep.subr.mxu0 0.0
  %3909 = vmatpush1.msra.mxu0 0.0
  %3910 = vmatprep.subr.mxu0 0.0
  %3911 = vmatpush1.msra.mxu0 0.0
  %3912 = vmatprep.subr.mxu0 0.0
  %3913 = vmatpush1.msra.mxu0 0.0
  %3914 = vmatprep.subr.mxu0 0.0
  %3915 = vmatpush1.msra.mxu0 0.0
  %3916 = vmatprep.subr.mxu0 0.0
  %3917 = vmatpush1.msra.mxu0 0.0
  %3918 = vmatprep.subr.mxu0 0.0
  %3919 = vmatpush1.msra.mxu0 0.0
  %3920 = vmatprep.subr.mxu0 0.0
  %3921 = vmatpush1.msra.mxu0 0.0
  %3922 = vmatprep.subr.mxu0 0.0
  %3923 = vmatpush1.msra.mxu0 0.0
  %3924 = vmatprep.subr.mxu0 0.0
  %3925 = vmatpush1.msra.mxu0 0.0
  %3926 = vmatprep.subr.mxu0 0.0
  %3927 = vmatpush1.msra.mxu0 0.0
  %3928 = vmatprep.subr.mxu0 0.0
  %3929 = vmatpush1.msra.mxu0 0.0
  %3930 = vmatprep.subr.mxu0 0.0
  %3931 = vmatpush1.msra.mxu0 0.0
  %3932 = vmatprep.subr.mxu0 0.0
  %3933 = vmatpush1.msra.mxu0 0.0
  %3934 = vmatprep.subr.mxu0 0.0
  %3935 = vmatpush1.msra.mxu0 0.0
  %3936 = vmatprep.subr.mxu0 0.0
  %3937 = vmatpush1.msra.mxu0 0.0
  %3938 = vmatprep.subr.mxu0 0.0
  %3939 = vmatpush1.msra.mxu0 0.0
  %3940 = vmatprep.subr.mxu0 0.0
  %3941 = vmatpush1.msra.mxu0 0.0
  %3942 = vmatprep.subr.mxu0 0.0
  %3943 = vmatpush1.msra.mxu0 0.0
  %3944 = vmatprep.subr.mxu0 0.0
  %3945 = vmatpush1.msra.mxu0 0.0
  %3946 = vmatprep.subr.mxu0 0.0
  %3947 = vmatpush1.msra.mxu0 0.0
  %3948 = vmatprep.mubr.f32.mxu0 0.0
  %3949 = vmatmul.mubr.f32.gmra.mrb[0].mxu0 %v3630
  %v3950 = vpop.f32.mrb[0].mxu0
  %v3951 = vadd.f32 %v686, %v3950
  %v3952 = vpop.f32.mrb[0].mxu0
  %3953 = vdwg.mxu0
  %v3955 = vrot.slane %v3951, 1
  %v3956 = vrot.slane %v3951, 2
  %v3957 = vrot.slane %v3951, 3
  %v3958 = vrot.slane %v3951, 4
  %v3959 = vrot.slane %v3951, 5
  %v3960 = vrot.slane %v3951, 6
  %v3961 = vrot.slane %v3951, 7
  %v3970 = vmul.f32 %v3820, %v3955
  %v3971 = vmul.f32 %v3821, %v3956
  %v3972 = vmul.f32 %v3822, %v3957
  %v3973 = vmul.f32 %v3823, %v3958
  %v3974 = vmul.f32 %v3824, %v3959
  %v3975 = vmul.f32 %v3825, %v3960
  %v3976 = vmul.f32 %v3826, %v3961
  %v3977 = vmul.f32 %v3827, %v3951
  %v3978 = vadd.f32 %v374, %v3970
  %v3979 = vadd.f32 %v379, %v3971
  %v3980 = vadd.f32 %v384, %v3972
  %v3981 = vadd.f32 %v389, %v3973
  %v3982 = vadd.f32 %v394, %v3974
  %v3983 = vadd.f32 %v399, %v3975
  %v3984 = vadd.f32 %v404, %v3976
  %v3985 = vadd.f32 %v409, %v3977
  %v3986 = vtanh.pop %v3978
  %v3987 = vtanh.pop %v3979
  %v3988 = vtanh.pop %v3980
  %v3989 = vtanh.pop %v3981
  %v3990 = vtanh.pop %v3982
  %v3991 = vtanh.pop %v3983
  %v3992 = vtanh.pop %v3984
  %v3993 = vtanh.pop %v3985
  %v4002 = vrot.slane %v3986, 1
  %v4003 = vrot.slane %v3987, 1
  %v4004 = vrot.slane %v3988, 1
  %v4005 = vrot.slane %v3989, 1
  %v4006 = vrot.slane %v3990, 1
  %v4007 = vrot.slane %v3991, 1
  %v4008 = vrot.slane %v3992, 1
  %v4009 = vrot.slane %v3993, 1
  %v4018 = vsub.f32 %v3600, %v4002
  %v4019 = vsub.f32 %v3601, %v4003
  %v4020 = vsub.f32 %v3602, %v4004
  %v4021 = vsub.f32 %v3603, %v4005
  %v4022 = vsub.f32 %v3604, %v4006
  %v4023 = vsub.f32 %v3605, %v4007
  %v4024 = vsub.f32 %v3606, %v4008
  %v4025 = vsub.f32 %v3607, %v4009
  %v4034 = vrot.slane %v4018, 7
  %v4035 = vrot.slane %v4019, 7
  %v4036 = vrot.slane %v4020, 7
  %v4037 = vrot.slane %v4021, 7
  %v4038 = vrot.slane %v4022, 7
  %v4039 = vrot.slane %v4023, 7
  %v4040 = vrot.slane %v4024, 7
  %v4041 = vrot.slane %v4025, 7
  %v4050 = vmul.f32 %v3876, %v4034
  %v4051 = vmul.f32 %v3877, %v4035
  %v4052 = vmul.f32 %v3878, %v4036
  %v4053 = vmul.f32 %v3879, %v4037
  %v4054 = vmul.f32 %v3880, %v4038
  %v4055 = vmul.f32 %v3881, %v4039
  %v4056 = vmul.f32 %v3882, %v4040
  %v4057 = vmul.f32 %v3883, %v4041
  %v4058 = vadd.f32 %v3986, %v4050
  %v4059 = vadd.f32 %v3987, %v4051
  %v4060 = vadd.f32 %v3988, %v4052
  %v4061 = vadd.f32 %v3989, %v4053
  %v4062 = vadd.f32 %v3990, %v4054
  %v4063 = vadd.f32 %v3991, %v4055
  %v4064 = vadd.f32 %v3992, %v4056
  %v4065 = vadd.f32 %v3993, %v4057
  %v4074 = vrot.slane %v4059, 7
  %v4075 = vrot.slane %v4060, 6
  %v4076 = vsel %vm806, %v4075, %v4074
  %v4077 = vrot.slane %v4061, 5
  %v4078 = vsel %vm809, %v4077, %v4076
  %v4079 = vrot.slane %v4062, 4
  %v4080 = vsel %vm812, %v4079, %v4078
  %v4081 = vrot.slane %v4063, 3
  %v4082 = vsel %vm815, %v4081, %v4080
  %v4083 = vrot.slane %v4064, 2
  %v4084 = vsel %vm818, %v4083, %v4082
  %v4085 = vrot.slane %v4065, 1
  %v4086 = vsel %vm821, %v4085, %v4084
  %vm4089 = vcmask 261127
  %4090 = vst.msk [vmem:[#allocation2 - $0x7] sm:$0x80] %vm4089, %v4058
  %vm4091 = vcmask 260096
  %4092 = vst.msk [vmem:[#allocation2 + $0x1] sm:$0x7f] %vm4091, %v4086
  // Predicated region
  $region38: #{gru_head_forward.1} parent=0 // pred_check
    %p4093 = pneg %p29
  $region39: #{gru_head_forward.1} parent=0 // pred_check_branch
    %4095 = sbr.rel (%p4093) target = $region41
  $region40: #{gru_head_forward.1} parent=0 // pred_region
    %v4096 = vld [vmem:[%s0 + $0x7] sm:$0x1]
    %v4097 = vld [vmem:[%s0 + $0xf] sm:$0x1]
    %v4098 = vld [vmem:[%s0 + $0x17] sm:$0x1]
    %v4099 = vld [vmem:[%s0 + $0x1f] sm:$0x1]
    %v4100 = vld [vmem:[%s0 + $0x27] sm:$0x1]
    %v4101 = vld [vmem:[%s0 + $0x2f] sm:$0x1]
    %v4102 = vld [vmem:[%s0 + $0x37] sm:$0x1]
    %v4103 = vld [vmem:[%s0 + $0x3f] sm:$0x1]
    %v4104 = vld [vmem:[%s3] sm:$0xff]
    %v4105 = vld [vmem:[%s3 + $0x8] sm:$0xff]
    %v4106 = vld [vmem:[%s3 + $0x10] sm:$0xff]
    %v4107 = vld [vmem:[%s3 + $0x18] sm:$0xff]
    %s4108 = scalar_lea.vmem %s3, 32
    %v4109 = vld [vmem:[%s4108] sm:$0xff]
    %v4110 = vld [vmem:[%s4108 + $0x8] sm:$0xff]
    %v4111 = vld [vmem:[%s4108 + $0x10] sm:$0xff]
    %v4112 = vld [vmem:[%s4108 + $0x18] sm:$0xff]
    %s4113 = scalar_lea.vmem %s3, 64
    %v4114 = vld [vmem:[%s4113] sm:$0xff]
    %v4115 = vld [vmem:[%s4113 + $0x8] sm:$0xff]
    %v4116 = vld [vmem:[%s4113 + $0x10] sm:$0xff]
    %v4117 = vld [vmem:[%s4113 + $0x18] sm:$0xff]
    %v4118 = vld [vmem:[%s4 + $0x4] sm:$0x1]
    %v4119 = vlaneseq
    %v4120 = vshrl.u32 %v4119, 7
    %v4121 = vsub.s32 0, %v4120
    %v4122 = vrot.slane %v4118, %v4121
    %v4131 = vrot.slane %v4097, 7
    %v4132 = vsel %vm806, %v4131, %v4096
    %v4133 = vrot.slane %v4098, 6
    %v4134 = vsel %vm809, %v4133, %v4132
    %v4135 = vrot.slane %v4099, 5
    %v4136 = vsel %vm812, %v4135, %v4134
    %v4137 = vrot.slane %v4100, 4
    %v4138 = vsel %vm815, %v4137, %v4136
    %v4139 = vrot.slane %v4101, 3
    %v4140 = vsel %vm818, %v4139, %v4138
    %v4141 = vrot.slane %v4102, 2
    %v4142 = vsel %vm821, %v4141, %v4140
    %v4143 = vrot.slane %v4103, 1
    %v4144 = vsel %vm824, %v4143, %v4142
    %v4145 = vsel %vm62, %v4144, 0
    %4147 = vmatprep.subr.mxu0 0.0
    %4148 = vmatpush1.msra.mxu0 %v4104
    %4149 = vmatprep.subr.mxu0 0.0
    %4150 = vmatpush1.msra.mxu0 %v4105
    %4151 = vmatprep.subr.mxu0 0.0
    %4152 = vmatpush1.msra.mxu0 %v4106
    %4153 = vmatprep.subr.mxu0 0.0
    %4154 = vmatpush1.msra.mxu0 %v4107
    %4155 = vmatprep.subr.mxu0 0.0
    %4156 = vmatpush1.msra.mxu0 0.0
    %4157 = vmatprep.subr.mxu0 0.0
    %4158 = vmatpush1.msra.mxu0 0.0
    %4159 = vmatprep.subr.mxu0 0.0
    %4160 = vmatpush1.msra.mxu0 0.0
    %4161 = vmatprep.subr.mxu0 0.0
    %4162 = vmatpush1.msra.mxu0 0.0
    %4163 = vmatprep.subr.mxu0 0.0
    %4164 = vmatpush1.msra.mxu0 0.0
    %4165 = vmatprep.subr.mxu0 0.0
    %4166 = vmatpush1.msra.mxu0 0.0
    %4167 = vmatprep.subr.mxu0 0.0
    %4168 = vmatpush1.msra.mxu0 0.0
    %4169 = vmatprep.subr.mxu0 0.0
    %4170 = vmatpush1.msra.mxu0 0.0
    %4171 = vmatprep.subr.mxu0 0.0
    %4172 = vmatpush1.msra.mxu0 0.0
    %4173 = vmatprep.subr.mxu0 0.0
    %4174 = vmatpush1.msra.mxu0 0.0
    %4175 = vmatprep.subr.mxu0 0.0
    %4176 = vmatpush1.msra.mxu0 0.0
    %4177 = vmatprep.subr.mxu0 0.0
    %4178 = vmatpush1.msra.mxu0 0.0
    %4179 = vmatprep.subr.mxu0 0.0
    %4180 = vmatpush1.msra.mxu0 0.0
    %4181 = vmatprep.subr.mxu0 0.0
    %4182 = vmatpush1.msra.mxu0 0.0
    %4183 = vmatprep.subr.mxu0 0.0
    %4184 = vmatpush1.msra.mxu0 0.0
    %4185 = vmatprep.subr.mxu0 0.0
    %4186 = vmatpush1.msra.mxu0 0.0
    %4187 = vmatprep.subr.mxu0 0.0
    %4188 = vmatpush1.msra.mxu0 0.0
    %4189 = vmatprep.subr.mxu0 0.0
    %4190 = vmatpush1.msra.mxu0 0.0
    %4191 = vmatprep.subr.mxu0 0.0
    %4192 = vmatpush1.msra.mxu0 0.0
    %4193 = vmatprep.subr.mxu0 0.0
    %4194 = vmatpush1.msra.mxu0 0.0
    %4195 = vmatprep.subr.mxu0 0.0
    %4196 = vmatpush1.msra.mxu0 0.0
    %4197 = vmatprep.subr.mxu0 0.0
    %4198 = vmatpush1.msra.mxu0 0.0
    %4199 = vmatprep.subr.mxu0 0.0
    %4200 = vmatpush1.msra.mxu0 0.0
    %4201 = vmatprep.subr.mxu0 0.0
    %4202 = vmatpush1.msra.mxu0 0.0
    %4203 = vmatprep.subr.mxu0 0.0
    %4204 = vmatpush1.msra.mxu0 0.0
    %4205 = vmatprep.subr.mxu0 0.0
    %4206 = vmatpush1.msra.mxu0 0.0
    %4207 = vmatprep.subr.mxu0 0.0
    %4208 = vmatpush1.msra.mxu0 0.0
    %4209 = vmatprep.subr.mxu0 0.0
    %4210 = vmatpush1.msra.mxu0 0.0
    %4211 = vmatprep.mubr.f32.mxu0 0.0
    %4212 = vmatmul.mubr.f32.gmra.mrb[0].mxu0 %v4145
    %v4213 = vpop.f32.mrb[0].mxu0
    %v4214 = vadd.f32 %v4122, %v4213
    %v4215 = vpop.f32.mrb[0].mxu0
    %4216 = vdwg.mxu0
    %v4217 = vmul.f32 %v4214, 0.5
    %v4218 = vtanh.pop %v4217
    %v4219 = vmul.f32 %v4218, 0.5
    %v4220 = vadd.f32 %v4219, 0.5
    %v4221 = vld [vmem:[%s4 + $0x5] sm:$0x1]
    %v4222 = vlaneseq
    %v4223 = vshrl.u32 %v4222, 7
    %v4224 = vsub.s32 0, %v4223
    %v4225 = vrot.slane %v4221, %v4224
    %4226 = vmatprep.subr.mxu0 0.0
    %4227 = vmatpush1.msra.mxu0 %v4109
    %4228 = vmatprep.subr.mxu0 0.0
    %4229 = vmatpush1.msra.mxu0 %v4110
    %4230 = vmatprep.subr.mxu0 0.0
    %4231 = vmatpush1.msra.mxu0 %v4111
    %4232 = vmatprep.subr.mxu0 0.0
    %4233 = vmatpush1.msra.mxu0 %v4112
    %4234 = vmatprep.subr.mxu0 0.0
    %4235 = vmatpush1.msra.mxu0 0.0
    %4236 = vmatprep.subr.mxu0 0.0
    %4237 = vmatpush1.msra.mxu0 0.0
    %4238 = vmatprep.subr.mxu0 0.0
    %4239 = vmatpush1.msra.mxu0 0.0
    %4240 = vmatprep.subr.mxu0 0.0
    %4241 = vmatpush1.msra.mxu0 0.0
    %4242 = vmatprep.subr.mxu0 0.0
    %4243 = vmatpush1.msra.mxu0 0.0
    %4244 = vmatprep.subr.mxu0 0.0
    %4245 = vmatpush1.msra.mxu0 0.0
    %4246 = vmatprep.subr.mxu0 0.0
    %4247 = vmatpush1.msra.mxu0 0.0
    %4248 = vmatprep.subr.mxu0 0.0
    %4249 = vmatpush1.msra.mxu0 0.0
    %4250 = vmatprep.subr.mxu0 0.0
    %4251 = vmatpush1.msra.mxu0 0.0
    %4252 = vmatprep.subr.mxu0 0.0
    %4253 = vmatpush1.msra.mxu0 0.0
    %4254 = vmatprep.subr.mxu0 0.0
    %4255 = vmatpush1.msra.mxu0 0.0
    %4256 = vmatprep.subr.mxu0 0.0
    %4257 = vmatpush1.msra.mxu0 0.0
    %4258 = vmatprep.subr.mxu0 0.0
    %4259 = vmatpush1.msra.mxu0 0.0
    %4260 = vmatprep.subr.mxu0 0.0
    %4261 = vmatpush1.msra.mxu0 0.0
    %4262 = vmatprep.subr.mxu0 0.0
    %4263 = vmatpush1.msra.mxu0 0.0
    %4264 = vmatprep.subr.mxu0 0.0
    %4265 = vmatpush1.msra.mxu0 0.0
    %4266 = vmatprep.subr.mxu0 0.0
    %4267 = vmatpush1.msra.mxu0 0.0
    %4268 = vmatprep.subr.mxu0 0.0
    %4269 = vmatpush1.msra.mxu0 0.0
    %4270 = vmatprep.subr.mxu0 0.0
    %4271 = vmatpush1.msra.mxu0 0.0
    %4272 = vmatprep.subr.mxu0 0.0
    %4273 = vmatpush1.msra.mxu0 0.0
    %4274 = vmatprep.subr.mxu0 0.0
    %4275 = vmatpush1.msra.mxu0 0.0
    %4276 = vmatprep.subr.mxu0 0.0
    %4277 = vmatpush1.msra.mxu0 0.0
    %4278 = vmatprep.subr.mxu0 0.0
    %4279 = vmatpush1.msra.mxu0 0.0
    %4280 = vmatprep.subr.mxu0 0.0
    %4281 = vmatpush1.msra.mxu0 0.0
    %4282 = vmatprep.subr.mxu0 0.0
    %4283 = vmatpush1.msra.mxu0 0.0
    %4284 = vmatprep.subr.mxu0 0.0
    %4285 = vmatpush1.msra.mxu0 0.0
    %4286 = vmatprep.subr.mxu0 0.0
    %4287 = vmatpush1.msra.mxu0 0.0
    %4288 = vmatprep.subr.mxu0 0.0
    %4289 = vmatpush1.msra.mxu0 0.0
    %4290 = vmatprep.mubr.f32.mxu0 0.0
    %4291 = vmatmul.mubr.f32.gmra.mrb[0].mxu0 %v4145
    %v4292 = vpop.f32.mrb[0].mxu0
    %v4293 = vadd.f32 %v4225, %v4292
    %v4294 = vpop.f32.mrb[0].mxu0
    %4295 = vdwg.mxu0
    %v4296 = vmul.f32 %v4293, 0.5
    %v4297 = vtanh.pop %v4296
    %v4298 = vmul.f32 %v4297, 0.5
    %v4299 = vadd.f32 %v4298, 0.5
    %v4300 = vld [vmem:[%s4 + $0x6] sm:$0x1]
    %v4301 = vlaneseq
    %v4302 = vshrl.u32 %v4301, 7
    %v4303 = vsub.s32 0, %v4302
    %v4304 = vrot.slane %v4300, %v4303
    %4305 = vmatprep.subr.mxu0 0.0
    %4306 = vmatpush1.msra.mxu0 %v4114
    %4307 = vmatprep.subr.mxu0 0.0
    %4308 = vmatpush1.msra.mxu0 %v4115
    %4309 = vmatprep.subr.mxu0 0.0
    %4310 = vmatpush1.msra.mxu0 %v4116
    %4311 = vmatprep.subr.mxu0 0.0
    %4312 = vmatpush1.msra.mxu0 %v4117
    %4313 = vmatprep.subr.mxu0 0.0
    %4314 = vmatpush1.msra.mxu0 0.0
    %4315 = vmatprep.subr.mxu0 0.0
    %4316 = vmatpush1.msra.mxu0 0.0
    %4317 = vmatprep.subr.mxu0 0.0
    %4318 = vmatpush1.msra.mxu0 0.0
    %4319 = vmatprep.subr.mxu0 0.0
    %4320 = vmatpush1.msra.mxu0 0.0
    %4321 = vmatprep.subr.mxu0 0.0
    %4322 = vmatpush1.msra.mxu0 0.0
    %4323 = vmatprep.subr.mxu0 0.0
    %4324 = vmatpush1.msra.mxu0 0.0
    %4325 = vmatprep.subr.mxu0 0.0
    %4326 = vmatpush1.msra.mxu0 0.0
    %4327 = vmatprep.subr.mxu0 0.0
    %4328 = vmatpush1.msra.mxu0 0.0
    %4329 = vmatprep.subr.mxu0 0.0
    %4330 = vmatpush1.msra.mxu0 0.0
    %4331 = vmatprep.subr.mxu0 0.0
    %4332 = vmatpush1.msra.mxu0 0.0
    %4333 = vmatprep.subr.mxu0 0.0
    %4334 = vmatpush1.msra.mxu0 0.0
    %4335 = vmatprep.subr.mxu0 0.0
    %4336 = vmatpush1.msra.mxu0 0.0
    %4337 = vmatprep.subr.mxu0 0.0
    %4338 = vmatpush1.msra.mxu0 0.0
    %4339 = vmatprep.subr.mxu0 0.0
    %4340 = vmatpush1.msra.mxu0 0.0
    %4341 = vmatprep.subr.mxu0 0.0
    %4342 = vmatpush1.msra.mxu0 0.0
    %4343 = vmatprep.subr.mxu0 0.0
    %4344 = vmatpush1.msra.mxu0 0.0
    %4345 = vmatprep.subr.mxu0 0.0
    %4346 = vmatpush1.msra.mxu0 0.0
    %4347 = vmatprep.subr.mxu0 0.0
    %4348 = vmatpush1.msra.mxu0 0.0
    %4349 = vmatprep.subr.mxu0 0.0
    %4350 = vmatpush1.msra.mxu0 0.0
    %4351 = vmatprep.subr.mxu0 0.0
    %4352 = vmatpush1.msra.mxu0 0.0
    %4353 = vmatprep.subr.mxu0 0.0
    %4354 = vmatpush1.msra.mxu0 0.0
    %4355 = vmatprep.subr.mxu0 0.0
    %4356 = vmatpush1.msra.mxu0 0.0
    %4357 = vmatprep.subr.mxu0 0.0
    %4358 = vmatpush1.msra.mxu0 0.0
    %4359 = vmatprep.subr.mxu0 0.0
    %4360 = vmatpush1.msra.mxu0 0.0
    %4361 = vmatprep.subr.mxu0 0.0
    %4362 = vmatpush1.msra.mxu0 0.0
    %4363 = vmatprep.subr.mxu0 0.0
    %4364 = vmatpush1.msra.mxu0 0.0
    %4365 = vmatprep.subr.mxu0 0.0
    %4366 = vmatpush1.msra.mxu0 0.0
    %4367 = vmatprep.subr.mxu0 0.0
    %4368 = vmatpush1.msra.mxu0 0.0
    %4369 = vmatprep.mubr.f32.mxu0 0.0
    %4370 = vmatmul.mubr.f32.gmra.mrb[0].mxu0 %v4145
    %v4371 = vpop.f32.mrb[0].mxu0
    %v4372 = vadd.f32 %v4304, %v4371
    %v4373 = vpop.f32.mrb[0].mxu0
    %4374 = vdwg.mxu0
    %v4375 = vld [vmem:[%s4 + $0x7] sm:$0x1]
    %v4376 = vlaneseq
    %v4377 = vshrl.u32 %v4376, 7
    %v4378 = vsub.s32 0, %v4377
    %v4379 = vrot.slane %v4375, %v4378
    %v4380 = vmul.f32 %v4220, %v4379
    %v4381 = vadd.f32 %v4372, %v4380
    %v4382 = vtanh.pop %v4381
    %v4383 = vmul.f32 %v4299, %v4382
    %v4384 = vsub.f32 %v4382, %v4383
    %v4385 = vsel %vm4089, %v4058, 0.0
    %4386 = vadd.xlane.f32.xlu0 %v4385
    %v4387 = vpop.xlane.xlu0 %4386
    %v4388 = vsel %vm4091, %v4086, 0.0
    %4389 = vadd.xlane.f32.xlu0 %v4388
    %v4390 = vpop.xlane.xlu0 %4389
    %v4391 = vsel %vm62, %v4384, 0.0
    %4392 = vadd.xlane.f32.xlu0 %v4391
    %v4393 = vpop.xlane.xlu0 %4392
    %v4395 = vrot.slane %v4393, 1
    %v4397 = vadd.f32 %v4387, %v4395
    %v4398 = vadd.f32 %v4390, %v4395
    %v4399 = vmul.f32 %v4397, 0.015625
    %v4400 = vmul.f32 %v4398, 0.015625
    %4402 = vset.pattern.permute.xlu0 0
    %4403 = vperm.xlu0 %4402, %v4399
    %v4404 = vpop.permute.xlu0 %4403
    %4406 = vset.pattern.permute.xlu0 0
    %4407 = vperm.xlu0 %4406, %v4400
    %v4408 = vpop.permute.xlu0 %4407
    %v4409 = vrot.slane %v4408, 1
    %v4410 = vrot.slane %v4408, 2
    %v4411 = vrot.slane %v4408, 3
    %v4412 = vrot.slane %v4408, 4
    %v4413 = vrot.slane %v4408, 5
    %v4414 = vrot.slane %v4408, 6
    %v4415 = vrot.slane %v4408, 7
    %v4424 = vsub.f32 %v4058, %v4404
    %v4425 = vsub.f32 %v4059, %v4409
    %v4426 = vsub.f32 %v4060, %v4410
    %v4427 = vsub.f32 %v4061, %v4411
    %v4428 = vsub.f32 %v4062, %v4412
    %v4429 = vsub.f32 %v4063, %v4413
    %v4430 = vsub.f32 %v4064, %v4414
    %v4431 = vsub.f32 %v4065, %v4415
    %vm4432 = vcmask 1040384
    %v4433 = vrot.slane %v4404, 7
    %v4434 = vsel %vm4432, %v4433, %v4415
    %v4436 = vsub.f32 %v4384, %v4434
    %v4437 = vmul.f32 %v4424, %v4424
    %v4438 = vmul.f32 %v4425, %v4425
    %v4439 = vmul.f32 %v4426, %v4426
    %v4440 = vmul.f32 %v4427, %v4427
    %v4441 = vmul.f32 %v4428, %v4428
    %v4442 = vmul.f32 %v4429, %v4429
    %v4443 = vmul.f32 %v4430, %v4430
    %v4444 = vmul.f32 %v4431, %v4431
    %v4453 = vrot.slane %v4438, 7
    %v4454 = vrot.slane %v4439, 6
    %v4455 = vsel %vm806, %v4454, %v4453
    %v4456 = vrot.slane %v4440, 5
    %v4457 = vsel %vm809, %v4456, %v4455
    %v4458 = vrot.slane %v4441, 4
    %v4459 = vsel %vm812, %v4458, %v4457
    %v4460 = vrot.slane %v4442, 3
    %v4461 = vsel %vm815, %v4460, %v4459
    %v4462 = vrot.slane %v4443, 2
    %v4463 = vsel %vm818, %v4462, %v4461
    %v4464 = vrot.slane %v4444, 1
    %v4465 = vsel %vm821, %v4464, %v4463
    %v4468 = vsel %vm4089, %v4437, 0.0
    %4469 = vadd.xlane.f32.xlu0 %v4468
    %v4470 = vpop.xlane.xlu0 %4469
    %v4471 = vsel %vm4091, %v4465, 0.0
    %4472 = vadd.xlane.f32.xlu0 %v4471
    %v4473 = vpop.xlane.xlu0 %4472
    %v4474 = vmul.f32 %v4436, %v4436
    %v4475 = vsel %vm62, %v4474, 0.0
    %4476 = vadd.xlane.f32.xlu0 %v4475
    %v4477 = vpop.xlane.xlu0 %4476
    %v4479 = vrot.slane %v4477, 1
    %v4481 = vadd.f32 %v4470, %v4479
    %v4482 = vadd.f32 %v4473, %v4479
    %v4483 = vmul.f32 %v4481, 0.015625
    %v4484 = vmul.f32 %v4482, 0.015625
    %v4485 = vadd.f32 %v4483, 1e-05
    %v4486 = vadd.f32 %v4484, 1e-05
    %v4487 = vrsqrt.pop %v4485
    %v4488 = vrsqrt.pop %v4486
    %4490 = vset.pattern.permute.xlu0 0
    %4491 = vperm.xlu0 %4490, %v4487
    %v4492 = vpop.permute.xlu0 %4491
    %4494 = vset.pattern.permute.xlu0 0
    %4495 = vperm.xlu0 %4494, %v4488
    %v4496 = vpop.permute.xlu0 %4495
    %v4497 = vrot.slane %v4496, 1
    %v4498 = vrot.slane %v4496, 2
    %v4499 = vrot.slane %v4496, 3
    %v4500 = vrot.slane %v4496, 4
    %v4501 = vrot.slane %v4496, 5
    %v4502 = vrot.slane %v4496, 6
    %v4503 = vrot.slane %v4496, 7
    %v4512 = vmul.f32 %v4424, %v4492
    %v4513 = vmul.f32 %v4425, %v4497
    %v4514 = vmul.f32 %v4426, %v4498
    %v4515 = vmul.f32 %v4427, %v4499
    %v4516 = vmul.f32 %v4428, %v4500
    %v4517 = vmul.f32 %v4429, %v4501
    %v4518 = vmul.f32 %v4430, %v4502
    %v4519 = vmul.f32 %v4431, %v4503
    %v4520 = vld [vmem:[%s4 + $0x8] sm:$0x1]
    %v4521 = vlaneseq
    %v4522 = vshrl.u32 %v4521, 7
    %v4523 = vsub.s32 0, %v4522
    %v4524 = vrot.slane %v4520, %v4523
    %v4525 = vmul.f32 %v4512, %v4524
    %v4526 = vmul.f32 %v4513, %v4524
    %v4527 = vmul.f32 %v4514, %v4524
    %v4528 = vmul.f32 %v4515, %v4524
    %v4529 = vmul.f32 %v4516, %v4524
    %v4530 = vmul.f32 %v4517, %v4524
    %v4531 = vmul.f32 %v4518, %v4524
    %v4532 = vmul.f32 %v4519, %v4524
    %v4533 = vld [vmem:[%s4 + $0xa] sm:$0x1]
    %v4534 = vlaneseq
    %v4535 = vshrl.u32 %v4534, 7
    %v4536 = vsub.s32 0, %v4535
    %v4537 = vrot.slane %v4533, %v4536
    %v4538 = vadd.f32 %v4525, %v4537
    %v4539 = vadd.f32 %v4526, %v4537
    %v4540 = vadd.f32 %v4527, %v4537
    %v4541 = vadd.f32 %v4528, %v4537
    %v4542 = vadd.f32 %v4529, %v4537
    %v4543 = vadd.f32 %v4530, %v4537
    %v4544 = vadd.f32 %v4531, %v4537
    %v4545 = vadd.f32 %v4532, %v4537
    %v4546 = vrot.slane %v4492, 7
    %v4547 = vsel %vm4432, %v4546, %v4503
    %v4549 = vmul.f32 %v4436, %v4547
    %v4550 = vld [vmem:[%s4 + $0x9] sm:$0x1]
    %v4551 = vlaneseq
    %v4552 = vshrl.u32 %v4551, 7
    %v4553 = vsub.s32 0, %v4552
    %v4554 = vrot.slane %v4550, %v4553
    %v4555 = vmul.f32 %v4549, %v4554
    %v4556 = vld [vmem:[%s4 + $0xb] sm:$0x1]
    %v4557 = vlaneseq
    %v4558 = vshrl.u32 %v4557, 7
    %v4559 = vsub.s32 0, %v4558
    %v4560 = vrot.slane %v4556, %v4559
    %v4561 = vadd.f32 %v4555, %v4560
    %v4562 = vld [vmem:[%s5] sm:$0xff]
    %v4563 = vld [vmem:[%s5 + $0x8] sm:$0xff]
    %v4564 = vld [vmem:[%s5 + $0x10] sm:$0xff]
    %v4565 = vld [vmem:[%s5 + $0x18] sm:$0xff]
    %v4566 = vld [vmem:[%s6] sm:$0xff]
    %v4567 = vld [vmem:[%s6 + $0x8] sm:$0xff]
    %v4568 = vld [vmem:[%s6 + $0x10] sm:$0xff]
    %v4569 = vld [vmem:[%s6 + $0x18] sm:$0xff]
    %v4571 = vsel %vm62, %v4561, 0
    %4573 = vmatprep.subr.mxu0 0.0
    %4574 = vmatpush1.msra.mxu0 %v4566
    %4575 = vmatprep.subr.mxu0 0.0
    %4576 = vmatpush1.msra.mxu0 %v4567
    %4577 = vmatprep.subr.mxu0 0.0
    %4578 = vmatpush1.msra.mxu0 %v4568
    %4579 = vmatprep.subr.mxu0 0.0
    %4580 = vmatpush1.msra.mxu0 %v4569
    %4581 = vmatprep.subr.mxu0 0.0
    %4582 = vmatpush1.msra.mxu0 0.0
    %4583 = vmatprep.subr.mxu0 0.0
    %4584 = vmatpush1.msra.mxu0 0.0
    %4585 = vmatprep.subr.mxu0 0.0
    %4586 = vmatpush1.msra.mxu0 0.0
    %4587 = vmatprep.subr.mxu0 0.0
    %4588 = vmatpush1.msra.mxu0 0.0
    %4589 = vmatprep.subr.mxu0 0.0
    %4590 = vmatpush1.msra.mxu0 0.0
    %4591 = vmatprep.subr.mxu0 0.0
    %4592 = vmatpush1.msra.mxu0 0.0
    %4593 = vmatprep.subr.mxu0 0.0
    %4594 = vmatpush1.msra.mxu0 0.0
    %4595 = vmatprep.subr.mxu0 0.0
    %4596 = vmatpush1.msra.mxu0 0.0
    %4597 = vmatprep.subr.mxu0 0.0
    %4598 = vmatpush1.msra.mxu0 0.0
    %4599 = vmatprep.subr.mxu0 0.0
    %4600 = vmatpush1.msra.mxu0 0.0
    %4601 = vmatprep.subr.mxu0 0.0
    %4602 = vmatpush1.msra.mxu0 0.0
    %4603 = vmatprep.subr.mxu0 0.0
    %4604 = vmatpush1.msra.mxu0 0.0
    %4605 = vmatprep.subr.mxu0 0.0
    %4606 = vmatpush1.msra.mxu0 0.0
    %4607 = vmatprep.subr.mxu0 0.0
    %4608 = vmatpush1.msra.mxu0 0.0
    %4609 = vmatprep.subr.mxu0 0.0
    %4610 = vmatpush1.msra.mxu0 0.0
    %4611 = vmatprep.subr.mxu0 0.0
    %4612 = vmatpush1.msra.mxu0 0.0
    %4613 = vmatprep.subr.mxu0 0.0
    %4614 = vmatpush1.msra.mxu0 0.0
    %4615 = vmatprep.subr.mxu0 0.0
    %4616 = vmatpush1.msra.mxu0 0.0
    %4617 = vmatprep.subr.mxu0 0.0
    %4618 = vmatpush1.msra.mxu0 0.0
    %4619 = vmatprep.subr.mxu0 0.0
    %4620 = vmatpush1.msra.mxu0 0.0
    %4621 = vmatprep.subr.mxu0 0.0
    %4622 = vmatpush1.msra.mxu0 0.0
    %4623 = vmatprep.subr.mxu0 0.0
    %4624 = vmatpush1.msra.mxu0 0.0
    %4625 = vmatprep.subr.mxu0 0.0
    %4626 = vmatpush1.msra.mxu0 0.0
    %4627 = vmatprep.subr.mxu0 0.0
    %4628 = vmatpush1.msra.mxu0 0.0
    %4629 = vmatprep.subr.mxu0 0.0
    %4630 = vmatpush1.msra.mxu0 0.0
    %4631 = vmatprep.subr.mxu0 0.0
    %4632 = vmatpush1.msra.mxu0 0.0
    %4633 = vmatprep.subr.mxu0 0.0
    %4634 = vmatpush1.msra.mxu0 0.0
    %4635 = vmatprep.subr.mxu0 0.0
    %4636 = vmatpush1.msra.mxu0 0.0
    %4637 = vmatprep.mubr.f32.mxu0 0.0
    %4638 = vmatmul.mubr.f32.gmra.mrb[0].mxu0 %v4571
    %v4639 = vpop.f32.mrb[0].mxu0
    %v4640 = vadd.f32 0.0, %v4639
    %v4641 = vpop.f32.mrb[0].mxu0
    %4642 = vdwg.mxu0
    %v4651 = vrot.slane %v4538, 7
    %v4652 = vrot.slane %v4539, 6
    %v4653 = vsel %vm806, %v4652, %v4651
    %v4654 = vrot.slane %v4540, 5
    %v4655 = vsel %vm809, %v4654, %v4653
    %v4656 = vrot.slane %v4541, 4
    %v4657 = vsel %vm812, %v4656, %v4655
    %v4658 = vrot.slane %v4542, 3
    %v4659 = vsel %vm815, %v4658, %v4657
    %v4660 = vrot.slane %v4543, 2
    %v4661 = vsel %vm818, %v4660, %v4659
    %v4662 = vrot.slane %v4544, 1
    %v4663 = vsel %vm821, %v4662, %v4661
    %v4664 = vsel %vm824, %v4545, %v4663
    %v4665 = vsel %vm62, %v4664, 0
    %4667 = vmatprep.subr.mxu0 0.0
    %4668 = vmatpush1.msra.mxu0 %v4562
    %4669 = vmatprep.subr.mxu0 0.0
    %4670 = vmatpush1.msra.mxu0 %v4563
    %4671 = vmatprep.subr.mxu0 0.0
    %4672 = vmatpush1.msra.mxu0 %v4564
    %4673 = vmatprep.subr.mxu0 0.0
    %4674 = vmatpush1.msra.mxu0 %v4565
    %4675 = vmatprep.subr.mxu0 0.0
    %4676 = vmatpush1.msra.mxu0 0.0
    %4677 = vmatprep.subr.mxu0 0.0
    %4678 = vmatpush1.msra.mxu0 0.0
    %4679 = vmatprep.subr.mxu0 0.0
    %4680 = vmatpush1.msra.mxu0 0.0
    %4681 = vmatprep.subr.mxu0 0.0
    %4682 = vmatpush1.msra.mxu0 0.0
    %4683 = vmatprep.subr.mxu0 0.0
    %4684 = vmatpush1.msra.mxu0 0.0
    %4685 = vmatprep.subr.mxu0 0.0
    %4686 = vmatpush1.msra.mxu0 0.0
    %4687 = vmatprep.subr.mxu0 0.0
    %4688 = vmatpush1.msra.mxu0 0.0
    %4689 = vmatprep.subr.mxu0 0.0
    %4690 = vmatpush1.msra.mxu0 0.0
    %4691 = vmatprep.subr.mxu0 0.0
    %4692 = vmatpush1.msra.mxu0 0.0
    %4693 = vmatprep.subr.mxu0 0.0
    %4694 = vmatpush1.msra.mxu0 0.0
    %4695 = vmatprep.subr.mxu0 0.0
    %4696 = vmatpush1.msra.mxu0 0.0
    %4697 = vmatprep.subr.mxu0 0.0
    %4698 = vmatpush1.msra.mxu0 0.0
    %4699 = vmatprep.subr.mxu0 0.0
    %4700 = vmatpush1.msra.mxu0 0.0
    %4701 = vmatprep.subr.mxu0 0.0
    %4702 = vmatpush1.msra.mxu0 0.0
    %4703 = vmatprep.subr.mxu0 0.0
    %4704 = vmatpush1.msra.mxu0 0.0
    %4705 = vmatprep.subr.mxu0 0.0
    %4706 = vmatpush1.msra.mxu0 0.0
    %4707 = vmatprep.subr.mxu0 0.0
    %4708 = vmatpush1.msra.mxu0 0.0
    %4709 = vmatprep.subr.mxu0 0.0
    %4710 = vmatpush1.msra.mxu0 0.0
    %4711 = vmatprep.subr.mxu0 0.0
    %4712 = vmatpush1.msra.mxu0 0.0
    %4713 = vmatprep.subr.mxu0 0.0
    %4714 = vmatpush1.msra.mxu0 0.0
    %4715 = vmatprep.subr.mxu0 0.0
    %4716 = vmatpush1.msra.mxu0 0.0
    %4717 = vmatprep.subr.mxu0 0.0
    %4718 = vmatpush1.msra.mxu0 0.0
    %4719 = vmatprep.subr.mxu0 0.0
    %4720 = vmatpush1.msra.mxu0 0.0
    %4721 = vmatprep.subr.mxu0 0.0
    %4722 = vmatpush1.msra.mxu0 0.0
    %4723 = vmatprep.subr.mxu0 0.0
    %4724 = vmatpush1.msra.mxu0 0.0
    %4725 = vmatprep.subr.mxu0 0.0
    %4726 = vmatpush1.msra.mxu0 0.0
    %4727 = vmatprep.subr.mxu0 0.0
    %4728 = vmatpush1.msra.mxu0 0.0
    %4729 = vmatprep.subr.mxu0 0.0
    %4730 = vmatpush1.msra.mxu0 0.0
    %4731 = vmatprep.mubr.f32.mxu0 0.0
    %4732 = vmatmul.mubr.f32.gmra.mrb[0].mxu0 %v4665
    %v4733 = vpop.f32.mrb[0].mxu0
    %v4734 = vadd.f32 %v4640, %v4733
    %v4735 = vpop.f32.mrb[0].mxu0
    %4736 = vdwg.mxu0
    %v4737 = vld [vmem:[%s7] sm:$0x1]
    %v4739 = vlaneseq
    %v4740 = vshrl.u32 %v4739, 7
    %v4741 = vsub.s32 0, %v4740
    %v4742 = vrot.slane %v4737, %v4741
    %v4744 = vadd.f32 %v4734, %v4742
    %4745 = vst [vmem:[%s8] sm:$0xff] %v4744
  $region41: #{gru_head_forward.1} parent=0 // pred_fallthru
    _
  // Predicated region
  $region42: #{gru_head_forward.1} parent=0 // pred_check
    _
  $region43: #{gru_head_forward.1} parent=0 // pred_check_branch
    %4747 = sbr.rel (0) target = $region45
  $region44: #{gru_head_forward.1} parent=0 // pred_region
    _
  $region45: #{gru_head_forward.1} parent=0 // pred_fallthru
    _
  // Predicated region
  $region46: #{gru_head_forward.1} parent=0 // pred_check
    _
  $region47: #{gru_head_forward.1} parent=0 // pred_check_branch
    %4749 = sbr.rel (0) target = $region49
  $region48: #{gru_head_forward.1} parent=0 // pred_region
    _
  $region49: #{gru_head_forward.1} parent=0 // pred_fallthru
    _

</llo_original>
